<compile_context>
chip_gen: v5e
topology: v5e:2x2
jax: 0.10.0
libtpu: 0.0.40
codegen_flags: <defaults>
</compile_context>

<pallas_src>
import functools

import jax
import jax.numpy as jnp
from jax import lax
from jax.experimental import pallas as pl
from jax.experimental.pallas import tpu as pltpu

# Safe on v5e/v6e/v7x (<= scoped default on v6e/v7x, raises the 16 MiB v5e default).
# Raise per-chip (v6e ~100 MiB) for seq-1024 / D=2048 scale workloads.
_VMEM_LIMIT = 32 * 1024 * 1024


# --------------------------------- kernels ----------------------------------
def _layer_norm(t, g, b):
    mu = jnp.mean(t, axis=-1, keepdims=True)
    c = t - mu
    var = jnp.mean(c * c, axis=-1, keepdims=True)
    return c * lax.rsqrt(var + 1e-5) * g + b


def fc_qkv_kernel(x_ref, fc1w_ref, fc1b_ref, fc2w_ref, fc2b_ref,
                  inpw_ref, inpb_ref, src_ref, q_ref, k_ref, v_ref):
    """src = fc(x); qkv = src @ W_in + b_in (q already scaled via weight fold).

    x_ref   : (1, TS, D)  bf16
    src_ref : (1, TS, D)  f32   (residual input for the layer's second half)
    q/k/v   : (1, nhead, TS, hd) bf16, head-major for lane-dense flash attention
    GEMMs: bf16 operands, f32 accumulation. Elementwise (ReLU) stays in f32.
    """
    nhead, hd = q_ref.shape[1], q_ref.shape[3]
    D = nhead * hd

    x = x_ref[0]                                                    # (TS, D) bf16
    h = jnp.dot(x, fc1w_ref[...], preferred_element_type=jnp.float32) + fc1b_ref[...]
    h = jnp.maximum(h, 0.0)
    src = jnp.dot(h.astype(jnp.bfloat16), fc2w_ref[...],
                  preferred_element_type=jnp.float32) + fc2b_ref[...]
    qkv = jnp.dot(src.astype(jnp.bfloat16), inpw_ref[...],
                  preferred_element_type=jnp.float32) + inpb_ref[...]
    qkv = qkv.astype(jnp.bfloat16)                                  # (TS, 3D)

    src_ref[0] = src.astype(src_ref.dtype)

    def to_heads(t):                                                # (TS, D) -> (nhead, TS, hd)
        return jnp.stack([t[:, i * hd:(i + 1) * hd] for i in range(nhead)], axis=0)

    q_ref[0] = to_heads(qkv[:, :D])
    k_ref[0] = to_heads(qkv[:, D:2 * D])
    v_ref[0] = to_heads(qkv[:, 2 * D:3 * D])


def flash_attn_kernel(q_ref, k_ref, v_ref, o_ref, m_ref, l_ref, acc_ref):
    """Head-batched flash attention; K/V streamed along the innermost grid axis."""
    nhead = q_ref.shape[1]
    ki = pl.program_id(2)

    @pl.when(ki == 0)
    def _():
        m_ref[...] = jnp.full(m_ref.shape, -jnp.inf, dtype=m_ref.dtype)
        l_ref[...] = jnp.zeros(l_ref.shape, dtype=l_ref.dtype)
        acc_ref[...] = jnp.zeros(acc_ref.shape, dtype=acc_ref.dtype)

    q = q_ref[0]                                                    # (nhead, TQ, hd) bf16
    k = k_ref[0]                                                    # (nhead, TK, hd) bf16
    v = v_ref[0]                                                    # (nhead, TK, hd) bf16

    # 1/sqrt(hd) already folded into the q projection weights.
    s = jnp.einsum("hqd,hkd->hqk", q, k,
                   preferred_element_type=jnp.float32)              # (nhead, TQ, TK) f32
    m_prev = m_ref[...]
    m_new = jnp.maximum(m_prev, jnp.max(s, axis=-1, keepdims=True))
    alpha = jnp.exp(m_prev - m_new)
    p = jnp.exp(s - m_new)
    l_ref[...] = alpha * l_ref[...] + jnp.sum(p, axis=-1, keepdims=True)
    acc_ref[...] = alpha * acc_ref[...] + jnp.einsum(
        "hqk,hkd->hqd", p.astype(v.dtype), v, preferred_element_type=jnp.float32)
    m_ref[...] = m_new

    @pl.when(ki == pl.num_programs(2) - 1)
    def _():
        ctx = acc_ref[...] * pl.reciprocal(l_ref[...], approx=True)  # (nhead, TQ, hd)
        # Single lane-dense (TQ, D) store instead of per-head narrow stripes.
        o_ref[0] = jnp.concatenate(
            [ctx[h] for h in range(nhead)], axis=-1).astype(o_ref.dtype)


def out_mlp_kernel(src_ref, ctx_ref, outw_ref, outb_ref, ln1g_ref, ln1b_ref,
                   fc1w_ref, fc1b_ref, fc2w_ref, fc2b_ref, ln2g_ref, ln2b_ref,
                   o_ref):
    """attn out-proj -> residual + norm1 -> fc (shared weights, 2nd use) -> residual + norm2."""
    src = src_ref[0]                                                 # (TS, D) f32
    attn = jnp.dot(ctx_ref[0], outw_ref[...],
                   preferred_element_type=jnp.float32) + outb_ref[...]
    x1 = _layer_norm(src + attn, ln1g_ref[...], ln1b_ref[...])
    h = jnp.dot(x1.astype(jnp.bfloat16), fc1w_ref[...],
                preferred_element_type=jnp.float32) + fc1b_ref[...]
    h = jnp.maximum(h, 0.0)
    x2 = jnp.dot(h.astype(jnp.bfloat16), fc2w_ref[...],
                 preferred_element_type=jnp.float32) + fc2b_ref[...]
    y = _layer_norm(x1 + x2, ln2g_ref[...], ln2b_ref[...])
    o_ref[0] = y.astype(o_ref.dtype)


# --------------------------------- wrappers ----------------------------------
def transformer_layer_forward(x_bsd, kp, nhead, *, row_tile=256):
    """x_bsd: (B, S, D) bf16 -> (B, S, D) bf16. One TransformerLayer forward."""
    B, S, D = x_bsd.shape
    H = kp["fc1_w"].shape[1]
    assert D % nhead == 0
    hd = D // nhead
    ts = min(S, row_tile)            # >= 256 at real seq lengths keeps MXU tiles full
    assert S % ts == 0, (S, ts)
    nst = S // ts

    def const2(shape):               # weights: constant block index -> fetched once
        return pl.BlockSpec(shape, lambda b, s: (0,) * len(shape))

    def row2():
        return pl.BlockSpec((1, ts, D), lambda b, s: (b, s, 0))

    def head2():
        return pl.BlockSpec((1, nhead, ts, hd), lambda b, s: (b, 0, s, 0))

    # ---- kernel A: fc + QKV projection, tiled over (batch, S-tiles) ----------
    src_fc, q_hm, k_hm, v_hm = pl.pallas_call(
        fc_qkv_kernel,
        grid=(B, nst),
        in_specs=[
            row2(),
            const2((D, H)), const2((1, H)),
            const2((H, D)), const2((1, D)),
            const2((D, 3 * D)), const2((1, 3 * D)),
        ],
        out_specs=(row2(), head2(), head2(), head2()),
        out_shape=(
            jax.ShapeDtypeStruct((B, S, D), jnp.float32),
            jax.ShapeDtypeStruct((B, nhead, S, hd), jnp.bfloat16),
            jax.ShapeDtypeStruct((B, nhead, S, hd), jnp.bfloat16),
            jax.ShapeDtypeStruct((B, nhead, S, hd), jnp.bfloat16),
        ),
        compiler_params=pltpu.CompilerParams(
            dimension_semantics=("parallel", "parallel"),
            vmem_limit_bytes=_VMEM_LIMIT),
    )(x_bsd, kp["fc1_w"], kp["fc1_b"], kp["fc2_w"], kp["fc2_b"],
      kp["inp_w"], kp["inp_b"])

    # ---- kernel B: flash attention, grid (batch, q-tiles, kv-tiles) ----------
    ctx = pl.pallas_call(
        flash_attn_kernel,
        grid=(B, nst, nst),
        in_specs=[
            pl.BlockSpec((1, nhead, ts, hd), lambda b, qi, ki: (b, 0, qi, 0)),
            pl.BlockSpec((1, nhead, ts, hd), lambda b, qi, ki: (b, 0, ki, 0)),
            pl.BlockSpec((1, nhead, ts, hd), lambda b, qi, ki: (b, 0, ki, 0)),
        ],
        out_specs=pl.BlockSpec((1, ts, D), lambda b, qi, ki: (b, qi, 0)),
        out_shape=jax.ShapeDtypeStruct((B, S, D), jnp.bfloat16),
        scratch_shapes=[
            pltpu.VMEM((nhead, ts, 1), jnp.float32),     # running max
            pltpu.VMEM((nhead, ts, 1), jnp.float32),     # running denominator
            pltpu.VMEM((nhead, ts, hd), jnp.float32),    # running numerator
        ],
        compiler_params=pltpu.CompilerParams(
            dimension_semantics=("parallel", "parallel", "arbitrary"),
            vmem_limit_bytes=_VMEM_LIMIT),
    )(q_hm, k_hm, v_hm)

    # ---- kernel C: out-proj + norm1 + fc + norm2, tiled over (batch, S-tiles)
    y = pl.pallas_call(
        out_mlp_kernel,
        grid=(B, nst),
        in_specs=[
            row2(), row2(),
            const2((D, D)), const2((1, D)),
            const2((1, D)), const2((1, D)),
            const2((D, H)), const2((1, H)),
            const2((H, D)), const2((1, D)),
            const2((1, D)), const2((1, D)),
        ],
        out_specs=row2(),
        out_shape=jax.ShapeDtypeStruct((B, S, D), jnp.bfloat16),
        compiler_params=pltpu.CompilerParams(
            dimension_semantics=("parallel", "parallel"),
            vmem_limit_bytes=_VMEM_LIMIT),
    )(src_fc, ctx, kp["out_w"], kp["out_b"], kp["ln1_g"], kp["ln1_b"],
      kp["fc1_w"], kp["fc1_b"], kp["fc2_w"], kp["fc2_b"],
      kp["ln2_g"], kp["ln2_b"])
    return y


def prepare_kernel_params(p, nhead):
    """bf16 weights (f32 biases/LN params) + one-time 1/sqrt(hd) fold into q proj."""
    D = p["inp_w"].shape[0]
    hd = D // nhead
    scale = 1.0 / float(hd) ** 0.5
    inp_w = p["inp_w"].at[:, :D].multiply(scale)
    inp_b = p["inp_b"].at[:, :D].multiply(scale)
    bf = lambda a: a.astype(jnp.bfloat16)
    return {
        "fc1_w": bf(p["fc1_w"]), "fc1_b": p["fc1_b"],
        "fc2_w": bf(p["fc2_w"]), "fc2_b": p["fc2_b"],
        "inp_w": bf(inp_w), "inp_b": inp_b,
        "out_w": bf(p["out_w"]), "out_b": p["out_b"],
        "ln1_g": p["ln1_g"], "ln1_b": p["ln1_b"],
        "ln2_g": p["ln2_g"], "ln2_b": p["ln2_b"],
    }


@functools.partial(jax.jit, static_argnums=(2,))
def transformer_encoder_forward(src_sbd, layer_params, nhead):
    """src_sbd: (S, B, D) f32, PyTorch MultiheadAttention layout (batch_first=False)."""
    x = jnp.transpose(src_sbd, (1, 0, 2)).astype(jnp.bfloat16)   # -> (B, S, D)
    for p in layer_params:
        kp = prepare_kernel_params(p, nhead)
        x = transformer_layer_forward(x, kp, nhead)
    return jnp.transpose(x.astype(jnp.float32), (1, 0, 2))       # back to (S, B, D)


def init_layer_params(key, D, H):
    """Deterministic synthetic weights. nn.Linear stores (out, in); pre-transposed
    so the kernels compute x @ W (wrapper-side layout plumbing only)."""
    ks = jax.random.split(key, 8)

    def w(k, shape, scale):
        return jax.random.normal(k, shape, jnp.float32) * scale

    return {
        "fc1_w": w(ks[0], (D, H), 0.05), "fc1_b": w(ks[1], (1, H), 0.02),
        "fc2_w": w(ks[2], (H, D), 0.02), "fc2_b": w(ks[3], (1, D), 0.02),
        "inp_w": w(ks[4], (D, 3 * D), 0.05), "inp_b": w(ks[5], (1, 3 * D), 0.02),
        "out_w": w(ks[6], (D, D), 0.05), "out_b": w(ks[7], (1, D), 0.02),
        "ln1_g": jnp.ones((1, D), jnp.float32), "ln1_b": jnp.zeros((1, D), jnp.float32),
        "ln2_g": jnp.ones((1, D), jnp.float32), "ln2_b": jnp.zeros((1, D), jnp.float32),
    }


# --------------- pure-JAX f32 reference (PyTorch semantics) ------------------
def _reference_layer(x_bsd, p, nhead):
    B, S, D = x_bsd.shape
    hd = D // nhead

    def fc(t):
        h = jnp.maximum(t @ p["fc1_w"] + p["fc1_b"], 0.0)
        return h @ p["fc2_w"] + p["fc2_b"]

    def ln(t, g, b):
        mu = t.mean(-1, keepdims=True)
        var = ((t - mu) ** 2).mean(-1, keepdims=True)
        return (t - mu) / jnp.sqrt(var + 1e-5) * g + b

    src = fc(x_bsd)
    qkv = src @ p["inp_w"] + p["inp_b"]
    q, k, v = jnp.split(qkv, 3, axis=-1)
    q = q.reshape(B, S, nhead, hd) / jnp.sqrt(float(hd))
    k = k.reshape(B, S, nhead, hd)
    v = v.reshape(B, S, nhead, hd)
    s = jnp.einsum("bshd,bthd->bhst", q, k)
    a = jax.nn.softmax(s, axis=-1)
    ctx = jnp.einsum("bhst,bthd->bshd", a, v).reshape(B, S, D)
    attn = ctx @ p["out_w"] + p["out_b"]
    src = ln(src + attn, p["ln1_g"], p["ln1_b"])
    src = ln(src + fc(src), p["ln2_g"], p["ln2_b"])
    return src


def _reference_encoder(src_sbd, layer_params, nhead):
    x = jnp.transpose(src_sbd, (1, 0, 2))
    for p in layer_params:
        x = _reference_layer(x, p, nhead)
    return jnp.transpose(x, (1, 0, 2))


if __name__ == "__main__":
    S, B = 8, 2          # sequence length, batch
    D = 32               # dim_feedforward (model width); module default is 2048
    H = 2048             # hidden width of the fc block (hardcoded 2048 in the module)
    nhead = 8
    num_layers = 2       # module default 6; kept small for the demo

    key = jax.random.PRNGKey(0)
    keys = jax.random.split(key, num_layers + 1)
    src = jax.random.normal(keys[0], (S, B, D), jnp.float32)
    layer_params = tuple(init_layer_params(k, D, H) for k in keys[1:])

    out = transformer_encoder_forward(src, layer_params, nhead)
    out = jax.block_until_ready(out)
    assert out.shape == (S, B, D) and out.dtype == jnp.float32

    ref = _reference_encoder(src, layer_params, nhead)
    max_err = float(jnp.max(jnp.abs(out - ref)))
    # bf16 GEMMs (f32 accumulation) vs f32 reference -> a few 1e-3 relative error
    assert max_err < 5e-2, f"max_err={max_err}"

    print("KERNEL_OK")
</pallas_src>

<mosaic_0001>
module attributes {stable_mosaic.version = 11 : i64} {
  func.func @fc_qkv_kernel(%arg0: i32, %arg1: i32, %arg2: memref<1x8x32xbf16, #tpu.memory_space<vmem>>, %arg3: memref<32x2048xbf16, #tpu.memory_space<vmem>>, %arg4: memref<1x2048xf32, #tpu.memory_space<vmem>>, %arg5: memref<2048x32xbf16, #tpu.memory_space<vmem>>, %arg6: memref<1x32xf32, #tpu.memory_space<vmem>>, %arg7: memref<32x96xbf16, #tpu.memory_space<vmem>>, %arg8: memref<1x96xf32, #tpu.memory_space<vmem>>, %arg9: memref<1x8x32xf32, #tpu.memory_space<vmem>>, %arg10: memref<1x8x8x4xbf16, #tpu.memory_space<vmem>>, %arg11: memref<1x8x8x4xbf16, #tpu.memory_space<vmem>>, %arg12: memref<1x8x8x4xbf16, #tpu.memory_space<vmem>>) attributes {dimension_semantics = [#tpu.dimension_semantics<parallel>, #tpu.dimension_semantics<parallel>], iteration_bounds = array<i64: 2, 1>, scalar_prefetch = 0 : i64, scratch_operands = 0 : i64, tpu.core_type = #tpu.core_type<tc>, window_params = [{transform_indices = @transform_0, window_bounds = array<i64: 1, 8, 32>}, {pipeline_mode = #tpu.pipeline_mode<synchronous>, transform_indices = @transform_1, window_bounds = array<i64: 32, 2048>}, {pipeline_mode = #tpu.pipeline_mode<synchronous>, transform_indices = @transform_2, window_bounds = array<i64: 1, 2048>}, {pipeline_mode = #tpu.pipeline_mode<synchronous>, transform_indices = @transform_3, window_bounds = array<i64: 2048, 32>}, {pipeline_mode = #tpu.pipeline_mode<synchronous>, transform_indices = @transform_4, window_bounds = array<i64: 1, 32>}, {pipeline_mode = #tpu.pipeline_mode<synchronous>, transform_indices = @transform_5, window_bounds = array<i64: 32, 96>}, {pipeline_mode = #tpu.pipeline_mode<synchronous>, transform_indices = @transform_6, window_bounds = array<i64: 1, 96>}, {transform_indices = @transform_7, window_bounds = array<i64: 1, 8, 32>}, {transform_indices = @transform_8, window_bounds = array<i64: 1, 8, 8, 4>}, {transform_indices = @transform_9, window_bounds = array<i64: 1, 8, 8, 4>}, {transform_indices = @transform_10, window_bounds = array<i64: 1, 8, 8, 4>}]} {
    %c0 = arith.constant 0 : index
    %c0_0 = arith.constant 0 : index
    %c0_1 = arith.constant 0 : index
    %0 = vector.load %arg2[%c0, %c0_0, %c0_1] : memref<1x8x32xbf16, #tpu.memory_space<vmem>>, vector<1x8x32xbf16>
    %1 = vector.shape_cast %0 : vector<1x8x32xbf16> to vector<8x32xbf16>
    %c0_2 = arith.constant 0 : index
    %c0_3 = arith.constant 0 : index
    %2 = vector.load %arg3[%c0_2, %c0_3] : memref<32x2048xbf16, #tpu.memory_space<vmem>>, vector<32x2048xbf16>
    %cst = arith.constant dense<0.000000e+00> : vector<8x2048xf32>
    %3 = tpu.matmul %1, %2, %cst {dimension_numbers = #tpu.dot_dimension_numbers<[1], [0], [0], [1], [0, 0, 1, 1], [], []>} : vector<8x32xbf16>, vector<32x2048xbf16>, vector<8x2048xf32> -> vector<8x2048xf32>
    %c0_4 = arith.constant 0 : index
    %c0_5 = arith.constant 0 : index
    %4 = vector.load %arg4[%c0_4, %c0_5] : memref<1x2048xf32, #tpu.memory_space<vmem>>, vector<1x2048xf32>
    %5 = vector.broadcast %4 : vector<1x2048xf32> to vector<8x2048xf32>
    %6 = arith.addf %3, %5 : vector<8x2048xf32>
    %cst_6 = arith.constant 0.000000e+00 : f32
    %7 = vector.broadcast %cst_6 : f32 to vector<8x2048xf32>
    %8 = arith.maximumf %6, %7 : vector<8x2048xf32>
    %9 = arith.truncf %8 : vector<8x2048xf32> to vector<8x2048xbf16>
    %c0_7 = arith.constant 0 : index
    %c0_8 = arith.constant 0 : index
    %10 = vector.load %arg5[%c0_7, %c0_8] : memref<2048x32xbf16, #tpu.memory_space<vmem>>, vector<2048x32xbf16>
    %cst_9 = arith.constant dense<0.000000e+00> : vector<8x32xf32>
    %11 = tpu.matmul %9, %10, %cst_9 {dimension_numbers = #tpu.dot_dimension_numbers<[1], [0], [0], [1], [0, 0, 1, 1], [], []>} : vector<8x2048xbf16>, vector<2048x32xbf16>, vector<8x32xf32> -> vector<8x32xf32>
    %c0_10 = arith.constant 0 : index
    %c0_11 = arith.constant 0 : index
    %12 = vector.load %arg6[%c0_10, %c0_11] : memref<1x32xf32, #tpu.memory_space<vmem>>, vector<1x32xf32>
    %13 = vector.broadcast %12 : vector<1x32xf32> to vector<8x32xf32>
    %14 = arith.addf %11, %13 : vector<8x32xf32>
    %15 = arith.truncf %14 : vector<8x32xf32> to vector<8x32xbf16>
    %c0_12 = arith.constant 0 : index
    %c0_13 = arith.constant 0 : index
    %16 = vector.load %arg7[%c0_12, %c0_13] : memref<32x96xbf16, #tpu.memory_space<vmem>>, vector<32x96xbf16>
    %cst_14 = arith.constant dense<0.000000e+00> : vector<8x96xf32>
    %17 = tpu.matmul %15, %16, %cst_14 {dimension_numbers = #tpu.dot_dimension_numbers<[1], [0], [0], [1], [0, 0, 1, 1], [], []>} : vector<8x32xbf16>, vector<32x96xbf16>, vector<8x96xf32> -> vector<8x96xf32>
    %c0_15 = arith.constant 0 : index
    %c0_16 = arith.constant 0 : index
    %18 = vector.load %arg8[%c0_15, %c0_16] : memref<1x96xf32, #tpu.memory_space<vmem>>, vector<1x96xf32>
    %19 = vector.broadcast %18 : vector<1x96xf32> to vector<8x96xf32>
    %20 = arith.addf %17, %19 : vector<8x96xf32>
    %21 = arith.truncf %20 : vector<8x96xf32> to vector<8x96xbf16>
    %c0_17 = arith.constant 0 : index
    %c0_18 = arith.constant 0 : index
    %c0_19 = arith.constant 0 : index
    %22 = vector.load %arg9[%c0_17, %c0_18, %c0_19] : memref<1x8x32xf32, #tpu.memory_space<vmem>>, vector<1x8x32xf32>
    %23 = vector.shape_cast %22 : vector<1x8x32xf32> to vector<8x32xf32>
    %24 = vector.shape_cast %14 : vector<8x32xf32> to vector<1x8x32xf32>
    tpu.vector_store %arg9[%c0_17, %c0_18, %c0_19], %24 {strides = array<i32>} : memref<1x8x32xf32, #tpu.memory_space<vmem>>, vector<1x8x32xf32>,
    %25 = vector.extract_strided_slice %21 {offsets = [0, 0], sizes = [8, 32], strides = [1, 1]} : vector<8x96xbf16> to vector<8x32xbf16>
    %26 = vector.extract_strided_slice %25 {offsets = [0, 0], sizes = [8, 4], strides = [1, 1]} : vector<8x32xbf16> to vector<8x4xbf16>
    %27 = vector.extract_strided_slice %25 {offsets = [0, 4], sizes = [8, 4], strides = [1, 1]} : vector<8x32xbf16> to vector<8x4xbf16>
    %28 = vector.extract_strided_slice %25 {offsets = [0, 8], sizes = [8, 4], strides = [1, 1]} : vector<8x32xbf16> to vector<8x4xbf16>
    %29 = vector.extract_strided_slice %25 {offsets = [0, 12], sizes = [8, 4], strides = [1, 1]} : vector<8x32xbf16> to vector<8x4xbf16>
    %30 = vector.extract_strided_slice %25 {offsets = [0, 16], sizes = [8, 4], strides = [1, 1]} : vector<8x32xbf16> to vector<8x4xbf16>
    %31 = vector.extract_strided_slice %25 {offsets = [0, 20], sizes = [8, 4], strides = [1, 1]} : vector<8x32xbf16> to vector<8x4xbf16>
    %32 = vector.extract_strided_slice %25 {offsets = [0, 24], sizes = [8, 4], strides = [1, 1]} : vector<8x32xbf16> to vector<8x4xbf16>
    %33 = vector.extract_strided_slice %25 {offsets = [0, 28], sizes = [8, 4], strides = [1, 1]} : vector<8x32xbf16> to vector<8x4xbf16>
    %34 = vector.shape_cast %26 : vector<8x4xbf16> to vector<1x8x4xbf16>
    %35 = vector.shape_cast %27 : vector<8x4xbf16> to vector<1x8x4xbf16>
    %36 = vector.shape_cast %28 : vector<8x4xbf16> to vector<1x8x4xbf16>
    %37 = vector.shape_cast %29 : vector<8x4xbf16> to vector<1x8x4xbf16>
    %38 = vector.shape_cast %30 : vector<8x4xbf16> to vector<1x8x4xbf16>
    %39 = vector.shape_cast %31 : vector<8x4xbf16> to vector<1x8x4xbf16>
    %40 = vector.shape_cast %32 : vector<8x4xbf16> to vector<1x8x4xbf16>
    %41 = vector.shape_cast %33 : vector<8x4xbf16> to vector<1x8x4xbf16>
    %42 = tpu.concatenate %34, %35, %36, %37, %38, %39, %40, %41 in 0 : vector<1x8x4xbf16>, vector<1x8x4xbf16>, vector<1x8x4xbf16>, vector<1x8x4xbf16>, vector<1x8x4xbf16>, vector<1x8x4xbf16>, vector<1x8x4xbf16>, vector<1x8x4xbf16> -> vector<8x8x4xbf16>
    %c0_20 = arith.constant 0 : index
    %c0_21 = arith.constant 0 : index
    %c0_22 = arith.constant 0 : index
    %c0_23 = arith.constant 0 : index
    %43 = vector.load %arg10[%c0_20, %c0_21, %c0_22, %c0_23] : memref<1x8x8x4xbf16, #tpu.memory_space<vmem>>, vector<1x8x8x4xbf16>
    %44 = vector.shape_cast %43 : vector<1x8x8x4xbf16> to vector<8x8x4xbf16>
    %45 = vector.shape_cast %42 : vector<8x8x4xbf16> to vector<1x8x8x4xbf16>
    tpu.vector_store %arg10[%c0_20, %c0_21, %c0_22, %c0_23], %45 {strides = array<i32>} : memref<1x8x8x4xbf16, #tpu.memory_space<vmem>>, vector<1x8x8x4xbf16>,
    %46 = vector.extract_strided_slice %21 {offsets = [0, 32], sizes = [8, 32], strides = [1, 1]} : vector<8x96xbf16> to vector<8x32xbf16>
    %47 = vector.extract_strided_slice %46 {offsets = [0, 0], sizes = [8, 4], strides = [1, 1]} : vector<8x32xbf16> to vector<8x4xbf16>
    %48 = vector.extract_strided_slice %46 {offsets = [0, 4], sizes = [8, 4], strides = [1, 1]} : vector<8x32xbf16> to vector<8x4xbf16>
    %49 = vector.extract_strided_slice %46 {offsets = [0, 8], sizes = [8, 4], strides = [1, 1]} : vector<8x32xbf16> to vector<8x4xbf16>
    %50 = vector.extract_strided_slice %46 {offsets = [0, 12], sizes = [8, 4], strides = [1, 1]} : vector<8x32xbf16> to vector<8x4xbf16>
    %51 = vector.extract_strided_slice %46 {offsets = [0, 16], sizes = [8, 4], strides = [1, 1]} : vector<8x32xbf16> to vector<8x4xbf16>
    %52 = vector.extract_strided_slice %46 {offsets = [0, 20], sizes = [8, 4], strides = [1, 1]} : vector<8x32xbf16> to vector<8x4xbf16>
    %53 = vector.extract_strided_slice %46 {offsets = [0, 24], sizes = [8, 4], strides = [1, 1]} : vector<8x32xbf16> to vector<8x4xbf16>
    %54 = vector.extract_strided_slice %46 {offsets = [0, 28], sizes = [8, 4], strides = [1, 1]} : vector<8x32xbf16> to vector<8x4xbf16>
    %55 = vector.shape_cast %47 : vector<8x4xbf16> to vector<1x8x4xbf16>
    %56 = vector.shape_cast %48 : vector<8x4xbf16> to vector<1x8x4xbf16>
    %57 = vector.shape_cast %49 : vector<8x4xbf16> to vector<1x8x4xbf16>
    %58 = vector.shape_cast %50 : vector<8x4xbf16> to vector<1x8x4xbf16>
    %59 = vector.shape_cast %51 : vector<8x4xbf16> to vector<1x8x4xbf16>
    %60 = vector.shape_cast %52 : vector<8x4xbf16> to vector<1x8x4xbf16>
    %61 = vector.shape_cast %53 : vector<8x4xbf16> to vector<1x8x4xbf16>
    %62 = vector.shape_cast %54 : vector<8x4xbf16> to vector<1x8x4xbf16>
    %63 = tpu.concatenate %55, %56, %57, %58, %59, %60, %61, %62 in 0 : vector<1x8x4xbf16>, vector<1x8x4xbf16>, vector<1x8x4xbf16>, vector<1x8x4xbf16>, vector<1x8x4xbf16>, vector<1x8x4xbf16>, vector<1x8x4xbf16>, vector<1x8x4xbf16> -> vector<8x8x4xbf16>
    %c0_24 = arith.constant 0 : index
    %c0_25 = arith.constant 0 : index
    %c0_26 = arith.constant 0 : index
    %c0_27 = arith.constant 0 : index
    %64 = vector.load %arg11[%c0_24, %c0_25, %c0_26, %c0_27] : memref<1x8x8x4xbf16, #tpu.memory_space<vmem>>, vector<1x8x8x4xbf16>
    %65 = vector.shape_cast %64 : vector<1x8x8x4xbf16> to vector<8x8x4xbf16>
    %66 = vector.shape_cast %63 : vector<8x8x4xbf16> to vector<1x8x8x4xbf16>
    tpu.vector_store %arg11[%c0_24, %c0_25, %c0_26, %c0_27], %66 {strides = array<i32>} : memref<1x8x8x4xbf16, #tpu.memory_space<vmem>>, vector<1x8x8x4xbf16>,
    %67 = vector.extract_strided_slice %21 {offsets = [0, 64], sizes = [8, 32], strides = [1, 1]} : vector<8x96xbf16> to vector<8x32xbf16>
    %68 = vector.extract_strided_slice %67 {offsets = [0, 0], sizes = [8, 4], strides = [1, 1]} : vector<8x32xbf16> to vector<8x4xbf16>
    %69 = vector.extract_strided_slice %67 {offsets = [0, 4], sizes = [8, 4], strides = [1, 1]} : vector<8x32xbf16> to vector<8x4xbf16>
    %70 = vector.extract_strided_slice %67 {offsets = [0, 8], sizes = [8, 4], strides = [1, 1]} : vector<8x32xbf16> to vector<8x4xbf16>
    %71 = vector.extract_strided_slice %67 {offsets = [0, 12], sizes = [8, 4], strides = [1, 1]} : vector<8x32xbf16> to vector<8x4xbf16>
    %72 = vector.extract_strided_slice %67 {offsets = [0, 16], sizes = [8, 4], strides = [1, 1]} : vector<8x32xbf16> to vector<8x4xbf16>
    %73 = vector.extract_strided_slice %67 {offsets = [0, 20], sizes = [8, 4], strides = [1, 1]} : vector<8x32xbf16> to vector<8x4xbf16>
    %74 = vector.extract_strided_slice %67 {offsets = [0, 24], sizes = [8, 4], strides = [1, 1]} : vector<8x32xbf16> to vector<8x4xbf16>
    %75 = vector.extract_strided_slice %67 {offsets = [0, 28], sizes = [8, 4], strides = [1, 1]} : vector<8x32xbf16> to vector<8x4xbf16>
    %76 = vector.shape_cast %68 : vector<8x4xbf16> to vector<1x8x4xbf16>
    %77 = vector.shape_cast %69 : vector<8x4xbf16> to vector<1x8x4xbf16>
    %78 = vector.shape_cast %70 : vector<8x4xbf16> to vector<1x8x4xbf16>
    %79 = vector.shape_cast %71 : vector<8x4xbf16> to vector<1x8x4xbf16>
    %80 = vector.shape_cast %72 : vector<8x4xbf16> to vector<1x8x4xbf16>
    %81 = vector.shape_cast %73 : vector<8x4xbf16> to vector<1x8x4xbf16>
    %82 = vector.shape_cast %74 : vector<8x4xbf16> to vector<1x8x4xbf16>
    %83 = vector.shape_cast %75 : vector<8x4xbf16> to vector<1x8x4xbf16>
    %84 = tpu.concatenate %76, %77, %78, %79, %80, %81, %82, %83 in 0 : vector<1x8x4xbf16>, vector<1x8x4xbf16>, vector<1x8x4xbf16>, vector<1x8x4xbf16>, vector<1x8x4xbf16>, vector<1x8x4xbf16>, vector<1x8x4xbf16>, vector<1x8x4xbf16> -> vector<8x8x4xbf16>
    %c0_28 = arith.constant 0 : index
    %c0_29 = arith.constant 0 : index
    %c0_30 = arith.constant 0 : index
    %c0_31 = arith.constant 0 : index
    %85 = vector.load %arg12[%c0_28, %c0_29, %c0_30, %c0_31] : memref<1x8x8x4xbf16, #tpu.memory_space<vmem>>, vector<1x8x8x4xbf16>
    %86 = vector.shape_cast %85 : vector<1x8x8x4xbf16> to vector<8x8x4xbf16>
    %87 = vector.shape_cast %84 : vector<8x8x4xbf16> to vector<1x8x8x4xbf16>
    tpu.vector_store %arg12[%c0_28, %c0_29, %c0_30, %c0_31], %87 {strides = array<i32>} : memref<1x8x8x4xbf16, #tpu.memory_space<vmem>>, vector<1x8x8x4xbf16>,
    return
  }
  func.func @transform_0(%arg0: i32, %arg1: i32) -> (i32, i32, i32) {
    %c0_i32 = arith.constant 0 : i32
    %c0_i32_0 = arith.constant 0 : i32
    return %arg0, %arg1, %c0_i32 : i32, i32, i32
  }
  func.func @transform_1(%arg0: i32, %arg1: i32) -> (i32, i32) {
    %c0_i32 = arith.constant 0 : i32
    %c0_i32_0 = arith.constant 0 : i32
    %c0_i32_1 = arith.constant 0 : i32
    return %c0_i32, %c0_i32_0 : i32, i32
  }
  func.func @transform_2(%arg0: i32, %arg1: i32) -> (i32, i32) {
    %c0_i32 = arith.constant 0 : i32
    %c0_i32_0 = arith.constant 0 : i32
    %c0_i32_1 = arith.constant 0 : i32
    return %c0_i32, %c0_i32_0 : i32, i32
  }
  func.func @transform_3(%arg0: i32, %arg1: i32) -> (i32, i32) {
    %c0_i32 = arith.constant 0 : i32
    %c0_i32_0 = arith.constant 0 : i32
    %c0_i32_1 = arith.constant 0 : i32
    return %c0_i32, %c0_i32_0 : i32, i32
  }
  func.func @transform_4(%arg0: i32, %arg1: i32) -> (i32, i32) {
    %c0_i32 = arith.constant 0 : i32
    %c0_i32_0 = arith.constant 0 : i32
    %c0_i32_1 = arith.constant 0 : i32
    return %c0_i32, %c0_i32_0 : i32, i32
  }
  func.func @transform_5(%arg0: i32, %arg1: i32) -> (i32, i32) {
    %c0_i32 = arith.constant 0 : i32
    %c0_i32_0 = arith.constant 0 : i32
    %c0_i32_1 = arith.constant 0 : i32
    return %c0_i32, %c0_i32_0 : i32, i32
  }
  func.func @transform_6(%arg0: i32, %arg1: i32) -> (i32, i32) {
    %c0_i32 = arith.constant 0 : i32
    %c0_i32_0 = arith.constant 0 : i32
    %c0_i32_1 = arith.constant 0 : i32
    return %c0_i32, %c0_i32_0 : i32, i32
  }
  func.func @transform_7(%arg0: i32, %arg1: i32) -> (i32, i32, i32) {
    %c0_i32 = arith.constant 0 : i32
    %c0_i32_0 = arith.constant 0 : i32
    return %arg0, %arg1, %c0_i32 : i32, i32, i32
  }
  func.func @transform_8(%arg0: i32, %arg1: i32) -> (i32, i32, i32, i32) {
    %c0_i32 = arith.constant 0 : i32
    %c0_i32_0 = arith.constant 0 : i32
    %c0_i32_1 = arith.constant 0 : i32
    return %arg0, %c0_i32, %arg1, %c0_i32_0 : i32, i32, i32, i32
  }
  func.func @transform_9(%arg0: i32, %arg1: i32) -> (i32, i32, i32, i32) {
    %c0_i32 = arith.constant 0 : i32
    %c0_i32_0 = arith.constant 0 : i32
    %c0_i32_1 = arith.constant 0 : i32
    return %arg0, %c0_i32, %arg1, %c0_i32_0 : i32, i32, i32, i32
  }
  func.func @transform_10(%arg0: i32, %arg1: i32) -> (i32, i32, i32, i32) {
    %c0_i32 = arith.constant 0 : i32
    %c0_i32_0 = arith.constant 0 : i32
    %c0_i32_1 = arith.constant 0 : i32
    return %arg0, %c0_i32, %arg1, %c0_i32_0 : i32, i32, i32, i32
  }
}

module attributes {stable_mosaic.version = 11 : i64} {
  func.func @flash_attn_kernel(%arg0: i32, %arg1: i32, %arg2: i32, %arg3: memref<1x8x8x4xbf16, #tpu.memory_space<vmem>>, %arg4: memref<1x8x8x4xbf16, #tpu.memory_space<vmem>>, %arg5: memref<1x8x8x4xbf16, #tpu.memory_space<vmem>>, %arg6: memref<1x8x32xbf16, #tpu.memory_space<vmem>>, %arg7: memref<8x8x1xf32, #tpu.memory_space<vmem>>, %arg8: memref<8x8x1xf32, #tpu.memory_space<vmem>>, %arg9: memref<8x8x4xf32, #tpu.memory_space<vmem>>) attributes {dimension_semantics = [#tpu.dimension_semantics<parallel>, #tpu.dimension_semantics<parallel>, #tpu.dimension_semantics<arbitrary>], iteration_bounds = array<i64: 2, 1, 1>, scalar_prefetch = 0 : i64, scratch_operands = 3 : i64, tpu.core_type = #tpu.core_type<tc>, window_params = [{transform_indices = @transform_0, window_bounds = array<i64: 1, 8, 8, 4>}, {transform_indices = @transform_1, window_bounds = array<i64: 1, 8, 8, 4>}, {transform_indices = @transform_2, window_bounds = array<i64: 1, 8, 8, 4>}, {transform_indices = @transform_3, window_bounds = array<i64: 1, 8, 32>}]} {
    %c0_i32 = arith.constant 0 : i32
    %0 = arith.cmpi eq, %arg2, %c0_i32 : i32
    %1 = arith.extui %0 : i1 to i32
    %c0_i32_0 = arith.constant 0 : i32
    %2 = arith.cmpi ne, %1, %c0_i32_0 : i32
    scf.if %2 {
      %cst_35 = arith.constant 0xFF800000 : f32
      %36 = vector.broadcast %cst_35 : f32 to vector<8x8x1xf32>
      %c0_36 = arith.constant 0 : index
      %c0_37 = arith.constant 0 : index
      %c0_38 = arith.constant 0 : index
      %37 = vector.load %arg7[%c0_36, %c0_37, %c0_38] : memref<8x8x1xf32, #tpu.memory_space<vmem>>, vector<8x8x1xf32>
      tpu.vector_store %arg7[%c0_36, %c0_37, %c0_38], %36 {strides = array<i32>} : memref<8x8x1xf32, #tpu.memory_space<vmem>>, vector<8x8x1xf32>,
      %cst_39 = arith.constant 0.000000e+00 : f32
      %38 = vector.broadcast %cst_39 : f32 to vector<8x8x1xf32>
      %c0_40 = arith.constant 0 : index
      %c0_41 = arith.constant 0 : index
      %c0_42 = arith.constant 0 : index
      %39 = vector.load %arg8[%c0_40, %c0_41, %c0_42] : memref<8x8x1xf32, #tpu.memory_space<vmem>>, vector<8x8x1xf32>
      tpu.vector_store %arg8[%c0_40, %c0_41, %c0_42], %38 {strides = array<i32>} : memref<8x8x1xf32, #tpu.memory_space<vmem>>, vector<8x8x1xf32>,
      %cst_43 = arith.constant 0.000000e+00 : f32
      %40 = vector.broadcast %cst_43 : f32 to vector<8x8x4xf32>
      %c0_44 = arith.constant 0 : index
      %c0_45 = arith.constant 0 : index
      %c0_46 = arith.constant 0 : index
      %41 = vector.load %arg9[%c0_44, %c0_45, %c0_46] : memref<8x8x4xf32, #tpu.memory_space<vmem>>, vector<8x8x4xf32>
      tpu.vector_store %arg9[%c0_44, %c0_45, %c0_46], %40 {strides = array<i32>} : memref<8x8x4xf32, #tpu.memory_space<vmem>>, vector<8x8x4xf32>,
    } else {
    }
    %c0 = arith.constant 0 : index
    %c0_1 = arith.constant 0 : index
    %c0_2 = arith.constant 0 : index
    %c0_3 = arith.constant 0 : index
    %3 = vector.load %arg3[%c0, %c0_1, %c0_2, %c0_3] : memref<1x8x8x4xbf16, #tpu.memory_space<vmem>>, vector<1x8x8x4xbf16>
    %4 = vector.shape_cast %3 : vector<1x8x8x4xbf16> to vector<8x8x4xbf16>
    %c0_4 = arith.constant 0 : index
    %c0_5 = arith.constant 0 : index
    %c0_6 = arith.constant 0 : index
    %c0_7 = arith.constant 0 : index
    %5 = vector.load %arg4[%c0_4, %c0_5, %c0_6, %c0_7] : memref<1x8x8x4xbf16, #tpu.memory_space<vmem>>, vector<1x8x8x4xbf16>
    %6 = vector.shape_cast %5 : vector<1x8x8x4xbf16> to vector<8x8x4xbf16>
    %c0_8 = arith.constant 0 : index
    %c0_9 = arith.constant 0 : index
    %c0_10 = arith.constant 0 : index
    %c0_11 = arith.constant 0 : index
    %7 = vector.load %arg5[%c0_8, %c0_9, %c0_10, %c0_11] : memref<1x8x8x4xbf16, #tpu.memory_space<vmem>>, vector<1x8x8x4xbf16>
    %8 = vector.shape_cast %7 : vector<1x8x8x4xbf16> to vector<8x8x4xbf16>
    "tpu.trace_start"() <{level = 10 : i32, message = "hqd,hkd->hqk"}> : () -> ()
    %cst = arith.constant dense<0.000000e+00> : vector<8x8x8xf32>
    %9 = tpu.matmul %4, %6, %cst {dimension_numbers = #tpu.dot_dimension_numbers<[2], [2], [1], [1], [0, 0, 0, 1, 1, 1], [0], [0]>} : vector<8x8x4xbf16>, vector<8x8x4xbf16>, vector<8x8x8xf32> -> vector<8x8x8xf32>
    "tpu.trace_stop"() : () -> ()
    %c0_12 = arith.constant 0 : index
    %c0_13 = arith.constant 0 : index
    %c0_14 = arith.constant 0 : index
    %10 = vector.load %arg7[%c0_12, %c0_13, %c0_14] : memref<8x8x1xf32, #tpu.memory_space<vmem>>, vector<8x8x1xf32>
    %cst_15 = arith.constant dense<0xFF800000> : vector<8x8xf32>
    %11 = vector.multi_reduction <maximumf>, %9, %cst_15 [2] : vector<8x8x8xf32> to vector<8x8xf32>
    %12 = vector.shape_cast %11 : vector<8x8xf32> to vector<8x8x1xf32>
    %13 = arith.maximumf %10, %12 : vector<8x8x1xf32>
    %14 = arith.subf %10, %13 : vector<8x8x1xf32>
    %15 = math.exp %14 : vector<8x8x1xf32>
    %16 = vector.broadcast %13 : vector<8x8x1xf32> to vector<8x8x8xf32>
    %17 = arith.subf %9, %16 : vector<8x8x8xf32>
    %18 = math.exp %17 : vector<8x8x8xf32>
    %c0_16 = arith.constant 0 : index
    %c0_17 = arith.constant 0 : index
    %c0_18 = arith.constant 0 : index
    %19 = vector.load %arg8[%c0_16, %c0_17, %c0_18] : memref<8x8x1xf32, #tpu.memory_space<vmem>>, vector<8x8x1xf32>
    %20 = arith.mulf %15, %19 : vector<8x8x1xf32>
    %cst_19 = arith.constant dense<0.000000e+00> : vector<8x8xf32>
    %21 = vector.multi_reduction <add>, %18, %cst_19 [2] : vector<8x8x8xf32> to vector<8x8xf32>
    %22 = vector.shape_cast %21 : vector<8x8xf32> to vector<8x8x1xf32>
    %23 = arith.addf %20, %22 : vector<8x8x1xf32>
    %c0_20 = arith.constant 0 : index
    %c0_21 = arith.constant 0 : index
    %c0_22 = arith.constant 0 : index
    %24 = vector.load %arg8[%c0_20, %c0_21, %c0_22] : memref<8x8x1xf32, #tpu.memory_space<vmem>>, vector<8x8x1xf32>
    tpu.vector_store %arg8[%c0_20, %c0_21, %c0_22], %23 {strides = array<i32>} : memref<8x8x1xf32, #tpu.memory_space<vmem>>, vector<8x8x1xf32>,
    %c0_23 = arith.constant 0 : index
    %c0_24 = arith.constant 0 : index
    %c0_25 = arith.constant 0 : index
    %25 = vector.load %arg9[%c0_23, %c0_24, %c0_25] : memref<8x8x4xf32, #tpu.memory_space<vmem>>, vector<8x8x4xf32>
    %26 = vector.broadcast %15 : vector<8x8x1xf32> to vector<8x8x4xf32>
    %27 = arith.mulf %26, %25 : vector<8x8x4xf32>
    %28 = arith.truncf %18 : vector<8x8x8xf32> to vector<8x8x8xbf16>
    "tpu.trace_start"() <{level = 10 : i32, message = "hqk,hkd->hqd"}> : () -> ()
    %cst_26 = arith.constant dense<0.000000e+00> : vector<8x8x4xf32>
    %29 = tpu.matmul %28, %8, %cst_26 {dimension_numbers = #tpu.dot_dimension_numbers<[2], [1], [1], [2], [0, 0, 0, 1, 1, 2], [0], [0]>} : vector<8x8x8xbf16>, vector<8x8x4xbf16>, vector<8x8x4xf32> -> vector<8x8x4xf32>
    "tpu.trace_stop"() : () -> ()
    %30 = arith.addf %27, %29 : vector<8x8x4xf32>
    %c0_27 = arith.constant 0 : index
    %c0_28 = arith.constant 0 : index
    %c0_29 = arith.constant 0 : index
    %31 = vector.load %arg9[%c0_27, %c0_28, %c0_29] : memref<8x8x4xf32, #tpu.memory_space<vmem>>, vector<8x8x4xf32>
    tpu.vector_store %arg9[%c0_27, %c0_28, %c0_29], %30 {strides = array<i32>} : memref<8x8x4xf32, #tpu.memory_space<vmem>>, vector<8x8x4xf32>,
    %c0_30 = arith.constant 0 : index
    %c0_31 = arith.constant 0 : index
    %c0_32 = arith.constant 0 : index
    %32 = vector.load %arg7[%c0_30, %c0_31, %c0_32] : memref<8x8x1xf32, #tpu.memory_space<vmem>>, vector<8x8x1xf32>
    tpu.vector_store %arg7[%c0_30, %c0_31, %c0_32], %13 {strides = array<i32>} : memref<8x8x1xf32, #tpu.memory_space<vmem>>, vector<8x8x1xf32>,
    %c0_i32_33 = arith.constant 0 : i32
    %33 = arith.cmpi eq, %arg2, %c0_i32_33 : i32
    %34 = arith.extui %33 : i1 to i32
    %c0_i32_34 = arith.constant 0 : i32
    %35 = arith.cmpi ne, %34, %c0_i32_34 : i32
    scf.if %35 {
      %c0_35 = arith.constant 0 : index
      %c0_36 = arith.constant 0 : index
      %c0_37 = arith.constant 0 : index
      %36 = vector.load %arg9[%c0_35, %c0_36, %c0_37] : memref<8x8x4xf32, #tpu.memory_space<vmem>>, vector<8x8x4xf32>
      %c0_38 = arith.constant 0 : index
      %c0_39 = arith.constant 0 : index
      %c0_40 = arith.constant 0 : index
      %37 = vector.load %arg8[%c0_38, %c0_39, %c0_40] : memref<8x8x1xf32, #tpu.memory_space<vmem>>, vector<8x8x1xf32>
      %38 = tpu.reciprocal %37 {approx = true} : vector<8x8x1xf32> -> vector<8x8x1xf32>
      %39 = vector.broadcast %38 : vector<8x8x1xf32> to vector<8x8x4xf32>
      %40 = arith.mulf %36, %39 : vector<8x8x4xf32>
      %41 = vector.extract_strided_slice %40 {offsets = [0, 0, 0], sizes = [1, 8, 4], strides = [1, 1, 1]} : vector<8x8x4xf32> to vector<1x8x4xf32>
      %42 = vector.shape_cast %41 : vector<1x8x4xf32> to vector<8x4xf32>
      %43 = vector.extract_strided_slice %40 {offsets = [1, 0, 0], sizes = [1, 8, 4], strides = [1, 1, 1]} : vector<8x8x4xf32> to vector<1x8x4xf32>
      %44 = vector.shape_cast %43 : vector<1x8x4xf32> to vector<8x4xf32>
      %45 = vector.extract_strided_slice %40 {offsets = [2, 0, 0], sizes = [1, 8, 4], strides = [1, 1, 1]} : vector<8x8x4xf32> to vector<1x8x4xf32>
      %46 = vector.shape_cast %45 : vector<1x8x4xf32> to vector<8x4xf32>
      %47 = vector.extract_strided_slice %40 {offsets = [3, 0, 0], sizes = [1, 8, 4], strides = [1, 1, 1]} : vector<8x8x4xf32> to vector<1x8x4xf32>
      %48 = vector.shape_cast %47 : vector<1x8x4xf32> to vector<8x4xf32>
      %49 = vector.extract_strided_slice %40 {offsets = [4, 0, 0], sizes = [1, 8, 4], strides = [1, 1, 1]} : vector<8x8x4xf32> to vector<1x8x4xf32>
      %50 = vector.shape_cast %49 : vector<1x8x4xf32> to vector<8x4xf32>
      %51 = vector.extract_strided_slice %40 {offsets = [5, 0, 0], sizes = [1, 8, 4], strides = [1, 1, 1]} : vector<8x8x4xf32> to vector<1x8x4xf32>
      %52 = vector.shape_cast %51 : vector<1x8x4xf32> to vector<8x4xf32>
      %53 = vector.extract_strided_slice %40 {offsets = [6, 0, 0], sizes = [1, 8, 4], strides = [1, 1, 1]} : vector<8x8x4xf32> to vector<1x8x4xf32>
      %54 = vector.shape_cast %53 : vector<1x8x4xf32> to vector<8x4xf32>
      %55 = vector.extract_strided_slice %40 {offsets = [7, 0, 0], sizes = [1, 8, 4], strides = [1, 1, 1]} : vector<8x8x4xf32> to vector<1x8x4xf32>
      %56 = vector.shape_cast %55 : vector<1x8x4xf32> to vector<8x4xf32>
      %57 = tpu.concatenate %42, %44, %46, %48, %50, %52, %54, %56 in 1 : vector<8x4xf32>, vector<8x4xf32>, vector<8x4xf32>, vector<8x4xf32>, vector<8x4xf32>, vector<8x4xf32>, vector<8x4xf32>, vector<8x4xf32> -> vector<8x32xf32>
      %58 = arith.truncf %57 : vector<8x32xf32> to vector<8x32xbf16>
      %c0_41 = arith.constant 0 : index
      %c0_42 = arith.constant 0 : index
      %c0_43 = arith.constant 0 : index
      %59 = vector.load %arg6[%c0_41, %c0_42, %c0_43] : memref<1x8x32xbf16, #tpu.memory_space<vmem>>, vector<1x8x32xbf16>
      %60 = vector.shape_cast %59 : vector<1x8x32xbf16> to vector<8x32xbf16>
      %61 = vector.shape_cast %58 : vector<8x32xbf16> to vector<1x8x32xbf16>
      tpu.vector_store %arg6[%c0_41, %c0_42, %c0_43], %61 {strides = array<i32>} : memref<1x8x32xbf16, #tpu.memory_space<vmem>>, vector<1x8x32xbf16>,
    } else {
    }
    return
  }
  func.func @transform_0(%arg0: i32, %arg1: i32, %arg2: i32) -> (i32, i32, i32, i32) {
    %c0_i32 = arith.constant 0 : i32
    %c0_i32_0 = arith.constant 0 : i32
    %c0_i32_1 = arith.constant 0 : i32
    return %arg0, %c0_i32, %arg1, %c0_i32_0 : i32, i32, i32, i32
  }
  func.func @transform_1(%arg0: i32, %arg1: i32, %arg2: i32) -> (i32, i32, i32, i32) {
    %c0_i32 = arith.constant 0 : i32
    %c0_i32_0 = arith.constant 0 : i32
    %c0_i32_1 = arith.constant 0 : i32
    return %arg0, %c0_i32, %arg2, %c0_i32_0 : i32, i32, i32, i32
  }
  func.func @transform_2(%arg0: i32, %arg1: i32, %arg2: i32) -> (i32, i32, i32, i32) {
    %c0_i32 = arith.constant 0 : i32
    %c0_i32_0 = arith.constant 0 : i32
    %c0_i32_1 = arith.constant 0 : i32
    return %arg0, %c0_i32, %arg2, %c0_i32_0 : i32, i32, i32, i32
  }
  func.func @transform_3(%arg0: i32, %arg1: i32, %arg2: i32) -> (i32, i32, i32) {
    %c0_i32 = arith.constant 0 : i32
    %c0_i32_0 = arith.constant 0 : i32
    return %arg0, %arg1, %c0_i32 : i32, i32, i32
  }
}

module attributes {stable_mosaic.version = 11 : i64} {
  func.func @out_mlp_kernel(%arg0: i32, %arg1: i32, %arg2: memref<1x8x32xf32, #tpu.memory_space<vmem>>, %arg3: memref<1x8x32xbf16, #tpu.memory_space<vmem>>, %arg4: memref<32x32xbf16, #tpu.memory_space<vmem>>, %arg5: memref<1x32xf32, #tpu.memory_space<vmem>>, %arg6: memref<1x32xf32, #tpu.memory_space<vmem>>, %arg7: memref<1x32xf32, #tpu.memory_space<vmem>>, %arg8: memref<32x2048xbf16, #tpu.memory_space<vmem>>, %arg9: memref<1x2048xf32, #tpu.memory_space<vmem>>, %arg10: memref<2048x32xbf16, #tpu.memory_space<vmem>>, %arg11: memref<1x32xf32, #tpu.memory_space<vmem>>, %arg12: memref<1x32xf32, #tpu.memory_space<vmem>>, %arg13: memref<1x32xf32, #tpu.memory_space<vmem>>, %arg14: memref<1x8x32xbf16, #tpu.memory_space<vmem>>) attributes {dimension_semantics = [#tpu.dimension_semantics<parallel>, #tpu.dimension_semantics<parallel>], iteration_bounds = array<i64: 2, 1>, scalar_prefetch = 0 : i64, scratch_operands = 0 : i64, tpu.core_type = #tpu.core_type<tc>, window_params = [{transform_indices = @transform_0, window_bounds = array<i64: 1, 8, 32>}, {transform_indices = @transform_1, window_bounds = array<i64: 1, 8, 32>}, {pipeline_mode = #tpu.pipeline_mode<synchronous>, transform_indices = @transform_2, window_bounds = array<i64: 32, 32>}, {pipeline_mode = #tpu.pipeline_mode<synchronous>, transform_indices = @transform_3, window_bounds = array<i64: 1, 32>}, {pipeline_mode = #tpu.pipeline_mode<synchronous>, transform_indices = @transform_4, window_bounds = array<i64: 1, 32>}, {pipeline_mode = #tpu.pipeline_mode<synchronous>, transform_indices = @transform_5, window_bounds = array<i64: 1, 32>}, {pipeline_mode = #tpu.pipeline_mode<synchronous>, transform_indices = @transform_6, window_bounds = array<i64: 32, 2048>}, {pipeline_mode = #tpu.pipeline_mode<synchronous>, transform_indices = @transform_7, window_bounds = array<i64: 1, 2048>}, {pipeline_mode = #tpu.pipeline_mode<synchronous>, transform_indices = @transform_8, window_bounds = array<i64: 2048, 32>}, {pipeline_mode = #tpu.pipeline_mode<synchronous>, transform_indices = @transform_9, window_bounds = array<i64: 1, 32>}, {pipeline_mode = #tpu.pipeline_mode<synchronous>, transform_indices = @transform_10, window_bounds = array<i64: 1, 32>}, {pipeline_mode = #tpu.pipeline_mode<synchronous>, transform_indices = @transform_11, window_bounds = array<i64: 1, 32>}, {transform_indices = @transform_12, window_bounds = array<i64: 1, 8, 32>}]} {
    %c0 = arith.constant 0 : index
    %c0_0 = arith.constant 0 : index
    %c0_1 = arith.constant 0 : index
    %0 = vector.load %arg2[%c0, %c0_0, %c0_1] : memref<1x8x32xf32, #tpu.memory_space<vmem>>, vector<1x8x32xf32>
    %1 = vector.shape_cast %0 : vector<1x8x32xf32> to vector<8x32xf32>
    %c0_2 = arith.constant 0 : index
    %c0_3 = arith.constant 0 : index
    %c0_4 = arith.constant 0 : index
    %2 = vector.load %arg3[%c0_2, %c0_3, %c0_4] : memref<1x8x32xbf16, #tpu.memory_space<vmem>>, vector<1x8x32xbf16>
    %3 = vector.shape_cast %2 : vector<1x8x32xbf16> to vector<8x32xbf16>
    %c0_5 = arith.constant 0 : index
    %c0_6 = arith.constant 0 : index
    %4 = vector.load %arg4[%c0_5, %c0_6] : memref<32x32xbf16, #tpu.memory_space<vmem>>, vector<32x32xbf16>
    %cst = arith.constant dense<0.000000e+00> : vector<8x32xf32>
    %5 = tpu.matmul %3, %4, %cst {dimension_numbers = #tpu.dot_dimension_numbers<[1], [0], [0], [1], [0, 0, 1, 1], [], []>} : vector<8x32xbf16>, vector<32x32xbf16>, vector<8x32xf32> -> vector<8x32xf32>
    %c0_7 = arith.constant 0 : index
    %c0_8 = arith.constant 0 : index
    %6 = vector.load %arg5[%c0_7, %c0_8] : memref<1x32xf32, #tpu.memory_space<vmem>>, vector<1x32xf32>
    %7 = vector.broadcast %6 : vector<1x32xf32> to vector<8x32xf32>
    %8 = arith.addf %5, %7 : vector<8x32xf32>
    %9 = arith.addf %1, %8 : vector<8x32xf32>
    %c0_9 = arith.constant 0 : index
    %c0_10 = arith.constant 0 : index
    %10 = vector.load %arg6[%c0_9, %c0_10] : memref<1x32xf32, #tpu.memory_space<vmem>>, vector<1x32xf32>
    %c0_11 = arith.constant 0 : index
    %c0_12 = arith.constant 0 : index
    %11 = vector.load %arg7[%c0_11, %c0_12] : memref<1x32xf32, #tpu.memory_space<vmem>>, vector<1x32xf32>
    %cst_13 = arith.constant dense<0.000000e+00> : vector<8xf32>
    %12 = vector.multi_reduction <add>, %9, %cst_13 [1] : vector<8x32xf32> to vector<8xf32>
    %13 = vector.shape_cast %12 : vector<8xf32> to vector<8x1xf32>
    %cst_14 = arith.constant 3.200000e+01 : f32
    %14 = vector.broadcast %cst_14 : f32 to vector<8x1xf32>
    %15 = arith.divf %13, %14 : vector<8x1xf32>
    %16 = vector.broadcast %15 : vector<8x1xf32> to vector<8x32xf32>
    %17 = arith.subf %9, %16 : vector<8x32xf32>
    %18 = arith.mulf %17, %17 : vector<8x32xf32>
    %cst_15 = arith.constant dense<0.000000e+00> : vector<8xf32>
    %19 = vector.multi_reduction <add>, %18, %cst_15 [1] : vector<8x32xf32> to vector<8xf32>
    %20 = vector.shape_cast %19 : vector<8xf32> to vector<8x1xf32>
    %cst_16 = arith.constant 3.200000e+01 : f32
    %21 = vector.broadcast %cst_16 : f32 to vector<8x1xf32>
    %22 = arith.divf %20, %21 : vector<8x1xf32>
    %cst_17 = arith.constant 9.99999974E-6 : f32
    %23 = vector.broadcast %cst_17 : f32 to vector<8x1xf32>
    %24 = arith.addf %22, %23 : vector<8x1xf32>
    %25 = math.rsqrt %24 : vector<8x1xf32>
    %26 = vector.broadcast %25 : vector<8x1xf32> to vector<8x32xf32>
    %27 = arith.mulf %17, %26 : vector<8x32xf32>
    %28 = vector.broadcast %10 : vector<1x32xf32> to vector<8x32xf32>
    %29 = arith.mulf %27, %28 : vector<8x32xf32>
    %30 = vector.broadcast %11 : vector<1x32xf32> to vector<8x32xf32>
    %31 = arith.addf %29, %30 : vector<8x32xf32>
    %32 = arith.truncf %31 : vector<8x32xf32> to vector<8x32xbf16>
    %c0_18 = arith.constant 0 : index
    %c0_19 = arith.constant 0 : index
    %33 = vector.load %arg8[%c0_18, %c0_19] : memref<32x2048xbf16, #tpu.memory_space<vmem>>, vector<32x2048xbf16>
    %cst_20 = arith.constant dense<0.000000e+00> : vector<8x2048xf32>
    %34 = tpu.matmul %32, %33, %cst_20 {dimension_numbers = #tpu.dot_dimension_numbers<[1], [0], [0], [1], [0, 0, 1, 1], [], []>} : vector<8x32xbf16>, vector<32x2048xbf16>, vector<8x2048xf32> -> vector<8x2048xf32>
    %c0_21 = arith.constant 0 : index
    %c0_22 = arith.constant 0 : index
    %35 = vector.load %arg9[%c0_21, %c0_22] : memref<1x2048xf32, #tpu.memory_space<vmem>>, vector<1x2048xf32>
    %36 = vector.broadcast %35 : vector<1x2048xf32> to vector<8x2048xf32>
    %37 = arith.addf %34, %36 : vector<8x2048xf32>
    %cst_23 = arith.constant 0.000000e+00 : f32
    %38 = vector.broadcast %cst_23 : f32 to vector<8x2048xf32>
    %39 = arith.maximumf %37, %38 : vector<8x2048xf32>
    %40 = arith.truncf %39 : vector<8x2048xf32> to vector<8x2048xbf16>
    %c0_24 = arith.constant 0 : index
    %c0_25 = arith.constant 0 : index
    %41 = vector.load %arg10[%c0_24, %c0_25] : memref<2048x32xbf16, #tpu.memory_space<vmem>>, vector<2048x32xbf16>
    %cst_26 = arith.constant dense<0.000000e+00> : vector<8x32xf32>
    %42 = tpu.matmul %40, %41, %cst_26 {dimension_numbers = #tpu.dot_dimension_numbers<[1], [0], [0], [1], [0, 0, 1, 1], [], []>} : vector<8x2048xbf16>, vector<2048x32xbf16>, vector<8x32xf32> -> vector<8x32xf32>
    %c0_27 = arith.constant 0 : index
    %c0_28 = arith.constant 0 : index
    %43 = vector.load %arg11[%c0_27, %c0_28] : memref<1x32xf32, #tpu.memory_space<vmem>>, vector<1x32xf32>
    %44 = vector.broadcast %43 : vector<1x32xf32> to vector<8x32xf32>
    %45 = arith.addf %42, %44 : vector<8x32xf32>
    %46 = arith.addf %31, %45 : vector<8x32xf32>
    %c0_29 = arith.constant 0 : index
    %c0_30 = arith.constant 0 : index
    %47 = vector.load %arg12[%c0_29, %c0_30] : memref<1x32xf32, #tpu.memory_space<vmem>>, vector<1x32xf32>
    %c0_31 = arith.constant 0 : index
    %c0_32 = arith.constant 0 : index
    %48 = vector.load %arg13[%c0_31, %c0_32] : memref<1x32xf32, #tpu.memory_space<vmem>>, vector<1x32xf32>
    %cst_33 = arith.constant dense<0.000000e+00> : vector<8xf32>
    %49 = vector.multi_reduction <add>, %46, %cst_33 [1] : vector<8x32xf32> to vector<8xf32>
    %50 = vector.shape_cast %49 : vector<8xf32> to vector<8x1xf32>
    %cst_34 = arith.constant 3.200000e+01 : f32
    %51 = vector.broadcast %cst_34 : f32 to vector<8x1xf32>
    %52 = arith.divf %50, %51 : vector<8x1xf32>
    %53 = vector.broadcast %52 : vector<8x1xf32> to vector<8x32xf32>
    %54 = arith.subf %46, %53 : vector<8x32xf32>
    %55 = arith.mulf %54, %54 : vector<8x32xf32>
    %cst_35 = arith.constant dense<0.000000e+00> : vector<8xf32>
    %56 = vector.multi_reduction <add>, %55, %cst_35 [1] : vector<8x32xf32> to vector<8xf32>
    %57 = vector.shape_cast %56 : vector<8xf32> to vector<8x1xf32>
    %cst_36 = arith.constant 3.200000e+01 : f32
    %58 = vector.broadcast %cst_36 : f32 to vector<8x1xf32>
    %59 = arith.divf %57, %58 : vector<8x1xf32>
    %cst_37 = arith.constant 9.99999974E-6 : f32
    %60 = vector.broadcast %cst_37 : f32 to vector<8x1xf32>
    %61 = arith.addf %59, %60 : vector<8x1xf32>
    %62 = math.rsqrt %61 : vector<8x1xf32>
    %63 = vector.broadcast %62 : vector<8x1xf32> to vector<8x32xf32>
    %64 = arith.mulf %54, %63 : vector<8x32xf32>
    %65 = vector.broadcast %47 : vector<1x32xf32> to vector<8x32xf32>
    %66 = arith.mulf %64, %65 : vector<8x32xf32>
    %67 = vector.broadcast %48 : vector<1x32xf32> to vector<8x32xf32>
    %68 = arith.addf %66, %67 : vector<8x32xf32>
    %69 = arith.truncf %68 : vector<8x32xf32> to vector<8x32xbf16>
    %c0_38 = arith.constant 0 : index
    %c0_39 = arith.constant 0 : index
    %c0_40 = arith.constant 0 : index
    %70 = vector.load %arg14[%c0_38, %c0_39, %c0_40] : memref<1x8x32xbf16, #tpu.memory_space<vmem>>, vector<1x8x32xbf16>
    %71 = vector.shape_cast %70 : vector<1x8x32xbf16> to vector<8x32xbf16>
    %72 = vector.shape_cast %69 : vector<8x32xbf16> to vector<1x8x32xbf16>
    tpu.vector_store %arg14[%c0_38, %c0_39, %c0_40], %72 {strides = array<i32>} : memref<1x8x32xbf16, #tpu.memory_space<vmem>>, vector<1x8x32xbf16>,
    return
  }
  func.func @transform_0(%arg0: i32, %arg1: i32) -> (i32, i32, i32) {
    %c0_i32 = arith.constant 0 : i32
    %c0_i32_0 = arith.constant 0 : i32
    return %arg0, %arg1, %c0_i32 : i32, i32, i32
  }
  func.func @transform_1(%arg0: i32, %arg1: i32) -> (i32, i32, i32) {
    %c0_i32 = arith.constant 0 : i32
    %c0_i32_0 = arith.constant 0 : i32
    return %arg0, %arg1, %c0_i32 : i32, i32, i32
  }
  func.func @transform_2(%arg0: i32, %arg1: i32) -> (i32, i32) {
    %c0_i32 = arith.constant 0 : i32
    %c0_i32_0 = arith.constant 0 : i32
    %c0_i32_1 = arith.constant 0 : i32
    return %c0_i32, %c0_i32_0 : i32, i32
  }
  func.func @transform_3(%arg0: i32, %arg1: i32) -> (i32, i32) {
    %c0_i32 = arith.constant 0 : i32
    %c0_i32_0 = arith.constant 0 : i32
    %c0_i32_1 = arith.constant 0 : i32
    return %c0_i32, %c0_i32_0 : i32, i32
  }
  func.func @transform_4(%arg0: i32, %arg1: i32) -> (i32, i32) {
    %c0_i32 = arith.constant 0 : i32
    %c0_i32_0 = arith.constant 0 : i32
    %c0_i32_1 = arith.constant 0 : i32
    return %c0_i32, %c0_i32_0 : i32, i32
  }
  func.func @transform_5(%arg0: i32, %arg1: i32) -> (i32, i32) {
    %c0_i32 = arith.constant 0 : i32
    %c0_i32_0 = arith.constant 0 : i32
    %c0_i32_1 = arith.constant 0 : i32
    return %c0_i32, %c0_i32_0 : i32, i32
  }
  func.func @transform_6(%arg0: i32, %arg1: i32) -> (i32, i32) {
    %c0_i32 = arith.constant 0 : i32
    %c0_i32_0 = arith.constant 0 : i32
    %c0_i32_1 = arith.constant 0 : i32
    return %c0_i32, %c0_i32_0 : i32, i32
  }
  func.func @transform_7(%arg0: i32, %arg1: i32) -> (i32, i32) {
    %c0_i32 = arith.constant 0 : i32
    %c0_i32_0 = arith.constant 0 : i32
    %c0_i32_1 = arith.constant 0 : i32
    return %c0_i32, %c0_i32_0 : i32, i32
  }
  func.func @transform_8(%arg0: i32, %arg1: i32) -> (i32, i32) {
    %c0_i32 = arith.constant 0 : i32
    %c0_i32_0 = arith.constant 0 : i32
    %c0_i32_1 = arith.constant 0 : i32
    return %c0_i32, %c0_i32_0 : i32, i32
  }
  func.func @transform_9(%arg0: i32, %arg1: i32) -> (i32, i32) {
    %c0_i32 = arith.constant 0 : i32
    %c0_i32_0 = arith.constant 0 : i32
    %c0_i32_1 = arith.constant 0 : i32
    return %c0_i32, %c0_i32_0 : i32, i32
  }
  func.func @transform_10(%arg0: i32, %arg1: i32) -> (i32, i32) {
    %c0_i32 = arith.constant 0 : i32
    %c0_i32_0 = arith.constant 0 : i32
    %c0_i32_1 = arith.constant 0 : i32
    return %c0_i32, %c0_i32_0 : i32, i32
  }
  func.func @transform_11(%arg0: i32, %arg1: i32) -> (i32, i32) {
    %c0_i32 = arith.constant 0 : i32
    %c0_i32_0 = arith.constant 0 : i32
    %c0_i32_1 = arith.constant 0 : i32
    return %c0_i32, %c0_i32_0 : i32, i32
  }
  func.func @transform_12(%arg0: i32, %arg1: i32) -> (i32, i32, i32) {
    %c0_i32 = arith.constant 0 : i32
    %c0_i32_0 = arith.constant 0 : i32
    return %arg0, %arg1, %c0_i32 : i32, i32, i32
  }
}

</mosaic_0001>

<llo_original>
// kernel: transformer_encoder_forward.7
$region0: #{transformer_encoder_forward.7}
  #allocation0 [shape = 'u32[]', space=smem, size = 0x4, offset = 0x4, fixed_abs, tag = 'smem constant byte address 0x4 - core index']
  #allocation1 [shape = 'u32[72,128]{1,0:T(1,128)}', space=vmem, size = 0x9000, scoped, tag = 'internal scratch']
  #allocation2 [shape = 'f32[8,8,1]{2,1,0:T(8,128)}', space=vmem, size = 0x8000, scoped, tag = 'scratch operand']
  #allocation3 [shape = 'f32[8,8,1]{2,1,0:T(8,128)}', space=vmem, size = 0x8000, scoped, tag = 'scratch operand']
  #allocation4 [shape = 'f32[8,8,4]{2,1,0:T(8,128)}', space=vmem, size = 0x8000, scoped, tag = 'scratch operand']
  %s0 = inlined_call_operand.vmem [shape: bf16[2,8,8,4], index: 0, kind: input, shape index: {}]
  %s1 = inlined_call_operand.vmem [shape: bf16[2,8,8,4], index: 1, kind: input, shape index: {}]
  %s2 = inlined_call_operand.vmem [shape: bf16[2,8,8,4], index: 2, kind: input, shape index: {}]
  %s3 = inlined_call_operand.vmem [shape: bf16[2,8,32], index: 3, kind: output, shape index: {}]
  %s4 = sld [smem:[#allocation0]]
  $region53: #{transformer_encoder_forward.7} parent=0
    _
  %s6 = ssub.s32 1, %s4
  %s7 = scalar_select 0, %s6, %s4
  loop: start=0, step=1, limit=4
  $region2: #{transformer_encoder_forward.7} parent=0 // loop_pre_header
    _
  $region3: #{transformer_encoder_forward.7} parent=0 // loop_header
    %s9 = sphi 0, %s13
    %p10 = scmp.ge.s32.totalorder %s9, 4
    %s16 = sphi 0, %s35
    %s17 = sphi 0, %s31
    %s18 = sphi 0, %s27
    %s19 = sphi 0, %s16
    %s20 = sphi 0, %s17
    %s21 = sphi 0, %s18
    %s22 = sphi 0, %s19
    %s23 = sphi 0, %s20
    %s24 = sphi 0, %s21
    %s40 = sphi 0, %s42
    %s43 = sphi 0, %s40
    %s44 = sphi 0, %s43
    %s60 = sphi 0, %s44
    %s68 = sphi 0, %s70
    %s71 = sphi 0, %s68
    %s72 = sphi 0, %s71
    %s88 = sphi 0, %s72
    %s96 = sphi 0, %s98
    %s99 = sphi 0, %s96
    %s100 = sphi 0, %s99
    %s116 = sphi 0, %s100
    %s124 = sphi 0, %s126
    %s127 = sphi 0, %s124
    %s128 = sphi 0, %s127
    %s144 = sphi 0, %s128
  $region4: #{transformer_encoder_forward.7} parent=0 // loop_header_branch
    %12 = sbr.rel (%p10) target = $region8
  $region5: #{transformer_encoder_forward.7} parent=0 // loop_body
    %s14 = ssub.s32 %s9, 1
    %s15 = ssub.s32 %s9, 2
    %s25 = sadd.s32 1, %s18
    %p26 = scmp.ge.s32.totalorder %s25, 1
    %s27 = scalar_select %p26, 0, %s25
    %s28 = sadd.s32 1, %s17
    %s29 = scalar_select %p26, %s28, %s17
    %p30 = scmp.ge.s32.totalorder %s29, 1
    %s31 = scalar_select %p30, 0, %s29
    %s32 = sadd.s32 1, %s16
    %s33 = scalar_select %p30, %s32, %s16
    %p34 = scmp.ge.s32.totalorder %s33, 2
    %s35 = scalar_select %p34, 0, %s33
    %s36 = ssub.s32 %s16, %s35
    %s37 = ssub.s32 %s17, %s31
    %s38 = sor.u32 %s36, %s37
    %p39 = scmp.eq.s32.totalorder %s38, 0
    %s41 = sadd.s32 %s40, 1
    %s42 = scalar_select %p39, %s40, %s41
    %p45 = pneg %p39
    %p46 = scmp.eq.s32.totalorder %s9, 1
    %p47 = por %p45, %p46
    %p48 = scmp.ne.s32.totalorder %s40, %s43
    %p49 = scmp.eq.s32.totalorder %s9, 0
    %p50 = por %p48, %p49
    %p51 = scmp.ne.s32.totalorder %s40, %s43
    %p52 = scmp.eq.s32.totalorder %s14, 1
    %p53 = por %p51, %p52
    %p54 = scmp.ne.s32.totalorder %s43, %s44
    %p55 = scmp.eq.s32.totalorder %s14, 0
    %p56 = por %p54, %p55
    %p57 = scmp.ne.s32.totalorder %s43, %s44
    %p58 = scmp.eq.s32.totalorder %s15, 1
    %p59 = por %p57, %p58
    %p61 = scmp.ne.s32.totalorder %s44, %s60
    %p62 = scmp.eq.s32.totalorder %s15, 0
    %p63 = por %p61, %p62
    %s64 = ssub.s32 %s16, %s35
    %s65 = ssub.s32 %s18, %s27
    %s66 = sor.u32 %s64, %s65
    %p67 = scmp.eq.s32.totalorder %s66, 0
    %s69 = sadd.s32 %s68, 1
    %s70 = scalar_select %p67, %s68, %s69
    %p73 = pneg %p67
    %p74 = scmp.eq.s32.totalorder %s9, 1
    %p75 = por %p73, %p74
    %p76 = scmp.ne.s32.totalorder %s68, %s71
    %p77 = scmp.eq.s32.totalorder %s9, 0
    %p78 = por %p76, %p77
    %p79 = scmp.ne.s32.totalorder %s68, %s71
    %p80 = scmp.eq.s32.totalorder %s14, 1
    %p81 = por %p79, %p80
    %p82 = scmp.ne.s32.totalorder %s71, %s72
    %p83 = scmp.eq.s32.totalorder %s14, 0
    %p84 = por %p82, %p83
    %p85 = scmp.ne.s32.totalorder %s71, %s72
    %p86 = scmp.eq.s32.totalorder %s15, 1
    %p87 = por %p85, %p86
    %p89 = scmp.ne.s32.totalorder %s72, %s88
    %p90 = scmp.eq.s32.totalorder %s15, 0
    %p91 = por %p89, %p90
    %s92 = ssub.s32 %s16, %s35
    %s93 = ssub.s32 %s18, %s27
    %s94 = sor.u32 %s92, %s93
    %p95 = scmp.eq.s32.totalorder %s94, 0
    %s97 = sadd.s32 %s96, 1
    %s98 = scalar_select %p95, %s96, %s97
    %p101 = pneg %p95
    %p102 = scmp.eq.s32.totalorder %s9, 1
    %p103 = por %p101, %p102
    %p104 = scmp.ne.s32.totalorder %s96, %s99
    %p105 = scmp.eq.s32.totalorder %s9, 0
    %p106 = por %p104, %p105
    %p107 = scmp.ne.s32.totalorder %s96, %s99
    %p108 = scmp.eq.s32.totalorder %s14, 1
    %p109 = por %p107, %p108
    %p110 = scmp.ne.s32.totalorder %s99, %s100
    %p111 = scmp.eq.s32.totalorder %s14, 0
    %p112 = por %p110, %p111
    %p113 = scmp.ne.s32.totalorder %s99, %s100
    %p114 = scmp.eq.s32.totalorder %s15, 1
    %p115 = por %p113, %p114
    %p117 = scmp.ne.s32.totalorder %s100, %s116
    %p118 = scmp.eq.s32.totalorder %s15, 0
    %p119 = por %p117, %p118
    %s120 = ssub.s32 %s16, %s35
    %s121 = ssub.s32 %s17, %s31
    %s122 = sor.u32 %s120, %s121
    %p123 = scmp.eq.s32.totalorder %s122, 0
    %s125 = sadd.s32 %s124, 1
    %s126 = scalar_select %p123, %s124, %s125
    %p129 = pneg %p123
    %p130 = scmp.eq.s32.totalorder %s9, 1
    %p131 = por %p129, %p130
    %p132 = scmp.ne.s32.totalorder %s124, %s127
    %p133 = scmp.eq.s32.totalorder %s9, 0
    %p134 = por %p132, %p133
    %p135 = scmp.ne.s32.totalorder %s124, %s127
    %p136 = scmp.eq.s32.totalorder %s14, 1
    %p137 = por %p135, %p136
    %p138 = scmp.ne.s32.totalorder %s127, %s128
    %p139 = scmp.eq.s32.totalorder %s14, 0
    %p140 = por %p138, %p139
    %p141 = scmp.ne.s32.totalorder %s127, %s128
    %p142 = scmp.eq.s32.totalorder %s15, 1
    %p143 = por %p141, %p142
    %p145 = scmp.ne.s32.totalorder %s128, %s144
    %p146 = scmp.eq.s32.totalorder %s15, 0
    %p147 = por %p145, %p146
    %p148 = scmp.le.s32.totalorder 1, %s9
    %p149 = scmp.lt.s32.totalorder %s9, 3
    %p150 = pnand %p148, %p149
    %p151 = pneg %p150
    // Predicated region
    $region9: #{transformer_encoder_forward.7} parent=5 // pred_check
      _
    $region10: #{transformer_encoder_forward.7} parent=5 // pred_check_branch
      %153 = sbr.rel (%p150) target = $region12
    $region11: #{transformer_encoder_forward.7} parent=5 // pred_region
      %s154 = ssub.s32 %s9, 1
    $region12: #{transformer_encoder_forward.7} parent=5 // pred_fallthru
      _
    %p155 = scmp.lt.s32.totalorder %s9, 2
    // Predicated region
    $region13: #{transformer_encoder_forward.7} parent=5 // pred_check
      %p156 = pneg %p155
    $region14: #{transformer_encoder_forward.7} parent=5 // pred_check_branch
      %158 = sbr.rel (%p156) target = $region16
    $region15: #{transformer_encoder_forward.7} parent=5 // pred_region
      // Predicated region
      $region17: #{transformer_encoder_forward.7} parent=15 // pred_check
        %p159 = pneg %p50
      $region18: #{transformer_encoder_forward.7} parent=15 // pred_check_branch
        %161 = sbr.rel (%p159) target = $region20
      $region19: #{transformer_encoder_forward.7} parent=15 // pred_region
        %p162 = scmp.lt.s32.totalorder %s16, 1
        %s163 = scalar_select %p162, %s16, 1
        %p164 = scmp.lt.s32.totalorder %s17, 0
        %s165 = scalar_select %p164, %s17, 0
        %s166 = smul.addr %s163, 8
        %s167 = sadd.s32 %s165, %s166
        %s168 = smul.addr %s167, 4
        %s169 = scalar_lea.vmem %s0, %s168
      $region20: #{transformer_encoder_forward.7} parent=15 // pred_fallthru
        _
      // Predicated region
      $region21: #{transformer_encoder_forward.7} parent=15 // pred_check
        %p170 = pneg %p78
      $region22: #{transformer_encoder_forward.7} parent=15 // pred_check_branch
        %172 = sbr.rel (%p170) target = $region24
      $region23: #{transformer_encoder_forward.7} parent=15 // pred_region
        %p173 = scmp.lt.s32.totalorder %s16, 1
        %s174 = scalar_select %p173, %s16, 1
        %p175 = scmp.lt.s32.totalorder %s18, 0
        %s176 = scalar_select %p175, %s18, 0
        %s177 = smul.addr %s174, 8
        %s178 = sadd.s32 %s176, %s177
        %s179 = smul.addr %s178, 4
        %s180 = scalar_lea.vmem %s1, %s179
      $region24: #{transformer_encoder_forward.7} parent=15 // pred_fallthru
        _
      // Predicated region
      $region25: #{transformer_encoder_forward.7} parent=15 // pred_check
        %p181 = pneg %p106
      $region26: #{transformer_encoder_forward.7} parent=15 // pred_check_branch
        %183 = sbr.rel (%p181) target = $region28
      $region27: #{transformer_encoder_forward.7} parent=15 // pred_region
        %p184 = scmp.lt.s32.totalorder %s16, 1
        %s185 = scalar_select %p184, %s16, 1
        %p186 = scmp.lt.s32.totalorder %s18, 0
        %s187 = scalar_select %p186, %s18, 0
        %s188 = smul.addr %s185, 8
        %s189 = sadd.s32 %s187, %s188
        %s190 = smul.addr %s189, 4
        %s191 = scalar_lea.vmem %s2, %s190
      $region28: #{transformer_encoder_forward.7} parent=15 // pred_fallthru
        _
    $region16: #{transformer_encoder_forward.7} parent=5 // pred_fallthru
      _
    %p192 = scmp.le.s32.totalorder 1, %s9
    %p193 = scmp.lt.s32.totalorder %s9, 3
    %p194 = pnand %p192, %p193
    %p195 = pneg %p194
    // Predicated region
    $region29: #{transformer_encoder_forward.7} parent=5 // pred_check
      _
    $region30: #{transformer_encoder_forward.7} parent=5 // pred_check_branch
      %197 = sbr.rel (%p194) target = $region32
    $region31: #{transformer_encoder_forward.7} parent=5 // pred_region
      %s198 = ssub.s32 %s9, 1
      %p199 = scmp.lt.s32.totalorder %s19, 1
      %s200 = scalar_select %p199, %s19, 1
      %p201 = scmp.lt.s32.totalorder %s20, 0
      %s202 = scalar_select %p201, %s20, 0
      %s203 = smul.addr %s200, 8
      %s204 = sadd.s32 %s202, %s203
      %s205 = smul.addr %s204, 4
      %s206 = scalar_lea.vmem %s0, %s205
      %p207 = pneg %p56
      %p208 = pneg %p53
      %p209 = scmp.lt.s32.totalorder %s19, 1
      %s210 = scalar_select %p209, %s19, 1
      %p211 = scmp.lt.s32.totalorder %s21, 0
      %s212 = scalar_select %p211, %s21, 0
      %s213 = smul.addr %s210, 8
      %s214 = sadd.s32 %s212, %s213
      %s215 = smul.addr %s214, 4
      %s216 = scalar_lea.vmem %s1, %s215
      %p217 = pneg %p84
      %p218 = pneg %p81
      %p219 = scmp.lt.s32.totalorder %s19, 1
      %s220 = scalar_select %p219, %s19, 1
      %p221 = scmp.lt.s32.totalorder %s21, 0
      %s222 = scalar_select %p221, %s21, 0
      %s223 = smul.addr %s220, 8
      %s224 = sadd.s32 %s222, %s223
      %s225 = smul.addr %s224, 4
      %s226 = scalar_lea.vmem %s2, %s225
      %p227 = pneg %p112
      %p228 = pneg %p109
      %p229 = pneg %p140
      %p230 = pneg %p137
      %p231 = scmp.lt.s32.totalorder %s19, 1
      %s232 = scalar_select %p231, %s19, 1
      %p233 = scmp.lt.s32.totalorder %s20, 0
      %s234 = scalar_select %p233, %s20, 0
      %s235 = sadd.s32 %s234, %s232
      %s236 = smul.addr %s235, 4
      %s237 = scalar_lea.vmem %s3, %s236
      %p238 = scmp.lt.s32.totalorder %s19, 1
      %s239 = scalar_select %p238, %s19, 1
      %p240 = scmp.lt.s32.totalorder %s20, 0
      %s241 = scalar_select %p240, %s20, 0
      %s242 = smul.addr %s239, 8
      %s243 = sadd.s32 %s241, %s242
      %s244 = smul.addr %s243, 4
      %s245 = scalar_lea.vmem %s0, %s244
      %p246 = scmp.lt.s32.totalorder %s19, 1
      %s247 = scalar_select %p246, %s19, 1
      %p248 = scmp.lt.s32.totalorder %s21, 0
      %s249 = scalar_select %p248, %s21, 0
      %s250 = smul.addr %s247, 8
      %s251 = sadd.s32 %s249, %s250
      %s252 = smul.addr %s251, 4
      %s253 = scalar_lea.vmem %s1, %s252
      %p254 = scmp.lt.s32.totalorder %s19, 1
      %s255 = scalar_select %p254, %s19, 1
      %p256 = scmp.lt.s32.totalorder %s21, 0
      %s257 = scalar_select %p256, %s21, 0
      %s258 = smul.addr %s255, 8
      %s259 = sadd.s32 %s257, %s258
      %s260 = smul.addr %s259, 4
      %s261 = scalar_lea.vmem %s2, %s260
      %p262 = scmp.lt.s32.totalorder %s19, 1
      %s263 = scalar_select %p262, %s19, 1
      %p264 = scmp.lt.s32.totalorder %s20, 0
      %s265 = scalar_select %p264, %s20, 0
      %s266 = sadd.s32 %s265, %s263
      %s267 = smul.addr %s266, 4
      %s268 = scalar_lea.vmem %s3, %s267
      %p270 = scmp.eq.s32.totalorder %s21, 0
      // Predicated region
      $region33: #{transformer_encoder_forward.7} parent=31 // pred_check
        %p271 = pneg %p270
      $region34: #{transformer_encoder_forward.7} parent=31 // pred_check_branch
        %273 = sbr.rel (%p271) target = $region36
      $region35: #{transformer_encoder_forward.7} parent=31 // pred_region
        %vm274 = vcmask 7168
        %275 = vst.msk [vmem:[#allocation2] sm:$0xff] %vm274, -inf
        %276 = vst.msk [vmem:[#allocation2 + $0x8] sm:$0xff] %vm274, -inf
        %277 = vst.msk [vmem:[#allocation2 + $0x10] sm:$0xff] %vm274, -inf
        %278 = vst.msk [vmem:[#allocation2 + $0x18] sm:$0xff] %vm274, -inf
        %279 = vst.msk [vmem:[#allocation2 + $0x20] sm:$0xff] %vm274, -inf
        %280 = vst.msk [vmem:[#allocation2 + $0x28] sm:$0xff] %vm274, -inf
        %281 = vst.msk [vmem:[#allocation2 + $0x30] sm:$0xff] %vm274, -inf
        %282 = vst.msk [vmem:[#allocation2 + $0x38] sm:$0xff] %vm274, -inf
        %283 = vst.msk [vmem:[#allocation3] sm:$0xff] %vm274, 0.0
        %284 = vst.msk [vmem:[#allocation3 + $0x8] sm:$0xff] %vm274, 0.0
        %285 = vst.msk [vmem:[#allocation3 + $0x10] sm:$0xff] %vm274, 0.0
        %286 = vst.msk [vmem:[#allocation3 + $0x18] sm:$0xff] %vm274, 0.0
        %287 = vst.msk [vmem:[#allocation3 + $0x20] sm:$0xff] %vm274, 0.0
        %288 = vst.msk [vmem:[#allocation3 + $0x28] sm:$0xff] %vm274, 0.0
        %289 = vst.msk [vmem:[#allocation3 + $0x30] sm:$0xff] %vm274, 0.0
        %290 = vst.msk [vmem:[#allocation3 + $0x38] sm:$0xff] %vm274, 0.0
        %vm291 = vcmask 31744
        %292 = vst.msk [vmem:[#allocation4] sm:$0xff] %vm291, 0.0
        %293 = vst.msk [vmem:[#allocation4 + $0x8] sm:$0xff] %vm291, 0.0
        %294 = vst.msk [vmem:[#allocation4 + $0x10] sm:$0xff] %vm291, 0.0
        %295 = vst.msk [vmem:[#allocation4 + $0x18] sm:$0xff] %vm291, 0.0
        %296 = vst.msk [vmem:[#allocation4 + $0x20] sm:$0xff] %vm291, 0.0
        %297 = vst.msk [vmem:[#allocation4 + $0x28] sm:$0xff] %vm291, 0.0
        %298 = vst.msk [vmem:[#allocation4 + $0x30] sm:$0xff] %vm291, 0.0
        %299 = vst.msk [vmem:[#allocation4 + $0x38] sm:$0xff] %vm291, 0.0
      $region36: #{transformer_encoder_forward.7} parent=31 // pred_fallthru
        _
      %v300 = vld [vmem:[%s245] sm:$0xf]
      %v301 = vld [vmem:[%s245 + $0x4] sm:$0xf]
      %v302 = vld [vmem:[%s245 + $0x8] sm:$0xf]
      %v303 = vld [vmem:[%s245 + $0xc] sm:$0xf]
      %v304 = vld [vmem:[%s245 + $0x10] sm:$0xf]
      %v305 = vld [vmem:[%s245 + $0x14] sm:$0xf]
      %v306 = vld [vmem:[%s245 + $0x18] sm:$0xf]
      %v307 = vld [vmem:[%s245 + $0x1c] sm:$0xf]
      %v308 = vld [vmem:[%s253] sm:$0xf]
      %v309 = vld [vmem:[%s253 + $0x4] sm:$0xf]
      %v310 = vld [vmem:[%s253 + $0x8] sm:$0xf]
      %v311 = vld [vmem:[%s253 + $0xc] sm:$0xf]
      %v312 = vld [vmem:[%s253 + $0x10] sm:$0xf]
      %v313 = vld [vmem:[%s253 + $0x14] sm:$0xf]
      %v314 = vld [vmem:[%s253 + $0x18] sm:$0xf]
      %v315 = vld [vmem:[%s253 + $0x1c] sm:$0xf]
      %v316 = vld [vmem:[%s261] sm:$0xf]
      %v317 = vld [vmem:[%s261 + $0x4] sm:$0xf]
      %v318 = vld [vmem:[%s261 + $0x8] sm:$0xf]
      %v319 = vld [vmem:[%s261 + $0xc] sm:$0xf]
      %v320 = vld [vmem:[%s261 + $0x10] sm:$0xf]
      %v321 = vld [vmem:[%s261 + $0x14] sm:$0xf]
      %v322 = vld [vmem:[%s261 + $0x18] sm:$0xf]
      %v323 = vld [vmem:[%s261 + $0x1c] sm:$0xf]
      %vm324 = vcmask 31744
      %v326 = vsel %vm324, %v300, 0
      %v329 = vsel %vm324, %v308, 0
      %331 = vmatpush.bf16.xpose.msra.mxu0 0
      %332 = vmatpush.bf16.xpose.msra.mxu0 0
      %333 = vmatpush.bf16.xpose.msra.mxu0 0
      %334 = vmatpush.bf16.xpose.msra.mxu0 0
      %335 = vmatpush.bf16.xpose.msra.mxu0 0
      %336 = vmatpush.bf16.xpose.msra.mxu0 0
      %337 = vmatpush.bf16.xpose.msra.mxu0 0
      %338 = vmatpush.bf16.xpose.msra.mxu0 %v329
      %339 = vmatmul.bf16.gmra.mxu0 %v326
      %v340 = vpop.f32.mrf.mxu0
      %v341 = vadd.f32 0.0, %v340
      %v342 = vpop.f32.mrf.mxu0
      %343 = vdwg.mxu0
      %v345 = vsel %vm324, %v301, 0
      %v348 = vsel %vm324, %v309, 0
      %350 = vmatpush.bf16.xpose.msra.mxu0 0
      %351 = vmatpush.bf16.xpose.msra.mxu0 0
      %352 = vmatpush.bf16.xpose.msra.mxu0 0
      %353 = vmatpush.bf16.xpose.msra.mxu0 0
      %354 = vmatpush.bf16.xpose.msra.mxu0 0
      %355 = vmatpush.bf16.xpose.msra.mxu0 0
      %356 = vmatpush.bf16.xpose.msra.mxu0 0
      %357 = vmatpush.bf16.xpose.msra.mxu0 %v348
      %358 = vmatmul.bf16.gmra.mxu0 %v345
      %v359 = vpop.f32.mrf.mxu0
      %v360 = vadd.f32 0.0, %v359
      %v361 = vpop.f32.mrf.mxu0
      %362 = vdwg.mxu0
      %v364 = vsel %vm324, %v302, 0
      %v367 = vsel %vm324, %v310, 0
      %369 = vmatpush.bf16.xpose.msra.mxu0 0
      %370 = vmatpush.bf16.xpose.msra.mxu0 0
      %371 = vmatpush.bf16.xpose.msra.mxu0 0
      %372 = vmatpush.bf16.xpose.msra.mxu0 0
      %373 = vmatpush.bf16.xpose.msra.mxu0 0
      %374 = vmatpush.bf16.xpose.msra.mxu0 0
      %375 = vmatpush.bf16.xpose.msra.mxu0 0
      %376 = vmatpush.bf16.xpose.msra.mxu0 %v367
      %377 = vmatmul.bf16.gmra.mxu0 %v364
      %v378 = vpop.f32.mrf.mxu0
      %v379 = vadd.f32 0.0, %v378
      %v380 = vpop.f32.mrf.mxu0
      %381 = vdwg.mxu0
      %v383 = vsel %vm324, %v303, 0
      %v386 = vsel %vm324, %v311, 0
      %388 = vmatpush.bf16.xpose.msra.mxu0 0
      %389 = vmatpush.bf16.xpose.msra.mxu0 0
      %390 = vmatpush.bf16.xpose.msra.mxu0 0
      %391 = vmatpush.bf16.xpose.msra.mxu0 0
      %392 = vmatpush.bf16.xpose.msra.mxu0 0
      %393 = vmatpush.bf16.xpose.msra.mxu0 0
      %394 = vmatpush.bf16.xpose.msra.mxu0 0
      %395 = vmatpush.bf16.xpose.msra.mxu0 %v386
      %396 = vmatmul.bf16.gmra.mxu0 %v383
      %v397 = vpop.f32.mrf.mxu0
      %v398 = vadd.f32 0.0, %v397
      %v399 = vpop.f32.mrf.mxu0
      %400 = vdwg.mxu0
      %v402 = vsel %vm324, %v304, 0
      %v405 = vsel %vm324, %v312, 0
      %407 = vmatpush.bf16.xpose.msra.mxu0 0
      %408 = vmatpush.bf16.xpose.msra.mxu0 0
      %409 = vmatpush.bf16.xpose.msra.mxu0 0
      %410 = vmatpush.bf16.xpose.msra.mxu0 0
      %411 = vmatpush.bf16.xpose.msra.mxu0 0
      %412 = vmatpush.bf16.xpose.msra.mxu0 0
      %413 = vmatpush.bf16.xpose.msra.mxu0 0
      %414 = vmatpush.bf16.xpose.msra.mxu0 %v405
      %415 = vmatmul.bf16.gmra.mxu0 %v402
      %v416 = vpop.f32.mrf.mxu0
      %v417 = vadd.f32 0.0, %v416
      %v418 = vpop.f32.mrf.mxu0
      %419 = vdwg.mxu0
      %v421 = vsel %vm324, %v305, 0
      %v424 = vsel %vm324, %v313, 0
      %426 = vmatpush.bf16.xpose.msra.mxu0 0
      %427 = vmatpush.bf16.xpose.msra.mxu0 0
      %428 = vmatpush.bf16.xpose.msra.mxu0 0
      %429 = vmatpush.bf16.xpose.msra.mxu0 0
      %430 = vmatpush.bf16.xpose.msra.mxu0 0
      %431 = vmatpush.bf16.xpose.msra.mxu0 0
      %432 = vmatpush.bf16.xpose.msra.mxu0 0
      %433 = vmatpush.bf16.xpose.msra.mxu0 %v424
      %434 = vmatmul.bf16.gmra.mxu0 %v421
      %v435 = vpop.f32.mrf.mxu0
      %v436 = vadd.f32 0.0, %v435
      %v437 = vpop.f32.mrf.mxu0
      %438 = vdwg.mxu0
      %v440 = vsel %vm324, %v306, 0
      %v443 = vsel %vm324, %v314, 0
      %445 = vmatpush.bf16.xpose.msra.mxu0 0
      %446 = vmatpush.bf16.xpose.msra.mxu0 0
      %447 = vmatpush.bf16.xpose.msra.mxu0 0
      %448 = vmatpush.bf16.xpose.msra.mxu0 0
      %449 = vmatpush.bf16.xpose.msra.mxu0 0
      %450 = vmatpush.bf16.xpose.msra.mxu0 0
      %451 = vmatpush.bf16.xpose.msra.mxu0 0
      %452 = vmatpush.bf16.xpose.msra.mxu0 %v443
      %453 = vmatmul.bf16.gmra.mxu0 %v440
      %v454 = vpop.f32.mrf.mxu0
      %v455 = vadd.f32 0.0, %v454
      %v456 = vpop.f32.mrf.mxu0
      %457 = vdwg.mxu0
      %v459 = vsel %vm324, %v307, 0
      %v462 = vsel %vm324, %v315, 0
      %464 = vmatpush.bf16.xpose.msra.mxu0 0
      %465 = vmatpush.bf16.xpose.msra.mxu0 0
      %466 = vmatpush.bf16.xpose.msra.mxu0 0
      %467 = vmatpush.bf16.xpose.msra.mxu0 0
      %468 = vmatpush.bf16.xpose.msra.mxu0 0
      %469 = vmatpush.bf16.xpose.msra.mxu0 0
      %470 = vmatpush.bf16.xpose.msra.mxu0 0
      %471 = vmatpush.bf16.xpose.msra.mxu0 %v462
      %472 = vmatmul.bf16.gmra.mxu0 %v459
      %v473 = vpop.f32.mrf.mxu0
      %v474 = vadd.f32 0.0, %v473
      %v475 = vpop.f32.mrf.mxu0
      %476 = vdwg.mxu0
      %v477 = vld [vmem:[#allocation2] sm:$0xff]
      %v478 = vld [vmem:[#allocation2 + $0x8] sm:$0xff]
      %v479 = vld [vmem:[#allocation2 + $0x10] sm:$0xff]
      %v480 = vld [vmem:[#allocation2 + $0x18] sm:$0xff]
      %v481 = vld [vmem:[#allocation2 + $0x20] sm:$0xff]
      %v482 = vld [vmem:[#allocation2 + $0x28] sm:$0xff]
      %v483 = vld [vmem:[#allocation2 + $0x30] sm:$0xff]
      %v484 = vld [vmem:[#allocation2 + $0x38] sm:$0xff]
      %vm485 = vcmask 64512
      %v486 = vsel %vm485, %v341, -inf
      %487 = vmax.xlane.f32.xlu0 %v486
      %v488 = vpop.xlane.xlu0 %487
      %v489 = vsel %vm485, %v360, -inf
      %490 = vmax.xlane.f32.xlu0 %v489
      %v491 = vpop.xlane.xlu0 %490
      %v492 = vsel %vm485, %v379, -inf
      %493 = vmax.xlane.f32.xlu0 %v492
      %v494 = vpop.xlane.xlu0 %493
      %v495 = vsel %vm485, %v398, -inf
      %496 = vmax.xlane.f32.xlu0 %v495
      %v497 = vpop.xlane.xlu0 %496
      %v498 = vsel %vm485, %v417, -inf
      %499 = vmax.xlane.f32.xlu0 %v498
      %v500 = vpop.xlane.xlu0 %499
      %v501 = vsel %vm485, %v436, -inf
      %502 = vmax.xlane.f32.xlu0 %v501
      %v503 = vpop.xlane.xlu0 %502
      %v504 = vsel %vm485, %v455, -inf
      %505 = vmax.xlane.f32.xlu0 %v504
      %v506 = vpop.xlane.xlu0 %505
      %v507 = vsel %vm485, %v474, -inf
      %508 = vmax.xlane.f32.xlu0 %v507
      %v509 = vpop.xlane.xlu0 %508
      %v510 = vmax.f32 %v477, %v488
      %v511 = vmax.f32 %v478, %v491
      %v512 = vmax.f32 %v479, %v494
      %v513 = vmax.f32 %v480, %v497
      %v514 = vmax.f32 %v481, %v500
      %v515 = vmax.f32 %v482, %v503
      %v516 = vmax.f32 %v483, %v506
      %v517 = vmax.f32 %v484, %v509
      %v518 = vsub.f32 %v477, %v510
      %v519 = vsub.f32 %v478, %v511
      %v520 = vsub.f32 %v479, %v512
      %v521 = vsub.f32 %v480, %v513
      %v522 = vsub.f32 %v481, %v514
      %v523 = vsub.f32 %v482, %v515
      %v524 = vsub.f32 %v483, %v516
      %v525 = vsub.f32 %v484, %v517
      %v526 = vmul.f32 %v518, 1.442695
      %v527 = vpow.pop %v526
      %v528 = vmul.f32 %v519, 1.442695
      %v529 = vpow.pop %v528
      %v530 = vmul.f32 %v520, 1.442695
      %v531 = vpow.pop %v530
      %v532 = vmul.f32 %v521, 1.442695
      %v533 = vpow.pop %v532
      %v534 = vmul.f32 %v522, 1.442695
      %v535 = vpow.pop %v534
      %v536 = vmul.f32 %v523, 1.442695
      %v537 = vpow.pop %v536
      %v538 = vmul.f32 %v524, 1.442695
      %v539 = vpow.pop %v538
      %v540 = vmul.f32 %v525, 1.442695
      %v541 = vpow.pop %v540
      %543 = vset.pattern.permute.xlu0 0
      %544 = vperm.xlu0 %543, %v510
      %v545 = vpop.permute.xlu0 %544
      %548 = vset.pattern.permute.xlu0 0
      %549 = vperm.xlu0 %548, %v511
      %v550 = vpop.permute.xlu0 %549
      %553 = vset.pattern.permute.xlu0 0
      %554 = vperm.xlu0 %553, %v512
      %v555 = vpop.permute.xlu0 %554
      %558 = vset.pattern.permute.xlu0 0
      %559 = vperm.xlu0 %558, %v513
      %v560 = vpop.permute.xlu0 %559
      %563 = vset.pattern.permute.xlu0 0
      %564 = vperm.xlu0 %563, %v514
      %v565 = vpop.permute.xlu0 %564
      %568 = vset.pattern.permute.xlu0 0
      %569 = vperm.xlu0 %568, %v515
      %v570 = vpop.permute.xlu0 %569
      %573 = vset.pattern.permute.xlu0 0
      %574 = vperm.xlu0 %573, %v516
      %v575 = vpop.permute.xlu0 %574
      %578 = vset.pattern.permute.xlu0 0
      %579 = vperm.xlu0 %578, %v517
      %v580 = vpop.permute.xlu0 %579
      %v582 = vsub.f32 %v341, %v545
      %v583 = vsub.f32 %v360, %v550
      %v584 = vsub.f32 %v379, %v555
      %v585 = vsub.f32 %v398, %v560
      %v586 = vsub.f32 %v417, %v565
      %v587 = vsub.f32 %v436, %v570
      %v588 = vsub.f32 %v455, %v575
      %v589 = vsub.f32 %v474, %v580
      %v590 = vmul.f32 %v582, 1.442695
      %v591 = vpow.pop %v590
      %v592 = vmul.f32 %v583, 1.442695
      %v593 = vpow.pop %v592
      %v594 = vmul.f32 %v584, 1.442695
      %v595 = vpow.pop %v594
      %v596 = vmul.f32 %v585, 1.442695
      %v597 = vpow.pop %v596
      %v598 = vmul.f32 %v586, 1.442695
      %v599 = vpow.pop %v598
      %v600 = vmul.f32 %v587, 1.442695
      %v601 = vpow.pop %v600
      %v602 = vmul.f32 %v588, 1.442695
      %v603 = vpow.pop %v602
      %v604 = vmul.f32 %v589, 1.442695
      %v605 = vpow.pop %v604
      %v606 = vld [vmem:[#allocation3] sm:$0xff]
      %v607 = vld [vmem:[#allocation3 + $0x8] sm:$0xff]
      %v608 = vld [vmem:[#allocation3 + $0x10] sm:$0xff]
      %v609 = vld [vmem:[#allocation3 + $0x18] sm:$0xff]
      %v610 = vld [vmem:[#allocation3 + $0x20] sm:$0xff]
      %v611 = vld [vmem:[#allocation3 + $0x28] sm:$0xff]
      %v612 = vld [vmem:[#allocation3 + $0x30] sm:$0xff]
      %v613 = vld [vmem:[#allocation3 + $0x38] sm:$0xff]
      %v614 = vmul.f32 %v527, %v606
      %v615 = vmul.f32 %v529, %v607
      %v616 = vmul.f32 %v531, %v608
      %v617 = vmul.f32 %v533, %v609
      %v618 = vmul.f32 %v535, %v610
      %v619 = vmul.f32 %v537, %v611
      %v620 = vmul.f32 %v539, %v612
      %v621 = vmul.f32 %v541, %v613
      %v622 = vsel %vm485, %v591, 0.0
      %623 = vadd.xlane.f32.xlu0 %v622
      %v624 = vpop.xlane.xlu0 %623
      %v625 = vsel %vm485, %v593, 0.0
      %626 = vadd.xlane.f32.xlu0 %v625
      %v627 = vpop.xlane.xlu0 %626
      %v628 = vsel %vm485, %v595, 0.0
      %629 = vadd.xlane.f32.xlu0 %v628
      %v630 = vpop.xlane.xlu0 %629
      %v631 = vsel %vm485, %v597, 0.0
      %632 = vadd.xlane.f32.xlu0 %v631
      %v633 = vpop.xlane.xlu0 %632
      %v634 = vsel %vm485, %v599, 0.0
      %635 = vadd.xlane.f32.xlu0 %v634
      %v636 = vpop.xlane.xlu0 %635
      %v637 = vsel %vm485, %v601, 0.0
      %638 = vadd.xlane.f32.xlu0 %v637
      %v639 = vpop.xlane.xlu0 %638
      %v640 = vsel %vm485, %v603, 0.0
      %641 = vadd.xlane.f32.xlu0 %v640
      %v642 = vpop.xlane.xlu0 %641
      %v643 = vsel %vm485, %v605, 0.0
      %644 = vadd.xlane.f32.xlu0 %v643
      %v645 = vpop.xlane.xlu0 %644
      %v646 = vadd.f32 %v614, %v624
      %v647 = vadd.f32 %v615, %v627
      %v648 = vadd.f32 %v616, %v630
      %v649 = vadd.f32 %v617, %v633
      %v650 = vadd.f32 %v618, %v636
      %v651 = vadd.f32 %v619, %v639
      %v652 = vadd.f32 %v620, %v642
      %v653 = vadd.f32 %v621, %v645
      %vm654 = vcmask 7168
      %655 = vst.msk [vmem:[#allocation3] sm:$0xff] %vm654, %v646
      %656 = vst.msk [vmem:[#allocation3 + $0x8] sm:$0xff] %vm654, %v647
      %657 = vst.msk [vmem:[#allocation3 + $0x10] sm:$0xff] %vm654, %v648
      %658 = vst.msk [vmem:[#allocation3 + $0x18] sm:$0xff] %vm654, %v649
      %659 = vst.msk [vmem:[#allocation3 + $0x20] sm:$0xff] %vm654, %v650
      %660 = vst.msk [vmem:[#allocation3 + $0x28] sm:$0xff] %vm654, %v651
      %661 = vst.msk [vmem:[#allocation3 + $0x30] sm:$0xff] %vm654, %v652
      %662 = vst.msk [vmem:[#allocation3 + $0x38] sm:$0xff] %vm654, %v653
      %v663 = vld [vmem:[#allocation4] sm:$0xff]
      %v664 = vld [vmem:[#allocation4 + $0x8] sm:$0xff]
      %v665 = vld [vmem:[#allocation4 + $0x10] sm:$0xff]
      %v666 = vld [vmem:[#allocation4 + $0x18] sm:$0xff]
      %v667 = vld [vmem:[#allocation4 + $0x20] sm:$0xff]
      %v668 = vld [vmem:[#allocation4 + $0x28] sm:$0xff]
      %v669 = vld [vmem:[#allocation4 + $0x30] sm:$0xff]
      %v670 = vld [vmem:[#allocation4 + $0x38] sm:$0xff]
      %672 = vset.pattern.permute.xlu0 0
      %673 = vperm.xlu0 %672, %v527
      %v674 = vpop.permute.xlu0 %673
      %677 = vset.pattern.permute.xlu0 0
      %678 = vperm.xlu0 %677, %v529
      %v679 = vpop.permute.xlu0 %678
      %682 = vset.pattern.permute.xlu0 0
      %683 = vperm.xlu0 %682, %v531
      %v684 = vpop.permute.xlu0 %683
      %687 = vset.pattern.permute.xlu0 0
      %688 = vperm.xlu0 %687, %v533
      %v689 = vpop.permute.xlu0 %688
      %692 = vset.pattern.permute.xlu0 0
      %693 = vperm.xlu0 %692, %v535
      %v694 = vpop.permute.xlu0 %693
      %697 = vset.pattern.permute.xlu0 0
      %698 = vperm.xlu0 %697, %v537
      %v699 = vpop.permute.xlu0 %698
      %702 = vset.pattern.permute.xlu0 0
      %703 = vperm.xlu0 %702, %v539
      %v704 = vpop.permute.xlu0 %703
      %707 = vset.pattern.permute.xlu0 0
      %708 = vperm.xlu0 %707, %v541
      %v709 = vpop.permute.xlu0 %708
      %v711 = vmul.f32 %v674, %v663
      %v712 = vmul.f32 %v679, %v664
      %v713 = vmul.f32 %v684, %v665
      %v714 = vmul.f32 %v689, %v666
      %v715 = vmul.f32 %v694, %v667
      %v716 = vmul.f32 %v699, %v668
      %v717 = vmul.f32 %v704, %v669
      %v718 = vmul.f32 %v709, %v670
      %v719 = vpack.c.bf16 %v591, %v591
      %v720 = vpack.c.bf16 %v593, %v593
      %v721 = vpack.c.bf16 %v595, %v595
      %v722 = vpack.c.bf16 %v597, %v597
      %v723 = vpack.c.bf16 %v599, %v599
      %v724 = vpack.c.bf16 %v601, %v601
      %v725 = vpack.c.bf16 %v603, %v603
      %v726 = vpack.c.bf16 %v605, %v605
      %v728 = vsel %vm485, %v719, 0
      %vm730 = vcmask 1043456
      %v732 = vsel %vm730, %v316, 0
      %734 = vmatpush.bf16.msra.mxu0 0
      %735 = vmatpush.bf16.msra.mxu0 0
      %736 = vmatpush.bf16.msra.mxu0 0
      %737 = vmatpush.bf16.msra.mxu0 0
      %738 = vmatpush.bf16.msra.mxu0 0
      %739 = vmatpush.bf16.msra.mxu0 0
      %740 = vmatpush.bf16.msra.mxu0 0
      %741 = vmatpush.bf16.msra.mxu0 %v732
      %742 = vmatmul.bf16.gmra.mxu0 %v728
      %v743 = vpop.f32.mrf.mxu0
      %v744 = vadd.f32 0.0, %v743
      %v745 = vpop.f32.mrf.mxu0
      %746 = vdwg.mxu0
      %v748 = vsel %vm485, %v720, 0
      %v751 = vsel %vm730, %v317, 0
      %753 = vmatpush.bf16.msra.mxu0 0
      %754 = vmatpush.bf16.msra.mxu0 0
      %755 = vmatpush.bf16.msra.mxu0 0
      %756 = vmatpush.bf16.msra.mxu0 0
      %757 = vmatpush.bf16.msra.mxu0 0
      %758 = vmatpush.bf16.msra.mxu0 0
      %759 = vmatpush.bf16.msra.mxu0 0
      %760 = vmatpush.bf16.msra.mxu0 %v751
      %761 = vmatmul.bf16.gmra.mxu0 %v748
      %v762 = vpop.f32.mrf.mxu0
      %v763 = vadd.f32 0.0, %v762
      %v764 = vpop.f32.mrf.mxu0
      %765 = vdwg.mxu0
      %v767 = vsel %vm485, %v721, 0
      %v770 = vsel %vm730, %v318, 0
      %772 = vmatpush.bf16.msra.mxu0 0
      %773 = vmatpush.bf16.msra.mxu0 0
      %774 = vmatpush.bf16.msra.mxu0 0
      %775 = vmatpush.bf16.msra.mxu0 0
      %776 = vmatpush.bf16.msra.mxu0 0
      %777 = vmatpush.bf16.msra.mxu0 0
      %778 = vmatpush.bf16.msra.mxu0 0
      %779 = vmatpush.bf16.msra.mxu0 %v770
      %780 = vmatmul.bf16.gmra.mxu0 %v767
      %v781 = vpop.f32.mrf.mxu0
      %v782 = vadd.f32 0.0, %v781
      %v783 = vpop.f32.mrf.mxu0
      %784 = vdwg.mxu0
      %v786 = vsel %vm485, %v722, 0
      %v789 = vsel %vm730, %v319, 0
      %791 = vmatpush.bf16.msra.mxu0 0
      %792 = vmatpush.bf16.msra.mxu0 0
      %793 = vmatpush.bf16.msra.mxu0 0
      %794 = vmatpush.bf16.msra.mxu0 0
      %795 = vmatpush.bf16.msra.mxu0 0
      %796 = vmatpush.bf16.msra.mxu0 0
      %797 = vmatpush.bf16.msra.mxu0 0
      %798 = vmatpush.bf16.msra.mxu0 %v789
      %799 = vmatmul.bf16.gmra.mxu0 %v786
      %v800 = vpop.f32.mrf.mxu0
      %v801 = vadd.f32 0.0, %v800
      %v802 = vpop.f32.mrf.mxu0
      %803 = vdwg.mxu0
      %v805 = vsel %vm485, %v723, 0
      %v808 = vsel %vm730, %v320, 0
      %810 = vmatpush.bf16.msra.mxu0 0
      %811 = vmatpush.bf16.msra.mxu0 0
      %812 = vmatpush.bf16.msra.mxu0 0
      %813 = vmatpush.bf16.msra.mxu0 0
      %814 = vmatpush.bf16.msra.mxu0 0
      %815 = vmatpush.bf16.msra.mxu0 0
      %816 = vmatpush.bf16.msra.mxu0 0
      %817 = vmatpush.bf16.msra.mxu0 %v808
      %818 = vmatmul.bf16.gmra.mxu0 %v805
      %v819 = vpop.f32.mrf.mxu0
      %v820 = vadd.f32 0.0, %v819
      %v821 = vpop.f32.mrf.mxu0
      %822 = vdwg.mxu0
      %v824 = vsel %vm485, %v724, 0
      %v827 = vsel %vm730, %v321, 0
      %829 = vmatpush.bf16.msra.mxu0 0
      %830 = vmatpush.bf16.msra.mxu0 0
      %831 = vmatpush.bf16.msra.mxu0 0
      %832 = vmatpush.bf16.msra.mxu0 0
      %833 = vmatpush.bf16.msra.mxu0 0
      %834 = vmatpush.bf16.msra.mxu0 0
      %835 = vmatpush.bf16.msra.mxu0 0
      %836 = vmatpush.bf16.msra.mxu0 %v827
      %837 = vmatmul.bf16.gmra.mxu0 %v824
      %v838 = vpop.f32.mrf.mxu0
      %v839 = vadd.f32 0.0, %v838
      %v840 = vpop.f32.mrf.mxu0
      %841 = vdwg.mxu0
      %v843 = vsel %vm485, %v725, 0
      %v846 = vsel %vm730, %v322, 0
      %848 = vmatpush.bf16.msra.mxu0 0
      %849 = vmatpush.bf16.msra.mxu0 0
      %850 = vmatpush.bf16.msra.mxu0 0
      %851 = vmatpush.bf16.msra.mxu0 0
      %852 = vmatpush.bf16.msra.mxu0 0
      %853 = vmatpush.bf16.msra.mxu0 0
      %854 = vmatpush.bf16.msra.mxu0 0
      %855 = vmatpush.bf16.msra.mxu0 %v846
      %856 = vmatmul.bf16.gmra.mxu0 %v843
      %v857 = vpop.f32.mrf.mxu0
      %v858 = vadd.f32 0.0, %v857
      %v859 = vpop.f32.mrf.mxu0
      %860 = vdwg.mxu0
      %v862 = vsel %vm485, %v726, 0
      %v865 = vsel %vm730, %v323, 0
      %867 = vmatpush.bf16.msra.mxu0 0
      %868 = vmatpush.bf16.msra.mxu0 0
      %869 = vmatpush.bf16.msra.mxu0 0
      %870 = vmatpush.bf16.msra.mxu0 0
      %871 = vmatpush.bf16.msra.mxu0 0
      %872 = vmatpush.bf16.msra.mxu0 0
      %873 = vmatpush.bf16.msra.mxu0 0
      %874 = vmatpush.bf16.msra.mxu0 %v865
      %875 = vmatmul.bf16.gmra.mxu0 %v862
      %v876 = vpop.f32.mrf.mxu0
      %v877 = vadd.f32 0.0, %v876
      %v878 = vpop.f32.mrf.mxu0
      %879 = vdwg.mxu0
      %v880 = vadd.f32 %v711, %v744
      %v881 = vadd.f32 %v712, %v763
      %v882 = vadd.f32 %v713, %v782
      %v883 = vadd.f32 %v714, %v801
      %v884 = vadd.f32 %v715, %v820
      %v885 = vadd.f32 %v716, %v839
      %v886 = vadd.f32 %v717, %v858
      %v887 = vadd.f32 %v718, %v877
      %888 = vst.msk [vmem:[#allocation4] sm:$0xff] %vm324, %v880
      %889 = vst.msk [vmem:[#allocation4 + $0x8] sm:$0xff] %vm324, %v881
      %890 = vst.msk [vmem:[#allocation4 + $0x10] sm:$0xff] %vm324, %v882
      %891 = vst.msk [vmem:[#allocation4 + $0x18] sm:$0xff] %vm324, %v883
      %892 = vst.msk [vmem:[#allocation4 + $0x20] sm:$0xff] %vm324, %v884
      %893 = vst.msk [vmem:[#allocation4 + $0x28] sm:$0xff] %vm324, %v885
      %894 = vst.msk [vmem:[#allocation4 + $0x30] sm:$0xff] %vm324, %v886
      %895 = vst.msk [vmem:[#allocation4 + $0x38] sm:$0xff] %vm324, %v887
      %896 = vst.msk [vmem:[#allocation2] sm:$0xff] %vm654, %v510
      %897 = vst.msk [vmem:[#allocation2 + $0x8] sm:$0xff] %vm654, %v511
      %898 = vst.msk [vmem:[#allocation2 + $0x10] sm:$0xff] %vm654, %v512
      %899 = vst.msk [vmem:[#allocation2 + $0x18] sm:$0xff] %vm654, %v513
      %900 = vst.msk [vmem:[#allocation2 + $0x20] sm:$0xff] %vm654, %v514
      %901 = vst.msk [vmem:[#allocation2 + $0x28] sm:$0xff] %vm654, %v515
      %902 = vst.msk [vmem:[#allocation2 + $0x30] sm:$0xff] %vm654, %v516
      %903 = vst.msk [vmem:[#allocation2 + $0x38] sm:$0xff] %vm654, %v517
      // Predicated region
      $region37: #{transformer_encoder_forward.7} parent=31 // pred_check
        %p904 = pneg %p270
      $region38: #{transformer_encoder_forward.7} parent=31 // pred_check_branch
        %906 = sbr.rel (%p904) target = $region40
      $region39: #{transformer_encoder_forward.7} parent=31 // pred_region
        %v907 = vld [vmem:[#allocation4] sm:$0xff]
        %v908 = vld [vmem:[#allocation4 + $0x8] sm:$0xff]
        %v909 = vld [vmem:[#allocation4 + $0x10] sm:$0xff]
        %v910 = vld [vmem:[#allocation4 + $0x18] sm:$0xff]
        %v911 = vld [vmem:[#allocation4 + $0x20] sm:$0xff]
        %v912 = vld [vmem:[#allocation4 + $0x28] sm:$0xff]
        %v913 = vld [vmem:[#allocation4 + $0x30] sm:$0xff]
        %v914 = vld [vmem:[#allocation4 + $0x38] sm:$0xff]
        %v915 = vld [vmem:[#allocation3] sm:$0xff]
        %v916 = vld [vmem:[#allocation3 + $0x8] sm:$0xff]
        %v917 = vld [vmem:[#allocation3 + $0x10] sm:$0xff]
        %v918 = vld [vmem:[#allocation3 + $0x18] sm:$0xff]
        %v919 = vld [vmem:[#allocation3 + $0x20] sm:$0xff]
        %v920 = vld [vmem:[#allocation3 + $0x28] sm:$0xff]
        %v921 = vld [vmem:[#allocation3 + $0x30] sm:$0xff]
        %v922 = vld [vmem:[#allocation3 + $0x38] sm:$0xff]
        %v923 = vrcp.pop %v915
        %v924 = vrcp.pop %v916
        %v925 = vrcp.pop %v917
        %v926 = vrcp.pop %v918
        %v927 = vrcp.pop %v919
        %v928 = vrcp.pop %v920
        %v929 = vrcp.pop %v921
        %v930 = vrcp.pop %v922
        %932 = vset.pattern.permute.xlu0 0
        %933 = vperm.xlu0 %932, %v923
        %v934 = vpop.permute.xlu0 %933
        %937 = vset.pattern.permute.xlu0 0
        %938 = vperm.xlu0 %937, %v924
        %v939 = vpop.permute.xlu0 %938
        %942 = vset.pattern.permute.xlu0 0
        %943 = vperm.xlu0 %942, %v925
        %v944 = vpop.permute.xlu0 %943
        %947 = vset.pattern.permute.xlu0 0
        %948 = vperm.xlu0 %947, %v926
        %v949 = vpop.permute.xlu0 %948
        %952 = vset.pattern.permute.xlu0 0
        %953 = vperm.xlu0 %952, %v927
        %v954 = vpop.permute.xlu0 %953
        %957 = vset.pattern.permute.xlu0 0
        %958 = vperm.xlu0 %957, %v928
        %v959 = vpop.permute.xlu0 %958
        %962 = vset.pattern.permute.xlu0 0
        %963 = vperm.xlu0 %962, %v929
        %v964 = vpop.permute.xlu0 %963
        %967 = vset.pattern.permute.xlu0 0
        %968 = vperm.xlu0 %967, %v930
        %v969 = vpop.permute.xlu0 %968
        %v971 = vmul.f32 %v907, %v934
        %v972 = vmul.f32 %v908, %v939
        %v973 = vmul.f32 %v909, %v944
        %v974 = vmul.f32 %v910, %v949
        %v975 = vmul.f32 %v911, %v954
        %v976 = vmul.f32 %v912, %v959
        %v977 = vmul.f32 %v913, %v964
        %v978 = vmul.f32 %v914, %v969
        %980 = vrot.lane.b32.xlu0 %v972, 4
        %v981 = vpop.permute.xlu0 %980
        %984 = vrot.lane.b32.xlu0 %v973, 8
        %v985 = vpop.permute.xlu0 %984
        %988 = vrot.lane.b32.xlu0 %v974, 12
        %v989 = vpop.permute.xlu0 %988
        %992 = vrot.lane.b32.xlu0 %v975, 16
        %v993 = vpop.permute.xlu0 %992
        %996 = vrot.lane.b32.xlu0 %v976, 20
        %v997 = vpop.permute.xlu0 %996
        %1000 = vrot.lane.b32.xlu0 %v977, 24
        %v1001 = vpop.permute.xlu0 %1000
        %1004 = vrot.lane.b32.xlu0 %v978, 28
        %v1005 = vpop.permute.xlu0 %1004
        %v1007 = vsel %vm324, %v971, %v981
        %v1008 = vsel %vm485, %v1007, %v985
        %vm1009 = vcmask 97280
        %v1010 = vsel %vm1009, %v1008, %v989
        %vm1011 = vcmask 130048
        %v1012 = vsel %vm1011, %v1010, %v993
        %vm1013 = vcmask 162816
        %v1014 = vsel %vm1013, %v1012, %v997
        %vm1015 = vcmask 195584
        %v1016 = vsel %vm1015, %v1014, %v1001
        %vm1017 = vcmask 228352
        %v1018 = vsel %vm1017, %v1016, %v1005
        %v1019 = vpack.c.bf16 %v1018, %v1018
        %vm1020 = vcmask 257024
        %1021 = vst.msk [vmem:[%s268] sm:$0xf] %vm1020, %v1019
      $region40: #{transformer_encoder_forward.7} parent=31 // pred_fallthru
        _
      %p1022 = scmp.lt.s32.totalorder %s19, 1
      %s1023 = scalar_select %p1022, %s19, 1
      %p1024 = scmp.lt.s32.totalorder %s20, 0
      %s1025 = scalar_select %p1024, %s20, 0
      %s1026 = sadd.s32 %s1025, %s1023
      %s1027 = smul.addr %s1026, 4
      %s1028 = scalar_lea.vmem %s3, %s1027
      // Predicated region
      $region41: #{transformer_encoder_forward.7} parent=31 // pred_check
        %p1029 = pneg %p137
      $region42: #{transformer_encoder_forward.7} parent=31 // pred_check_branch
        %1031 = sbr.rel (%p1029) target = $region44
      $region43: #{transformer_encoder_forward.7} parent=31 // pred_region
        _
      $region44: #{transformer_encoder_forward.7} parent=31 // pred_fallthru
        _
    $region32: #{transformer_encoder_forward.7} parent=5 // pred_fallthru
      _
    %p1032 = scmp.le.s32.totalorder 2, %s9
    // Predicated region
    $region45: #{transformer_encoder_forward.7} parent=5 // pred_check
      %p1033 = pneg %p1032
    $region46: #{transformer_encoder_forward.7} parent=5 // pred_check_branch
      %1035 = sbr.rel (%p1033) target = $region48
    $region47: #{transformer_encoder_forward.7} parent=5 // pred_region
      %s1036 = ssub.s32 %s9, 2
      // Predicated region
      $region49: #{transformer_encoder_forward.7} parent=47 // pred_check
        %p1037 = pneg %p143
      $region50: #{transformer_encoder_forward.7} parent=47 // pred_check_branch
        %1039 = sbr.rel (%p1037) target = $region52
      $region51: #{transformer_encoder_forward.7} parent=47 // pred_region
        %p1040 = scmp.lt.s32.totalorder %s22, 1
        %s1041 = scalar_select %p1040, %s22, 1
        %p1042 = scmp.lt.s32.totalorder %s23, 0
        %s1043 = scalar_select %p1042, %s23, 0
        %s1044 = sadd.s32 %s1043, %s1041
        %s1045 = smul.addr %s1044, 4
        %s1046 = scalar_lea.vmem %s3, %s1045
      $region52: #{transformer_encoder_forward.7} parent=47 // pred_fallthru
        _
    $region48: #{transformer_encoder_forward.7} parent=5 // pred_fallthru
      _
  $region6: #{transformer_encoder_forward.7} parent=0 // loop_footer
    %s13 = sadd.s32 1, %s9
  $region7: #{transformer_encoder_forward.7} parent=0 // loop_footer_branch
    %8 = sbr.rel target = $region3
  $region8: #{transformer_encoder_forward.7} parent=0 // loop_exit
    _

// kernel: transformer_encoder_forward.6
$region0: #{transformer_encoder_forward.6}
  #allocation0 [shape = 'u32[]', space=smem, size = 0x4, offset = 0x4, fixed_abs, tag = 'smem constant byte address 0x4 - core index']
  #allocation1 [shape = 'u32[72,128]{1,0:T(1,128)}', space=vmem, size = 0x9000, scoped, tag = 'internal scratch']
  %s0 = inlined_call_operand.vmem [shape: bf16[2,8,32], index: 0, kind: input, shape index: {}]
  %s1 = inlined_call_operand.vmem [shape: bf16[32,2048], index: 1, kind: input, shape index: {}]
  %s2 = inlined_call_operand.vmem [shape: f32[1,2048], index: 2, kind: input, shape index: {}]
  %s3 = inlined_call_operand.vmem [shape: bf16[2048,32], index: 3, kind: input, shape index: {}]
  %s4 = inlined_call_operand.vmem [shape: f32[1,32], index: 4, kind: input, shape index: {}]
  %s5 = inlined_call_operand.vmem [shape: bf16[32,96], index: 5, kind: input, shape index: {}]
  %s6 = inlined_call_operand.vmem [shape: f32[1,96], index: 6, kind: input, shape index: {}]
  %s7 = inlined_call_operand.vmem [shape: f32[2,8,32], index: 7, kind: output, shape index: {0}]
  %s8 = inlined_call_operand.vmem [shape: bf16[2,8,8,4], index: 8, kind: output, shape index: {1}]
  %s9 = inlined_call_operand.vmem [shape: bf16[2,8,8,4], index: 9, kind: output, shape index: {2}]
  %s10 = inlined_call_operand.vmem [shape: bf16[2,8,8,4], index: 10, kind: output, shape index: {3}]
  %11 = xla_tuple %s7, %s8, %s9, %s10
  %s12 = sld [smem:[#allocation0]]
  $region85: #{transformer_encoder_forward.6} parent=0
    _
  %s14 = ssub.s32 1, %s12
  %s15 = scalar_select 0, %s14, %s12
  loop: start=0, step=1, limit=4
  $region2: #{transformer_encoder_forward.6} parent=0 // loop_pre_header
    _
  $region3: #{transformer_encoder_forward.6} parent=0 // loop_header
    %s17 = sphi 0, %s21
    %p18 = scmp.ge.s32.totalorder %s17, 4
    %s24 = sphi 0, %s36
    %s25 = sphi 0, %s32
    %s26 = sphi 0, %s24
    %s27 = sphi 0, %s25
    %s28 = sphi 0, %s26
    %s29 = sphi 0, %s27
    %s41 = sphi 0, %s43
    %s44 = sphi 0, %s41
    %s45 = sphi 0, %s44
    %s61 = sphi 0, %s45
    %s65 = sphi 0, %s65
    %s67 = sphi 0, %s65
    %s68 = sphi 0, %s67
    %s82 = sphi 0, %s68
    %s86 = sphi 0, %s86
    %s88 = sphi 0, %s86
    %s89 = sphi 0, %s88
    %s103 = sphi 0, %s89
    %s107 = sphi 0, %s107
    %s109 = sphi 0, %s107
    %s110 = sphi 0, %s109
    %s124 = sphi 0, %s110
    %s128 = sphi 0, %s128
    %s130 = sphi 0, %s128
    %s131 = sphi 0, %s130
    %s145 = sphi 0, %s131
    %s149 = sphi 0, %s149
    %s151 = sphi 0, %s149
    %s152 = sphi 0, %s151
    %s166 = sphi 0, %s152
    %s170 = sphi 0, %s170
    %s172 = sphi 0, %s170
    %s173 = sphi 0, %s172
    %s187 = sphi 0, %s173
    %s195 = sphi 0, %s197
    %s198 = sphi 0, %s195
    %s199 = sphi 0, %s198
    %s215 = sphi 0, %s199
    %s223 = sphi 0, %s225
    %s226 = sphi 0, %s223
    %s227 = sphi 0, %s226
    %s243 = sphi 0, %s227
    %s251 = sphi 0, %s253
    %s254 = sphi 0, %s251
    %s255 = sphi 0, %s254
    %s271 = sphi 0, %s255
    %s279 = sphi 0, %s281
    %s282 = sphi 0, %s279
    %s283 = sphi 0, %s282
    %s299 = sphi 0, %s283
  $region4: #{transformer_encoder_forward.6} parent=0 // loop_header_branch
    %20 = sbr.rel (%p18) target = $region8
  $region5: #{transformer_encoder_forward.6} parent=0 // loop_body
    %s22 = ssub.s32 %s17, 1
    %s23 = ssub.s32 %s17, 2
    %s30 = sadd.s32 1, %s25
    %p31 = scmp.ge.s32.totalorder %s30, 1
    %s32 = scalar_select %p31, 0, %s30
    %s33 = sadd.s32 1, %s24
    %s34 = scalar_select %p31, %s33, %s24
    %p35 = scmp.ge.s32.totalorder %s34, 2
    %s36 = scalar_select %p35, 0, %s34
    %s37 = ssub.s32 %s24, %s36
    %s38 = ssub.s32 %s25, %s32
    %s39 = sor.u32 %s37, %s38
    %p40 = scmp.eq.s32.totalorder %s39, 0
    %s42 = sadd.s32 %s41, 1
    %s43 = scalar_select %p40, %s41, %s42
    %p46 = pneg %p40
    %p47 = scmp.eq.s32.totalorder %s17, 1
    %p48 = por %p46, %p47
    %p49 = scmp.ne.s32.totalorder %s41, %s44
    %p50 = scmp.eq.s32.totalorder %s17, 0
    %p51 = por %p49, %p50
    %p52 = scmp.ne.s32.totalorder %s41, %s44
    %p53 = scmp.eq.s32.totalorder %s22, 1
    %p54 = por %p52, %p53
    %p55 = scmp.ne.s32.totalorder %s44, %s45
    %p56 = scmp.eq.s32.totalorder %s22, 0
    %p57 = por %p55, %p56
    %p58 = scmp.ne.s32.totalorder %s44, %s45
    %p59 = scmp.eq.s32.totalorder %s23, 1
    %p60 = por %p58, %p59
    %p62 = scmp.ne.s32.totalorder %s45, %s61
    %p63 = scmp.eq.s32.totalorder %s23, 0
    %p64 = por %p62, %p63
    %s66 = sadd.s32 %s65, 1
    %p69 = scmp.eq.s32.totalorder %s17, 1
    %p70 = scmp.ne.s32.totalorder %s65, %s67
    %p71 = scmp.eq.s32.totalorder %s17, 0
    %p72 = por %p70, %p71
    %p73 = scmp.ne.s32.totalorder %s65, %s67
    %p74 = scmp.eq.s32.totalorder %s22, 1
    %p75 = por %p73, %p74
    %p76 = scmp.ne.s32.totalorder %s67, %s68
    %p77 = scmp.eq.s32.totalorder %s22, 0
    %p78 = por %p76, %p77
    %p79 = scmp.ne.s32.totalorder %s67, %s68
    %p80 = scmp.eq.s32.totalorder %s23, 1
    %p81 = por %p79, %p80
    %p83 = scmp.ne.s32.totalorder %s68, %s82
    %p84 = scmp.eq.s32.totalorder %s23, 0
    %p85 = por %p83, %p84
    %s87 = sadd.s32 %s86, 1
    %p90 = scmp.eq.s32.totalorder %s17, 1
    %p91 = scmp.ne.s32.totalorder %s86, %s88
    %p92 = scmp.eq.s32.totalorder %s17, 0
    %p93 = por %p91, %p92
    %p94 = scmp.ne.s32.totalorder %s86, %s88
    %p95 = scmp.eq.s32.totalorder %s22, 1
    %p96 = por %p94, %p95
    %p97 = scmp.ne.s32.totalorder %s88, %s89
    %p98 = scmp.eq.s32.totalorder %s22, 0
    %p99 = por %p97, %p98
    %p100 = scmp.ne.s32.totalorder %s88, %s89
    %p101 = scmp.eq.s32.totalorder %s23, 1
    %p102 = por %p100, %p101
    %p104 = scmp.ne.s32.totalorder %s89, %s103
    %p105 = scmp.eq.s32.totalorder %s23, 0
    %p106 = por %p104, %p105
    %s108 = sadd.s32 %s107, 1
    %p111 = scmp.eq.s32.totalorder %s17, 1
    %p112 = scmp.ne.s32.totalorder %s107, %s109
    %p113 = scmp.eq.s32.totalorder %s17, 0
    %p114 = por %p112, %p113
    %p115 = scmp.ne.s32.totalorder %s107, %s109
    %p116 = scmp.eq.s32.totalorder %s22, 1
    %p117 = por %p115, %p116
    %p118 = scmp.ne.s32.totalorder %s109, %s110
    %p119 = scmp.eq.s32.totalorder %s22, 0
    %p120 = por %p118, %p119
    %p121 = scmp.ne.s32.totalorder %s109, %s110
    %p122 = scmp.eq.s32.totalorder %s23, 1
    %p123 = por %p121, %p122
    %p125 = scmp.ne.s32.totalorder %s110, %s124
    %p126 = scmp.eq.s32.totalorder %s23, 0
    %p127 = por %p125, %p126
    %s129 = sadd.s32 %s128, 1
    %p132 = scmp.eq.s32.totalorder %s17, 1
    %p133 = scmp.ne.s32.totalorder %s128, %s130
    %p134 = scmp.eq.s32.totalorder %s17, 0
    %p135 = por %p133, %p134
    %p136 = scmp.ne.s32.totalorder %s128, %s130
    %p137 = scmp.eq.s32.totalorder %s22, 1
    %p138 = por %p136, %p137
    %p139 = scmp.ne.s32.totalorder %s130, %s131
    %p140 = scmp.eq.s32.totalorder %s22, 0
    %p141 = por %p139, %p140
    %p142 = scmp.ne.s32.totalorder %s130, %s131
    %p143 = scmp.eq.s32.totalorder %s23, 1
    %p144 = por %p142, %p143
    %p146 = scmp.ne.s32.totalorder %s131, %s145
    %p147 = scmp.eq.s32.totalorder %s23, 0
    %p148 = por %p146, %p147
    %s150 = sadd.s32 %s149, 1
    %p153 = scmp.eq.s32.totalorder %s17, 1
    %p154 = scmp.ne.s32.totalorder %s149, %s151
    %p155 = scmp.eq.s32.totalorder %s17, 0
    %p156 = por %p154, %p155
    %p157 = scmp.ne.s32.totalorder %s149, %s151
    %p158 = scmp.eq.s32.totalorder %s22, 1
    %p159 = por %p157, %p158
    %p160 = scmp.ne.s32.totalorder %s151, %s152
    %p161 = scmp.eq.s32.totalorder %s22, 0
    %p162 = por %p160, %p161
    %p163 = scmp.ne.s32.totalorder %s151, %s152
    %p164 = scmp.eq.s32.totalorder %s23, 1
    %p165 = por %p163, %p164
    %p167 = scmp.ne.s32.totalorder %s152, %s166
    %p168 = scmp.eq.s32.totalorder %s23, 0
    %p169 = por %p167, %p168
    %s171 = sadd.s32 %s170, 1
    %p174 = scmp.eq.s32.totalorder %s17, 1
    %p175 = scmp.ne.s32.totalorder %s170, %s172
    %p176 = scmp.eq.s32.totalorder %s17, 0
    %p177 = por %p175, %p176
    %p178 = scmp.ne.s32.totalorder %s170, %s172
    %p179 = scmp.eq.s32.totalorder %s22, 1
    %p180 = por %p178, %p179
    %p181 = scmp.ne.s32.totalorder %s172, %s173
    %p182 = scmp.eq.s32.totalorder %s22, 0
    %p183 = por %p181, %p182
    %p184 = scmp.ne.s32.totalorder %s172, %s173
    %p185 = scmp.eq.s32.totalorder %s23, 1
    %p186 = por %p184, %p185
    %p188 = scmp.ne.s32.totalorder %s173, %s187
    %p189 = scmp.eq.s32.totalorder %s23, 0
    %p190 = por %p188, %p189
    %s191 = ssub.s32 %s24, %s36
    %s192 = ssub.s32 %s25, %s32
    %s193 = sor.u32 %s191, %s192
    %p194 = scmp.eq.s32.totalorder %s193, 0
    %s196 = sadd.s32 %s195, 1
    %s197 = scalar_select %p194, %s195, %s196
    %p200 = pneg %p194
    %p201 = scmp.eq.s32.totalorder %s17, 1
    %p202 = por %p200, %p201
    %p203 = scmp.ne.s32.totalorder %s195, %s198
    %p204 = scmp.eq.s32.totalorder %s17, 0
    %p205 = por %p203, %p204
    %p206 = scmp.ne.s32.totalorder %s195, %s198
    %p207 = scmp.eq.s32.totalorder %s22, 1
    %p208 = por %p206, %p207
    %p209 = scmp.ne.s32.totalorder %s198, %s199
    %p210 = scmp.eq.s32.totalorder %s22, 0
    %p211 = por %p209, %p210
    %p212 = scmp.ne.s32.totalorder %s198, %s199
    %p213 = scmp.eq.s32.totalorder %s23, 1
    %p214 = por %p212, %p213
    %p216 = scmp.ne.s32.totalorder %s199, %s215
    %p217 = scmp.eq.s32.totalorder %s23, 0
    %p218 = por %p216, %p217
    %s219 = ssub.s32 %s24, %s36
    %s220 = ssub.s32 %s25, %s32
    %s221 = sor.u32 %s219, %s220
    %p222 = scmp.eq.s32.totalorder %s221, 0
    %s224 = sadd.s32 %s223, 1
    %s225 = scalar_select %p222, %s223, %s224
    %p228 = pneg %p222
    %p229 = scmp.eq.s32.totalorder %s17, 1
    %p230 = por %p228, %p229
    %p231 = scmp.ne.s32.totalorder %s223, %s226
    %p232 = scmp.eq.s32.totalorder %s17, 0
    %p233 = por %p231, %p232
    %p234 = scmp.ne.s32.totalorder %s223, %s226
    %p235 = scmp.eq.s32.totalorder %s22, 1
    %p236 = por %p234, %p235
    %p237 = scmp.ne.s32.totalorder %s226, %s227
    %p238 = scmp.eq.s32.totalorder %s22, 0
    %p239 = por %p237, %p238
    %p240 = scmp.ne.s32.totalorder %s226, %s227
    %p241 = scmp.eq.s32.totalorder %s23, 1
    %p242 = por %p240, %p241
    %p244 = scmp.ne.s32.totalorder %s227, %s243
    %p245 = scmp.eq.s32.totalorder %s23, 0
    %p246 = por %p244, %p245
    %s247 = ssub.s32 %s24, %s36
    %s248 = ssub.s32 %s25, %s32
    %s249 = sor.u32 %s247, %s248
    %p250 = scmp.eq.s32.totalorder %s249, 0
    %s252 = sadd.s32 %s251, 1
    %s253 = scalar_select %p250, %s251, %s252
    %p256 = pneg %p250
    %p257 = scmp.eq.s32.totalorder %s17, 1
    %p258 = por %p256, %p257
    %p259 = scmp.ne.s32.totalorder %s251, %s254
    %p260 = scmp.eq.s32.totalorder %s17, 0
    %p261 = por %p259, %p260
    %p262 = scmp.ne.s32.totalorder %s251, %s254
    %p263 = scmp.eq.s32.totalorder %s22, 1
    %p264 = por %p262, %p263
    %p265 = scmp.ne.s32.totalorder %s254, %s255
    %p266 = scmp.eq.s32.totalorder %s22, 0
    %p267 = por %p265, %p266
    %p268 = scmp.ne.s32.totalorder %s254, %s255
    %p269 = scmp.eq.s32.totalorder %s23, 1
    %p270 = por %p268, %p269
    %p272 = scmp.ne.s32.totalorder %s255, %s271
    %p273 = scmp.eq.s32.totalorder %s23, 0
    %p274 = por %p272, %p273
    %s275 = ssub.s32 %s24, %s36
    %s276 = ssub.s32 %s25, %s32
    %s277 = sor.u32 %s275, %s276
    %p278 = scmp.eq.s32.totalorder %s277, 0
    %s280 = sadd.s32 %s279, 1
    %s281 = scalar_select %p278, %s279, %s280
    %p284 = pneg %p278
    %p285 = scmp.eq.s32.totalorder %s17, 1
    %p286 = por %p284, %p285
    %p287 = scmp.ne.s32.totalorder %s279, %s282
    %p288 = scmp.eq.s32.totalorder %s17, 0
    %p289 = por %p287, %p288
    %p290 = scmp.ne.s32.totalorder %s279, %s282
    %p291 = scmp.eq.s32.totalorder %s22, 1
    %p292 = por %p290, %p291
    %p293 = scmp.ne.s32.totalorder %s282, %s283
    %p294 = scmp.eq.s32.totalorder %s22, 0
    %p295 = por %p293, %p294
    %p296 = scmp.ne.s32.totalorder %s282, %s283
    %p297 = scmp.eq.s32.totalorder %s23, 1
    %p298 = por %p296, %p297
    %p300 = scmp.ne.s32.totalorder %s283, %s299
    %p301 = scmp.eq.s32.totalorder %s23, 0
    %p302 = por %p300, %p301
    %p303 = scmp.le.s32.totalorder 1, %s17
    %p304 = scmp.lt.s32.totalorder %s17, 3
    %p305 = pnand %p303, %p304
    %p306 = pneg %p305
    // Predicated region
    $region9: #{transformer_encoder_forward.6} parent=5 // pred_check
      _
    $region10: #{transformer_encoder_forward.6} parent=5 // pred_check_branch
      %308 = sbr.rel (%p305) target = $region12
    $region11: #{transformer_encoder_forward.6} parent=5 // pred_region
      %s309 = ssub.s32 %s17, 1
      // Predicated region
      $region13: #{transformer_encoder_forward.6} parent=11 // pred_check
        %p310 = pneg %p78
      $region14: #{transformer_encoder_forward.6} parent=11 // pred_check_branch
        %312 = sbr.rel (%p310) target = $region16
      $region15: #{transformer_encoder_forward.6} parent=11 // pred_region
        _
      $region16: #{transformer_encoder_forward.6} parent=11 // pred_fallthru
        _
      // Predicated region
      $region17: #{transformer_encoder_forward.6} parent=11 // pred_check
        %p313 = pneg %p99
      $region18: #{transformer_encoder_forward.6} parent=11 // pred_check_branch
        %315 = sbr.rel (%p313) target = $region20
      $region19: #{transformer_encoder_forward.6} parent=11 // pred_region
        _
      $region20: #{transformer_encoder_forward.6} parent=11 // pred_fallthru
        _
      // Predicated region
      $region21: #{transformer_encoder_forward.6} parent=11 // pred_check
        %p316 = pneg %p120
      $region22: #{transformer_encoder_forward.6} parent=11 // pred_check_branch
        %318 = sbr.rel (%p316) target = $region24
      $region23: #{transformer_encoder_forward.6} parent=11 // pred_region
        _
      $region24: #{transformer_encoder_forward.6} parent=11 // pred_fallthru
        _
      // Predicated region
      $region25: #{transformer_encoder_forward.6} parent=11 // pred_check
        %p319 = pneg %p141
      $region26: #{transformer_encoder_forward.6} parent=11 // pred_check_branch
        %321 = sbr.rel (%p319) target = $region28
      $region27: #{transformer_encoder_forward.6} parent=11 // pred_region
        _
      $region28: #{transformer_encoder_forward.6} parent=11 // pred_fallthru
        _
      // Predicated region
      $region29: #{transformer_encoder_forward.6} parent=11 // pred_check
        %p322 = pneg %p162
      $region30: #{transformer_encoder_forward.6} parent=11 // pred_check_branch
        %324 = sbr.rel (%p322) target = $region32
      $region31: #{transformer_encoder_forward.6} parent=11 // pred_region
        _
      $region32: #{transformer_encoder_forward.6} parent=11 // pred_fallthru
        _
      // Predicated region
      $region33: #{transformer_encoder_forward.6} parent=11 // pred_check
        %p325 = pneg %p183
      $region34: #{transformer_encoder_forward.6} parent=11 // pred_check_branch
        %327 = sbr.rel (%p325) target = $region36
      $region35: #{transformer_encoder_forward.6} parent=11 // pred_region
        _
      $region36: #{transformer_encoder_forward.6} parent=11 // pred_fallthru
        _
    $region12: #{transformer_encoder_forward.6} parent=5 // pred_fallthru
      _
    %p328 = scmp.lt.s32.totalorder %s17, 2
    // Predicated region
    $region37: #{transformer_encoder_forward.6} parent=5 // pred_check
      %p329 = pneg %p328
    $region38: #{transformer_encoder_forward.6} parent=5 // pred_check_branch
      %331 = sbr.rel (%p329) target = $region40
    $region39: #{transformer_encoder_forward.6} parent=5 // pred_region
      // Predicated region
      $region41: #{transformer_encoder_forward.6} parent=39 // pred_check
        %p332 = pneg %p51
      $region42: #{transformer_encoder_forward.6} parent=39 // pred_check_branch
        %334 = sbr.rel (%p332) target = $region44
      $region43: #{transformer_encoder_forward.6} parent=39 // pred_region
        %p335 = scmp.lt.s32.totalorder %s24, 1
        %s336 = scalar_select %p335, %s24, 1
        %p337 = scmp.lt.s32.totalorder %s25, 0
        %s338 = scalar_select %p337, %s25, 0
        %s339 = sadd.s32 %s338, %s336
        %s340 = smul.addr %s339, 4
        %s341 = scalar_lea.vmem %s0, %s340
      $region44: #{transformer_encoder_forward.6} parent=39 // pred_fallthru
        _
    $region40: #{transformer_encoder_forward.6} parent=5 // pred_fallthru
      _
    %p342 = scmp.le.s32.totalorder 1, %s17
    %p343 = scmp.lt.s32.totalorder %s17, 3
    %p344 = pnand %p342, %p343
    %p345 = pneg %p344
    // Predicated region
    $region45: #{transformer_encoder_forward.6} parent=5 // pred_check
      _
    $region46: #{transformer_encoder_forward.6} parent=5 // pred_check_branch
      %347 = sbr.rel (%p344) target = $region48
    $region47: #{transformer_encoder_forward.6} parent=5 // pred_region
      %s348 = ssub.s32 %s17, 1
      %p349 = scmp.lt.s32.totalorder %s26, 1
      %s350 = scalar_select %p349, %s26, 1
      %p351 = scmp.lt.s32.totalorder %s27, 0
      %s352 = scalar_select %p351, %s27, 0
      %s353 = sadd.s32 %s352, %s350
      %s354 = smul.addr %s353, 4
      %s355 = scalar_lea.vmem %s0, %s354
      %p356 = pneg %p57
      %p357 = pneg %p54
      %p358 = pneg %p78
      %p359 = pneg %p75
      %p360 = pneg %p99
      %p361 = pneg %p96
      %p362 = pneg %p120
      %p363 = pneg %p117
      %p364 = pneg %p141
      %p365 = pneg %p138
      %p366 = pneg %p162
      %p367 = pneg %p159
      %p368 = pneg %p183
      %p369 = pneg %p180
      %p370 = pneg %p211
      %p371 = pneg %p208
      %p372 = scmp.lt.s32.totalorder %s26, 1
      %s373 = scalar_select %p372, %s26, 1
      %p374 = scmp.lt.s32.totalorder %s27, 0
      %s375 = scalar_select %p374, %s27, 0
      %s376 = sadd.s32 %s375, %s373
      %s377 = smul.addr %s376, 8
      %s378 = scalar_lea.vmem %s7, %s377
      %p379 = pneg %p239
      %p380 = pneg %p236
      %p381 = scmp.lt.s32.totalorder %s26, 1
      %s382 = scalar_select %p381, %s26, 1
      %p383 = scmp.lt.s32.totalorder %s27, 0
      %s384 = scalar_select %p383, %s27, 0
      %s385 = smul.addr %s382, 8
      %s386 = sadd.s32 %s384, %s385
      %s387 = smul.addr %s386, 4
      %s388 = scalar_lea.vmem %s8, %s387
      %p389 = pneg %p267
      %p390 = pneg %p264
      %p391 = scmp.lt.s32.totalorder %s26, 1
      %s392 = scalar_select %p391, %s26, 1
      %p393 = scmp.lt.s32.totalorder %s27, 0
      %s394 = scalar_select %p393, %s27, 0
      %s395 = smul.addr %s392, 8
      %s396 = sadd.s32 %s394, %s395
      %s397 = smul.addr %s396, 4
      %s398 = scalar_lea.vmem %s9, %s397
      %p399 = pneg %p295
      %p400 = pneg %p292
      %p401 = scmp.lt.s32.totalorder %s26, 1
      %s402 = scalar_select %p401, %s26, 1
      %p403 = scmp.lt.s32.totalorder %s27, 0
      %s404 = scalar_select %p403, %s27, 0
      %s405 = smul.addr %s402, 8
      %s406 = sadd.s32 %s404, %s405
      %s407 = smul.addr %s406, 4
      %s408 = scalar_lea.vmem %s10, %s407
      %p409 = scmp.lt.s32.totalorder %s26, 1
      %s410 = scalar_select %p409, %s26, 1
      %p411 = scmp.lt.s32.totalorder %s27, 0
      %s412 = scalar_select %p411, %s27, 0
      %s413 = sadd.s32 %s412, %s410
      %s414 = smul.addr %s413, 4
      %s415 = scalar_lea.vmem %s0, %s414
      %p416 = scmp.lt.s32.totalorder %s26, 1
      %s417 = scalar_select %p416, %s26, 1
      %p418 = scmp.lt.s32.totalorder %s27, 0
      %s419 = scalar_select %p418, %s27, 0
      %s420 = sadd.s32 %s419, %s417
      %s421 = smul.addr %s420, 8
      %s422 = scalar_lea.vmem %s7, %s421
      %p423 = scmp.lt.s32.totalorder %s26, 1
      %s424 = scalar_select %p423, %s26, 1
      %p425 = scmp.lt.s32.totalorder %s27, 0
      %s426 = scalar_select %p425, %s27, 0
      %s427 = smul.addr %s424, 8
      %s428 = sadd.s32 %s426, %s427
      %s429 = smul.addr %s428, 4
      %s430 = scalar_lea.vmem %s8, %s429
      %p431 = scmp.lt.s32.totalorder %s26, 1
      %s432 = scalar_select %p431, %s26, 1
      %p433 = scmp.lt.s32.totalorder %s27, 0
      %s434 = scalar_select %p433, %s27, 0
      %s435 = smul.addr %s432, 8
      %s436 = sadd.s32 %s434, %s435
      %s437 = smul.addr %s436, 4
      %s438 = scalar_lea.vmem %s9, %s437
      %p439 = scmp.lt.s32.totalorder %s26, 1
      %s440 = scalar_select %p439, %s26, 1
      %p441 = scmp.lt.s32.totalorder %s27, 0
      %s442 = scalar_select %p441, %s27, 0
      %s443 = smul.addr %s440, 8
      %s444 = sadd.s32 %s442, %s443
      %s445 = smul.addr %s444, 4
      %s446 = scalar_lea.vmem %s10, %s445
      %v448 = vld [vmem:[%s415] sm:$0xf]
      %v449 = vld [vmem:[%s1] sm:$0xff]
      %v450 = vld [vmem:[%s1 + $0x8] sm:$0xff]
      %v451 = vld [vmem:[%s1 + $0x10] sm:$0xff]
      %v452 = vld [vmem:[%s1 + $0x18] sm:$0xff]
      %v453 = vld [vmem:[%s1 + $0x20] sm:$0xff]
      %v454 = vld [vmem:[%s1 + $0x28] sm:$0xff]
      %v455 = vld [vmem:[%s1 + $0x30] sm:$0xff]
      %v456 = vld [vmem:[%s1 + $0x38] sm:$0xff]
      %v457 = vld [vmem:[%s1 + $0x40] sm:$0xff]
      %v458 = vld [vmem:[%s1 + $0x48] sm:$0xff]
      %v459 = vld [vmem:[%s1 + $0x50] sm:$0xff]
      %v460 = vld [vmem:[%s1 + $0x58] sm:$0xff]
      %v461 = vld [vmem:[%s1 + $0x60] sm:$0xff]
      %v462 = vld [vmem:[%s1 + $0x68] sm:$0xff]
      %v463 = vld [vmem:[%s1 + $0x70] sm:$0xff]
      %v464 = vld [vmem:[%s1 + $0x78] sm:$0xff]
      %v465 = vld [vmem:[%s1 + $0x80] sm:$0xff]
      %v466 = vld [vmem:[%s1 + $0x88] sm:$0xff]
      %v467 = vld [vmem:[%s1 + $0x90] sm:$0xff]
      %v468 = vld [vmem:[%s1 + $0x98] sm:$0xff]
      %v469 = vld [vmem:[%s1 + $0xa0] sm:$0xff]
      %v470 = vld [vmem:[%s1 + $0xa8] sm:$0xff]
      %v471 = vld [vmem:[%s1 + $0xb0] sm:$0xff]
      %v472 = vld [vmem:[%s1 + $0xb8] sm:$0xff]
      %v473 = vld [vmem:[%s1 + $0xc0] sm:$0xff]
      %v474 = vld [vmem:[%s1 + $0xc8] sm:$0xff]
      %v475 = vld [vmem:[%s1 + $0xd0] sm:$0xff]
      %v476 = vld [vmem:[%s1 + $0xd8] sm:$0xff]
      %v477 = vld [vmem:[%s1 + $0xe0] sm:$0xff]
      %v478 = vld [vmem:[%s1 + $0xe8] sm:$0xff]
      %v479 = vld [vmem:[%s1 + $0xf0] sm:$0xff]
      %v480 = vld [vmem:[%s1 + $0xf8] sm:$0xff]
      %v481 = vld [vmem:[%s2] sm:$0xff]
      %v482 = vld [vmem:[%s2 + $0x8] sm:$0xff]
      %v485 = vperm.slane %v481, 0
      %v486 = vperm.slane %v481, 1
      %v487 = vperm.slane %v481, 2
      %v488 = vperm.slane %v481, 3
      %v489 = vperm.slane %v481, 4
      %v490 = vperm.slane %v481, 5
      %v491 = vperm.slane %v481, 6
      %v492 = vperm.slane %v481, 7
      %v493 = vperm.slane %v482, 0
      %v494 = vperm.slane %v482, 1
      %v495 = vperm.slane %v482, 2
      %v496 = vperm.slane %v482, 3
      %v497 = vperm.slane %v482, 4
      %v498 = vperm.slane %v482, 5
      %v499 = vperm.slane %v482, 6
      %v500 = vperm.slane %v482, 7
      %v549 = vunpack.c.l.b16 %v449
      %v550 = vunpack.c.h.b16 %v449
      %v551 = vunpack.c.l.b16 %v450
      %v552 = vunpack.c.h.b16 %v450
      %v553 = vunpack.c.l.b16 %v451
      %v554 = vunpack.c.h.b16 %v451
      %v555 = vunpack.c.l.b16 %v452
      %v556 = vunpack.c.h.b16 %v452
      %v557 = vunpack.c.l.b16 %v453
      %v558 = vunpack.c.h.b16 %v453
      %v559 = vunpack.c.l.b16 %v454
      %v560 = vunpack.c.h.b16 %v454
      %v561 = vunpack.c.l.b16 %v455
      %v562 = vunpack.c.h.b16 %v455
      %v563 = vunpack.c.l.b16 %v456
      %v564 = vunpack.c.h.b16 %v456
      %v565 = vunpack.c.l.b16 %v457
      %v566 = vunpack.c.h.b16 %v457
      %v567 = vunpack.c.l.b16 %v458
      %v568 = vunpack.c.h.b16 %v458
      %v569 = vunpack.c.l.b16 %v459
      %v570 = vunpack.c.h.b16 %v459
      %v571 = vunpack.c.l.b16 %v460
      %v572 = vunpack.c.h.b16 %v460
      %v573 = vunpack.c.l.b16 %v461
      %v574 = vunpack.c.h.b16 %v461
      %v575 = vunpack.c.l.b16 %v462
      %v576 = vunpack.c.h.b16 %v462
      %v577 = vunpack.c.l.b16 %v463
      %v578 = vunpack.c.h.b16 %v463
      %v579 = vunpack.c.l.b16 %v464
      %v580 = vunpack.c.h.b16 %v464
      %v581 = vunpack.c.l.b16 %v465
      %v582 = vunpack.c.h.b16 %v465
      %v583 = vunpack.c.l.b16 %v466
      %v584 = vunpack.c.h.b16 %v466
      %v585 = vunpack.c.l.b16 %v467
      %v586 = vunpack.c.h.b16 %v467
      %v587 = vunpack.c.l.b16 %v468
      %v588 = vunpack.c.h.b16 %v468
      %v589 = vunpack.c.l.b16 %v469
      %v590 = vunpack.c.h.b16 %v469
      %v591 = vunpack.c.l.b16 %v470
      %v592 = vunpack.c.h.b16 %v470
      %v593 = vunpack.c.l.b16 %v471
      %v594 = vunpack.c.h.b16 %v471
      %v595 = vunpack.c.l.b16 %v472
      %v596 = vunpack.c.h.b16 %v472
      %v597 = vunpack.c.l.b16 %v473
      %v598 = vunpack.c.h.b16 %v473
      %v599 = vunpack.c.l.b16 %v474
      %v600 = vunpack.c.h.b16 %v474
      %v601 = vunpack.c.l.b16 %v475
      %v602 = vunpack.c.h.b16 %v475
      %v603 = vunpack.c.l.b16 %v476
      %v604 = vunpack.c.h.b16 %v476
      %v605 = vunpack.c.l.b16 %v477
      %v606 = vunpack.c.h.b16 %v477
      %v607 = vunpack.c.l.b16 %v478
      %v608 = vunpack.c.h.b16 %v478
      %v609 = vunpack.c.l.b16 %v479
      %v610 = vunpack.c.h.b16 %v479
      %v611 = vunpack.c.l.b16 %v480
      %v612 = vunpack.c.h.b16 %v480
      %v613 = vpack.c.b16 %v565, %v549
      %v614 = vpack.c.b16 %v566, %v550
      %v615 = vpack.c.b16 %v567, %v551
      %v616 = vpack.c.b16 %v568, %v552
      %v617 = vpack.c.b16 %v569, %v553
      %v618 = vpack.c.b16 %v570, %v554
      %v619 = vpack.c.b16 %v571, %v555
      %v620 = vpack.c.b16 %v572, %v556
      %v621 = vpack.c.b16 %v573, %v557
      %v622 = vpack.c.b16 %v574, %v558
      %v623 = vpack.c.b16 %v575, %v559
      %v624 = vpack.c.b16 %v576, %v560
      %v625 = vpack.c.b16 %v577, %v561
      %v626 = vpack.c.b16 %v578, %v562
      %v627 = vpack.c.b16 %v579, %v563
      %v628 = vpack.c.b16 %v580, %v564
      %v629 = vpack.c.b16 %v597, %v581
      %v630 = vpack.c.b16 %v598, %v582
      %v631 = vpack.c.b16 %v599, %v583
      %v632 = vpack.c.b16 %v600, %v584
      %v633 = vpack.c.b16 %v601, %v585
      %v634 = vpack.c.b16 %v602, %v586
      %v635 = vpack.c.b16 %v603, %v587
      %v636 = vpack.c.b16 %v604, %v588
      %v637 = vpack.c.b16 %v605, %v589
      %v638 = vpack.c.b16 %v606, %v590
      %v639 = vpack.c.b16 %v607, %v591
      %v640 = vpack.c.b16 %v608, %v592
      %v641 = vpack.c.b16 %v609, %v593
      %v642 = vpack.c.b16 %v610, %v594
      %v643 = vpack.c.b16 %v611, %v595
      %v644 = vpack.c.b16 %v612, %v596
      %vm677 = vcmask 261120
      %v679 = vsel %vm677, %v448, 0
      %681 = vmatpush.bf16.msra.mxu0 0
      %682 = vmatpush.bf16.msra.mxu0 0
      %683 = vmatpush.bf16.msra.mxu0 0
      %684 = vmatpush.bf16.msra.mxu0 0
      %685 = vmatpush.bf16.msra.mxu0 0
      %686 = vmatpush.bf16.msra.mxu0 0
      %687 = vmatpush.bf16.msra.mxu0 %v629
      %688 = vmatpush.bf16.msra.mxu0 %v613
      %689 = vmatmul.bf16.gmra.mxu0 %v679
      %v690 = vpop.f32.mrf.mxu0
      %v691 = vadd.f32 %v485, %v690
      %v692 = vpop.f32.mrf.mxu0
      %693 = vdwg.mxu0
      %694 = vmatpush.bf16.msra.mxu0 0
      %695 = vmatpush.bf16.msra.mxu0 0
      %696 = vmatpush.bf16.msra.mxu0 0
      %697 = vmatpush.bf16.msra.mxu0 0
      %698 = vmatpush.bf16.msra.mxu0 0
      %699 = vmatpush.bf16.msra.mxu0 0
      %700 = vmatpush.bf16.msra.mxu0 %v630
      %701 = vmatpush.bf16.msra.mxu0 %v614
      %702 = vmatmul.bf16.gmra.mxu0 %v679
      %v703 = vpop.f32.mrf.mxu0
      %v704 = vadd.f32 %v486, %v703
      %v705 = vpop.f32.mrf.mxu0
      %706 = vdwg.mxu0
      %707 = vmatpush.bf16.msra.mxu0 0
      %708 = vmatpush.bf16.msra.mxu0 0
      %709 = vmatpush.bf16.msra.mxu0 0
      %710 = vmatpush.bf16.msra.mxu0 0
      %711 = vmatpush.bf16.msra.mxu0 0
      %712 = vmatpush.bf16.msra.mxu0 0
      %713 = vmatpush.bf16.msra.mxu0 %v631
      %714 = vmatpush.bf16.msra.mxu0 %v615
      %715 = vmatmul.bf16.gmra.mxu0 %v679
      %v716 = vpop.f32.mrf.mxu0
      %v717 = vadd.f32 %v487, %v716
      %v718 = vpop.f32.mrf.mxu0
      %719 = vdwg.mxu0
      %720 = vmatpush.bf16.msra.mxu0 0
      %721 = vmatpush.bf16.msra.mxu0 0
      %722 = vmatpush.bf16.msra.mxu0 0
      %723 = vmatpush.bf16.msra.mxu0 0
      %724 = vmatpush.bf16.msra.mxu0 0
      %725 = vmatpush.bf16.msra.mxu0 0
      %726 = vmatpush.bf16.msra.mxu0 %v632
      %727 = vmatpush.bf16.msra.mxu0 %v616
      %728 = vmatmul.bf16.gmra.mxu0 %v679
      %v729 = vpop.f32.mrf.mxu0
      %v730 = vadd.f32 %v488, %v729
      %v731 = vpop.f32.mrf.mxu0
      %732 = vdwg.mxu0
      %733 = vmatpush.bf16.msra.mxu0 0
      %734 = vmatpush.bf16.msra.mxu0 0
      %735 = vmatpush.bf16.msra.mxu0 0
      %736 = vmatpush.bf16.msra.mxu0 0
      %737 = vmatpush.bf16.msra.mxu0 0
      %738 = vmatpush.bf16.msra.mxu0 0
      %739 = vmatpush.bf16.msra.mxu0 %v633
      %740 = vmatpush.bf16.msra.mxu0 %v617
      %741 = vmatmul.bf16.gmra.mxu0 %v679
      %v742 = vpop.f32.mrf.mxu0
      %v743 = vadd.f32 %v489, %v742
      %v744 = vpop.f32.mrf.mxu0
      %745 = vdwg.mxu0
      %746 = vmatpush.bf16.msra.mxu0 0
      %747 = vmatpush.bf16.msra.mxu0 0
      %748 = vmatpush.bf16.msra.mxu0 0
      %749 = vmatpush.bf16.msra.mxu0 0
      %750 = vmatpush.bf16.msra.mxu0 0
      %751 = vmatpush.bf16.msra.mxu0 0
      %752 = vmatpush.bf16.msra.mxu0 %v634
      %753 = vmatpush.bf16.msra.mxu0 %v618
      %754 = vmatmul.bf16.gmra.mxu0 %v679
      %v755 = vpop.f32.mrf.mxu0
      %v756 = vadd.f32 %v490, %v755
      %v757 = vpop.f32.mrf.mxu0
      %758 = vdwg.mxu0
      %759 = vmatpush.bf16.msra.mxu0 0
      %760 = vmatpush.bf16.msra.mxu0 0
      %761 = vmatpush.bf16.msra.mxu0 0
      %762 = vmatpush.bf16.msra.mxu0 0
      %763 = vmatpush.bf16.msra.mxu0 0
      %764 = vmatpush.bf16.msra.mxu0 0
      %765 = vmatpush.bf16.msra.mxu0 %v635
      %766 = vmatpush.bf16.msra.mxu0 %v619
      %767 = vmatmul.bf16.gmra.mxu0 %v679
      %v768 = vpop.f32.mrf.mxu0
      %v769 = vadd.f32 %v491, %v768
      %v770 = vpop.f32.mrf.mxu0
      %771 = vdwg.mxu0
      %772 = vmatpush.bf16.msra.mxu0 0
      %773 = vmatpush.bf16.msra.mxu0 0
      %774 = vmatpush.bf16.msra.mxu0 0
      %775 = vmatpush.bf16.msra.mxu0 0
      %776 = vmatpush.bf16.msra.mxu0 0
      %777 = vmatpush.bf16.msra.mxu0 0
      %778 = vmatpush.bf16.msra.mxu0 %v636
      %779 = vmatpush.bf16.msra.mxu0 %v620
      %780 = vmatmul.bf16.gmra.mxu0 %v679
      %v781 = vpop.f32.mrf.mxu0
      %v782 = vadd.f32 %v492, %v781
      %v783 = vpop.f32.mrf.mxu0
      %784 = vdwg.mxu0
      %785 = vmatpush.bf16.msra.mxu0 0
      %786 = vmatpush.bf16.msra.mxu0 0
      %787 = vmatpush.bf16.msra.mxu0 0
      %788 = vmatpush.bf16.msra.mxu0 0
      %789 = vmatpush.bf16.msra.mxu0 0
      %790 = vmatpush.bf16.msra.mxu0 0
      %791 = vmatpush.bf16.msra.mxu0 %v637
      %792 = vmatpush.bf16.msra.mxu0 %v621
      %793 = vmatmul.bf16.gmra.mxu0 %v679
      %v794 = vpop.f32.mrf.mxu0
      %v795 = vadd.f32 %v493, %v794
      %v796 = vpop.f32.mrf.mxu0
      %797 = vdwg.mxu0
      %798 = vmatpush.bf16.msra.mxu0 0
      %799 = vmatpush.bf16.msra.mxu0 0
      %800 = vmatpush.bf16.msra.mxu0 0
      %801 = vmatpush.bf16.msra.mxu0 0
      %802 = vmatpush.bf16.msra.mxu0 0
      %803 = vmatpush.bf16.msra.mxu0 0
      %804 = vmatpush.bf16.msra.mxu0 %v638
      %805 = vmatpush.bf16.msra.mxu0 %v622
      %806 = vmatmul.bf16.gmra.mxu0 %v679
      %v807 = vpop.f32.mrf.mxu0
      %v808 = vadd.f32 %v494, %v807
      %v809 = vpop.f32.mrf.mxu0
      %810 = vdwg.mxu0
      %811 = vmatpush.bf16.msra.mxu0 0
      %812 = vmatpush.bf16.msra.mxu0 0
      %813 = vmatpush.bf16.msra.mxu0 0
      %814 = vmatpush.bf16.msra.mxu0 0
      %815 = vmatpush.bf16.msra.mxu0 0
      %816 = vmatpush.bf16.msra.mxu0 0
      %817 = vmatpush.bf16.msra.mxu0 %v639
      %818 = vmatpush.bf16.msra.mxu0 %v623
      %819 = vmatmul.bf16.gmra.mxu0 %v679
      %v820 = vpop.f32.mrf.mxu0
      %v821 = vadd.f32 %v495, %v820
      %v822 = vpop.f32.mrf.mxu0
      %823 = vdwg.mxu0
      %824 = vmatpush.bf16.msra.mxu0 0
      %825 = vmatpush.bf16.msra.mxu0 0
      %826 = vmatpush.bf16.msra.mxu0 0
      %827 = vmatpush.bf16.msra.mxu0 0
      %828 = vmatpush.bf16.msra.mxu0 0
      %829 = vmatpush.bf16.msra.mxu0 0
      %830 = vmatpush.bf16.msra.mxu0 %v640
      %831 = vmatpush.bf16.msra.mxu0 %v624
      %832 = vmatmul.bf16.gmra.mxu0 %v679
      %v833 = vpop.f32.mrf.mxu0
      %v834 = vadd.f32 %v496, %v833
      %v835 = vpop.f32.mrf.mxu0
      %836 = vdwg.mxu0
      %837 = vmatpush.bf16.msra.mxu0 0
      %838 = vmatpush.bf16.msra.mxu0 0
      %839 = vmatpush.bf16.msra.mxu0 0
      %840 = vmatpush.bf16.msra.mxu0 0
      %841 = vmatpush.bf16.msra.mxu0 0
      %842 = vmatpush.bf16.msra.mxu0 0
      %843 = vmatpush.bf16.msra.mxu0 %v641
      %844 = vmatpush.bf16.msra.mxu0 %v625
      %845 = vmatmul.bf16.gmra.mxu0 %v679
      %v846 = vpop.f32.mrf.mxu0
      %v847 = vadd.f32 %v497, %v846
      %v848 = vpop.f32.mrf.mxu0
      %849 = vdwg.mxu0
      %850 = vmatpush.bf16.msra.mxu0 0
      %851 = vmatpush.bf16.msra.mxu0 0
      %852 = vmatpush.bf16.msra.mxu0 0
      %853 = vmatpush.bf16.msra.mxu0 0
      %854 = vmatpush.bf16.msra.mxu0 0
      %855 = vmatpush.bf16.msra.mxu0 0
      %856 = vmatpush.bf16.msra.mxu0 %v642
      %857 = vmatpush.bf16.msra.mxu0 %v626
      %858 = vmatmul.bf16.gmra.mxu0 %v679
      %v859 = vpop.f32.mrf.mxu0
      %v860 = vadd.f32 %v498, %v859
      %v861 = vpop.f32.mrf.mxu0
      %862 = vdwg.mxu0
      %863 = vmatpush.bf16.msra.mxu0 0
      %864 = vmatpush.bf16.msra.mxu0 0
      %865 = vmatpush.bf16.msra.mxu0 0
      %866 = vmatpush.bf16.msra.mxu0 0
      %867 = vmatpush.bf16.msra.mxu0 0
      %868 = vmatpush.bf16.msra.mxu0 0
      %869 = vmatpush.bf16.msra.mxu0 %v643
      %870 = vmatpush.bf16.msra.mxu0 %v627
      %871 = vmatmul.bf16.gmra.mxu0 %v679
      %v872 = vpop.f32.mrf.mxu0
      %v873 = vadd.f32 %v499, %v872
      %v874 = vpop.f32.mrf.mxu0
      %875 = vdwg.mxu0
      %876 = vmatpush.bf16.msra.mxu0 0
      %877 = vmatpush.bf16.msra.mxu0 0
      %878 = vmatpush.bf16.msra.mxu0 0
      %879 = vmatpush.bf16.msra.mxu0 0
      %880 = vmatpush.bf16.msra.mxu0 0
      %881 = vmatpush.bf16.msra.mxu0 0
      %882 = vmatpush.bf16.msra.mxu0 %v644
      %883 = vmatpush.bf16.msra.mxu0 %v628
      %884 = vmatmul.bf16.gmra.mxu0 %v679
      %v885 = vpop.f32.mrf.mxu0
      %v886 = vadd.f32 %v500, %v885
      %v887 = vpop.f32.mrf.mxu0
      %888 = vdwg.mxu0
      %v889 = vmax.f32 %v691, 0.0
      %v890 = vmax.f32 %v704, 0.0
      %v891 = vmax.f32 %v717, 0.0
      %v892 = vmax.f32 %v730, 0.0
      %v893 = vmax.f32 %v743, 0.0
      %v894 = vmax.f32 %v756, 0.0
      %v895 = vmax.f32 %v769, 0.0
      %v896 = vmax.f32 %v782, 0.0
      %v897 = vmax.f32 %v795, 0.0
      %v898 = vmax.f32 %v808, 0.0
      %v899 = vmax.f32 %v821, 0.0
      %v900 = vmax.f32 %v834, 0.0
      %v901 = vmax.f32 %v847, 0.0
      %v902 = vmax.f32 %v860, 0.0
      %v903 = vmax.f32 %v873, 0.0
      %v904 = vmax.f32 %v886, 0.0
      %v905 = vpack.c.bf16 %v889, %v889
      %v906 = vpack.c.bf16 %v890, %v890
      %v907 = vpack.c.bf16 %v891, %v891
      %v908 = vpack.c.bf16 %v892, %v892
      %v909 = vpack.c.bf16 %v893, %v893
      %v910 = vpack.c.bf16 %v894, %v894
      %v911 = vpack.c.bf16 %v895, %v895
      %v912 = vpack.c.bf16 %v896, %v896
      %v913 = vpack.c.bf16 %v897, %v897
      %v914 = vpack.c.bf16 %v898, %v898
      %v915 = vpack.c.bf16 %v899, %v899
      %v916 = vpack.c.bf16 %v900, %v900
      %v917 = vpack.c.bf16 %v901, %v901
      %v918 = vpack.c.bf16 %v902, %v902
      %v919 = vpack.c.bf16 %v903, %v903
      %v920 = vpack.c.bf16 %v904, %v904
      %v921 = vld [vmem:[%s3] sm:$0xf]
      %v922 = vld [vmem:[%s3 + $0x4] sm:$0xf]
      %v923 = vld [vmem:[%s3 + $0x8] sm:$0xf]
      %v924 = vld [vmem:[%s3 + $0xc] sm:$0xf]
      %v925 = vld [vmem:[%s3 + $0x10] sm:$0xf]
      %v926 = vld [vmem:[%s3 + $0x14] sm:$0xf]
      %v927 = vld [vmem:[%s3 + $0x18] sm:$0xf]
      %v928 = vld [vmem:[%s3 + $0x1c] sm:$0xf]
      %v929 = vld [vmem:[%s3 + $0x20] sm:$0xf]
      %v930 = vld [vmem:[%s3 + $0x24] sm:$0xf]
      %v931 = vld [vmem:[%s3 + $0x28] sm:$0xf]
      %v932 = vld [vmem:[%s3 + $0x2c] sm:$0xf]
      %v933 = vld [vmem:[%s3 + $0x30] sm:$0xf]
      %v934 = vld [vmem:[%s3 + $0x34] sm:$0xf]
      %v935 = vld [vmem:[%s3 + $0x38] sm:$0xf]
      %v936 = vld [vmem:[%s3 + $0x3c] sm:$0xf]
      %v937 = vld [vmem:[%s3 + $0x40] sm:$0xf]
      %v938 = vld [vmem:[%s3 + $0x44] sm:$0xf]
      %v939 = vld [vmem:[%s3 + $0x48] sm:$0xf]
      %v940 = vld [vmem:[%s3 + $0x4c] sm:$0xf]
      %v941 = vld [vmem:[%s3 + $0x50] sm:$0xf]
      %v942 = vld [vmem:[%s3 + $0x54] sm:$0xf]
      %v943 = vld [vmem:[%s3 + $0x58] sm:$0xf]
      %v944 = vld [vmem:[%s3 + $0x5c] sm:$0xf]
      %v945 = vld [vmem:[%s3 + $0x60] sm:$0xf]
      %v946 = vld [vmem:[%s3 + $0x64] sm:$0xf]
      %v947 = vld [vmem:[%s3 + $0x68] sm:$0xf]
      %v948 = vld [vmem:[%s3 + $0x6c] sm:$0xf]
      %v949 = vld [vmem:[%s3 + $0x70] sm:$0xf]
      %v950 = vld [vmem:[%s3 + $0x74] sm:$0xf]
      %v951 = vld [vmem:[%s3 + $0x78] sm:$0xf]
      %v952 = vld [vmem:[%s3 + $0x7c] sm:$0xf]
      %v953 = vld [vmem:[%s3 + $0x80] sm:$0xf]
      %v954 = vld [vmem:[%s3 + $0x84] sm:$0xf]
      %v955 = vld [vmem:[%s3 + $0x88] sm:$0xf]
      %v956 = vld [vmem:[%s3 + $0x8c] sm:$0xf]
      %v957 = vld [vmem:[%s3 + $0x90] sm:$0xf]
      %v958 = vld [vmem:[%s3 + $0x94] sm:$0xf]
      %v959 = vld [vmem:[%s3 + $0x98] sm:$0xf]
      %v960 = vld [vmem:[%s3 + $0x9c] sm:$0xf]
      %v961 = vld [vmem:[%s3 + $0xa0] sm:$0xf]
      %v962 = vld [vmem:[%s3 + $0xa4] sm:$0xf]
      %v963 = vld [vmem:[%s3 + $0xa8] sm:$0xf]
      %v964 = vld [vmem:[%s3 + $0xac] sm:$0xf]
      %v965 = vld [vmem:[%s3 + $0xb0] sm:$0xf]
      %v966 = vld [vmem:[%s3 + $0xb4] sm:$0xf]
      %v967 = vld [vmem:[%s3 + $0xb8] sm:$0xf]
      %v968 = vld [vmem:[%s3 + $0xbc] sm:$0xf]
      %v969 = vld [vmem:[%s3 + $0xc0] sm:$0xf]
      %v970 = vld [vmem:[%s3 + $0xc4] sm:$0xf]
      %v971 = vld [vmem:[%s3 + $0xc8] sm:$0xf]
      %v972 = vld [vmem:[%s3 + $0xcc] sm:$0xf]
      %v973 = vld [vmem:[%s3 + $0xd0] sm:$0xf]
      %v974 = vld [vmem:[%s3 + $0xd4] sm:$0xf]
      %v975 = vld [vmem:[%s3 + $0xd8] sm:$0xf]
      %v976 = vld [vmem:[%s3 + $0xdc] sm:$0xf]
      %v977 = vld [vmem:[%s3 + $0xe0] sm:$0xf]
      %v978 = vld [vmem:[%s3 + $0xe4] sm:$0xf]
      %v979 = vld [vmem:[%s3 + $0xe8] sm:$0xf]
      %v980 = vld [vmem:[%s3 + $0xec] sm:$0xf]
      %v981 = vld [vmem:[%s3 + $0xf0] sm:$0xf]
      %v982 = vld [vmem:[%s3 + $0xf4] sm:$0xf]
      %v983 = vld [vmem:[%s3 + $0xf8] sm:$0xf]
      %v984 = vld [vmem:[%s3 + $0xfc] sm:$0xf]
      %v985 = vld [vmem:[%s3 + $0x100] sm:$0xf]
      %v986 = vld [vmem:[%s3 + $0x104] sm:$0xf]
      %v987 = vld [vmem:[%s3 + $0x108] sm:$0xf]
      %v988 = vld [vmem:[%s3 + $0x10c] sm:$0xf]
      %v989 = vld [vmem:[%s3 + $0x110] sm:$0xf]
      %v990 = vld [vmem:[%s3 + $0x114] sm:$0xf]
      %v991 = vld [vmem:[%s3 + $0x118] sm:$0xf]
      %v992 = vld [vmem:[%s3 + $0x11c] sm:$0xf]
      %v993 = vld [vmem:[%s3 + $0x120] sm:$0xf]
      %v994 = vld [vmem:[%s3 + $0x124] sm:$0xf]
      %v995 = vld [vmem:[%s3 + $0x128] sm:$0xf]
      %v996 = vld [vmem:[%s3 + $0x12c] sm:$0xf]
      %v997 = vld [vmem:[%s3 + $0x130] sm:$0xf]
      %v998 = vld [vmem:[%s3 + $0x134] sm:$0xf]
      %v999 = vld [vmem:[%s3 + $0x138] sm:$0xf]
      %v1000 = vld [vmem:[%s3 + $0x13c] sm:$0xf]
      %v1001 = vld [vmem:[%s3 + $0x140] sm:$0xf]
      %v1002 = vld [vmem:[%s3 + $0x144] sm:$0xf]
      %v1003 = vld [vmem:[%s3 + $0x148] sm:$0xf]
      %v1004 = vld [vmem:[%s3 + $0x14c] sm:$0xf]
      %v1005 = vld [vmem:[%s3 + $0x150] sm:$0xf]
      %v1006 = vld [vmem:[%s3 + $0x154] sm:$0xf]
      %v1007 = vld [vmem:[%s3 + $0x158] sm:$0xf]
      %v1008 = vld [vmem:[%s3 + $0x15c] sm:$0xf]
      %v1009 = vld [vmem:[%s3 + $0x160] sm:$0xf]
      %v1010 = vld [vmem:[%s3 + $0x164] sm:$0xf]
      %v1011 = vld [vmem:[%s3 + $0x168] sm:$0xf]
      %v1012 = vld [vmem:[%s3 + $0x16c] sm:$0xf]
      %v1013 = vld [vmem:[%s3 + $0x170] sm:$0xf]
      %v1014 = vld [vmem:[%s3 + $0x174] sm:$0xf]
      %v1015 = vld [vmem:[%s3 + $0x178] sm:$0xf]
      %v1016 = vld [vmem:[%s3 + $0x17c] sm:$0xf]
      %v1017 = vld [vmem:[%s3 + $0x180] sm:$0xf]
      %v1018 = vld [vmem:[%s3 + $0x184] sm:$0xf]
      %v1019 = vld [vmem:[%s3 + $0x188] sm:$0xf]
      %v1020 = vld [vmem:[%s3 + $0x18c] sm:$0xf]
      %v1021 = vld [vmem:[%s3 + $0x190] sm:$0xf]
      %v1022 = vld [vmem:[%s3 + $0x194] sm:$0xf]
      %v1023 = vld [vmem:[%s3 + $0x198] sm:$0xf]
      %v1024 = vld [vmem:[%s3 + $0x19c] sm:$0xf]
      %v1025 = vld [vmem:[%s3 + $0x1a0] sm:$0xf]
      %v1026 = vld [vmem:[%s3 + $0x1a4] sm:$0xf]
      %v1027 = vld [vmem:[%s3 + $0x1a8] sm:$0xf]
      %v1028 = vld [vmem:[%s3 + $0x1ac] sm:$0xf]
      %v1029 = vld [vmem:[%s3 + $0x1b0] sm:$0xf]
      %v1030 = vld [vmem:[%s3 + $0x1b4] sm:$0xf]
      %v1031 = vld [vmem:[%s3 + $0x1b8] sm:$0xf]
      %v1032 = vld [vmem:[%s3 + $0x1bc] sm:$0xf]
      %v1033 = vld [vmem:[%s3 + $0x1c0] sm:$0xf]
      %v1034 = vld [vmem:[%s3 + $0x1c4] sm:$0xf]
      %v1035 = vld [vmem:[%s3 + $0x1c8] sm:$0xf]
      %v1036 = vld [vmem:[%s3 + $0x1cc] sm:$0xf]
      %v1037 = vld [vmem:[%s3 + $0x1d0] sm:$0xf]
      %v1038 = vld [vmem:[%s3 + $0x1d4] sm:$0xf]
      %v1039 = vld [vmem:[%s3 + $0x1d8] sm:$0xf]
      %v1040 = vld [vmem:[%s3 + $0x1dc] sm:$0xf]
      %v1041 = vld [vmem:[%s3 + $0x1e0] sm:$0xf]
      %v1042 = vld [vmem:[%s3 + $0x1e4] sm:$0xf]
      %v1043 = vld [vmem:[%s3 + $0x1e8] sm:$0xf]
      %v1044 = vld [vmem:[%s3 + $0x1ec] sm:$0xf]
      %v1045 = vld [vmem:[%s3 + $0x1f0] sm:$0xf]
      %v1046 = vld [vmem:[%s3 + $0x1f4] sm:$0xf]
      %v1047 = vld [vmem:[%s3 + $0x1f8] sm:$0xf]
      %v1048 = vld [vmem:[%s3 + $0x1fc] sm:$0xf]
      %v1049 = vld [vmem:[%s3 + $0x200] sm:$0xf]
      %v1050 = vld [vmem:[%s3 + $0x204] sm:$0xf]
      %v1051 = vld [vmem:[%s3 + $0x208] sm:$0xf]
      %v1052 = vld [vmem:[%s3 + $0x20c] sm:$0xf]
      %v1053 = vld [vmem:[%s3 + $0x210] sm:$0xf]
      %v1054 = vld [vmem:[%s3 + $0x214] sm:$0xf]
      %v1055 = vld [vmem:[%s3 + $0x218] sm:$0xf]
      %v1056 = vld [vmem:[%s3 + $0x21c] sm:$0xf]
      %v1057 = vld [vmem:[%s3 + $0x220] sm:$0xf]
      %v1058 = vld [vmem:[%s3 + $0x224] sm:$0xf]
      %v1059 = vld [vmem:[%s3 + $0x228] sm:$0xf]
      %v1060 = vld [vmem:[%s3 + $0x22c] sm:$0xf]
      %v1061 = vld [vmem:[%s3 + $0x230] sm:$0xf]
      %v1062 = vld [vmem:[%s3 + $0x234] sm:$0xf]
      %v1063 = vld [vmem:[%s3 + $0x238] sm:$0xf]
      %v1064 = vld [vmem:[%s3 + $0x23c] sm:$0xf]
      %v1065 = vld [vmem:[%s3 + $0x240] sm:$0xf]
      %v1066 = vld [vmem:[%s3 + $0x244] sm:$0xf]
      %v1067 = vld [vmem:[%s3 + $0x248] sm:$0xf]
      %v1068 = vld [vmem:[%s3 + $0x24c] sm:$0xf]
      %v1069 = vld [vmem:[%s3 + $0x250] sm:$0xf]
      %v1070 = vld [vmem:[%s3 + $0x254] sm:$0xf]
      %v1071 = vld [vmem:[%s3 + $0x258] sm:$0xf]
      %v1072 = vld [vmem:[%s3 + $0x25c] sm:$0xf]
      %v1073 = vld [vmem:[%s3 + $0x260] sm:$0xf]
      %v1074 = vld [vmem:[%s3 + $0x264] sm:$0xf]
      %v1075 = vld [vmem:[%s3 + $0x268] sm:$0xf]
      %v1076 = vld [vmem:[%s3 + $0x26c] sm:$0xf]
      %v1077 = vld [vmem:[%s3 + $0x270] sm:$0xf]
      %v1078 = vld [vmem:[%s3 + $0x274] sm:$0xf]
      %v1079 = vld [vmem:[%s3 + $0x278] sm:$0xf]
      %v1080 = vld [vmem:[%s3 + $0x27c] sm:$0xf]
      %v1081 = vld [vmem:[%s3 + $0x280] sm:$0xf]
      %v1082 = vld [vmem:[%s3 + $0x284] sm:$0xf]
      %v1083 = vld [vmem:[%s3 + $0x288] sm:$0xf]
      %v1084 = vld [vmem:[%s3 + $0x28c] sm:$0xf]
      %v1085 = vld [vmem:[%s3 + $0x290] sm:$0xf]
      %v1086 = vld [vmem:[%s3 + $0x294] sm:$0xf]
      %v1087 = vld [vmem:[%s3 + $0x298] sm:$0xf]
      %v1088 = vld [vmem:[%s3 + $0x29c] sm:$0xf]
      %v1089 = vld [vmem:[%s3 + $0x2a0] sm:$0xf]
      %v1090 = vld [vmem:[%s3 + $0x2a4] sm:$0xf]
      %v1091 = vld [vmem:[%s3 + $0x2a8] sm:$0xf]
      %v1092 = vld [vmem:[%s3 + $0x2ac] sm:$0xf]
      %v1093 = vld [vmem:[%s3 + $0x2b0] sm:$0xf]
      %v1094 = vld [vmem:[%s3 + $0x2b4] sm:$0xf]
      %v1095 = vld [vmem:[%s3 + $0x2b8] sm:$0xf]
      %v1096 = vld [vmem:[%s3 + $0x2bc] sm:$0xf]
      %v1097 = vld [vmem:[%s3 + $0x2c0] sm:$0xf]
      %v1098 = vld [vmem:[%s3 + $0x2c4] sm:$0xf]
      %v1099 = vld [vmem:[%s3 + $0x2c8] sm:$0xf]
      %v1100 = vld [vmem:[%s3 + $0x2cc] sm:$0xf]
      %v1101 = vld [vmem:[%s3 + $0x2d0] sm:$0xf]
      %v1102 = vld [vmem:[%s3 + $0x2d4] sm:$0xf]
      %v1103 = vld [vmem:[%s3 + $0x2d8] sm:$0xf]
      %v1104 = vld [vmem:[%s3 + $0x2dc] sm:$0xf]
      %v1105 = vld [vmem:[%s3 + $0x2e0] sm:$0xf]
      %v1106 = vld [vmem:[%s3 + $0x2e4] sm:$0xf]
      %v1107 = vld [vmem:[%s3 + $0x2e8] sm:$0xf]
      %v1108 = vld [vmem:[%s3 + $0x2ec] sm:$0xf]
      %v1109 = vld [vmem:[%s3 + $0x2f0] sm:$0xf]
      %v1110 = vld [vmem:[%s3 + $0x2f4] sm:$0xf]
      %v1111 = vld [vmem:[%s3 + $0x2f8] sm:$0xf]
      %v1112 = vld [vmem:[%s3 + $0x2fc] sm:$0xf]
      %v1113 = vld [vmem:[%s3 + $0x300] sm:$0xf]
      %v1114 = vld [vmem:[%s3 + $0x304] sm:$0xf]
      %v1115 = vld [vmem:[%s3 + $0x308] sm:$0xf]
      %v1116 = vld [vmem:[%s3 + $0x30c] sm:$0xf]
      %v1117 = vld [vmem:[%s3 + $0x310] sm:$0xf]
      %v1118 = vld [vmem:[%s3 + $0x314] sm:$0xf]
      %v1119 = vld [vmem:[%s3 + $0x318] sm:$0xf]
      %v1120 = vld [vmem:[%s3 + $0x31c] sm:$0xf]
      %v1121 = vld [vmem:[%s3 + $0x320] sm:$0xf]
      %v1122 = vld [vmem:[%s3 + $0x324] sm:$0xf]
      %v1123 = vld [vmem:[%s3 + $0x328] sm:$0xf]
      %v1124 = vld [vmem:[%s3 + $0x32c] sm:$0xf]
      %v1125 = vld [vmem:[%s3 + $0x330] sm:$0xf]
      %v1126 = vld [vmem:[%s3 + $0x334] sm:$0xf]
      %v1127 = vld [vmem:[%s3 + $0x338] sm:$0xf]
      %v1128 = vld [vmem:[%s3 + $0x33c] sm:$0xf]
      %v1129 = vld [vmem:[%s3 + $0x340] sm:$0xf]
      %v1130 = vld [vmem:[%s3 + $0x344] sm:$0xf]
      %v1131 = vld [vmem:[%s3 + $0x348] sm:$0xf]
      %v1132 = vld [vmem:[%s3 + $0x34c] sm:$0xf]
      %v1133 = vld [vmem:[%s3 + $0x350] sm:$0xf]
      %v1134 = vld [vmem:[%s3 + $0x354] sm:$0xf]
      %v1135 = vld [vmem:[%s3 + $0x358] sm:$0xf]
      %v1136 = vld [vmem:[%s3 + $0x35c] sm:$0xf]
      %v1137 = vld [vmem:[%s3 + $0x360] sm:$0xf]
      %v1138 = vld [vmem:[%s3 + $0x364] sm:$0xf]
      %v1139 = vld [vmem:[%s3 + $0x368] sm:$0xf]
      %v1140 = vld [vmem:[%s3 + $0x36c] sm:$0xf]
      %v1141 = vld [vmem:[%s3 + $0x370] sm:$0xf]
      %v1142 = vld [vmem:[%s3 + $0x374] sm:$0xf]
      %v1143 = vld [vmem:[%s3 + $0x378] sm:$0xf]
      %v1144 = vld [vmem:[%s3 + $0x37c] sm:$0xf]
      %v1145 = vld [vmem:[%s3 + $0x380] sm:$0xf]
      %v1146 = vld [vmem:[%s3 + $0x384] sm:$0xf]
      %v1147 = vld [vmem:[%s3 + $0x388] sm:$0xf]
      %v1148 = vld [vmem:[%s3 + $0x38c] sm:$0xf]
      %v1149 = vld [vmem:[%s3 + $0x390] sm:$0xf]
      %v1150 = vld [vmem:[%s3 + $0x394] sm:$0xf]
      %v1151 = vld [vmem:[%s3 + $0x398] sm:$0xf]
      %v1152 = vld [vmem:[%s3 + $0x39c] sm:$0xf]
      %v1153 = vld [vmem:[%s3 + $0x3a0] sm:$0xf]
      %v1154 = vld [vmem:[%s3 + $0x3a4] sm:$0xf]
      %v1155 = vld [vmem:[%s3 + $0x3a8] sm:$0xf]
      %v1156 = vld [vmem:[%s3 + $0x3ac] sm:$0xf]
      %v1157 = vld [vmem:[%s3 + $0x3b0] sm:$0xf]
      %v1158 = vld [vmem:[%s3 + $0x3b4] sm:$0xf]
      %v1159 = vld [vmem:[%s3 + $0x3b8] sm:$0xf]
      %v1160 = vld [vmem:[%s3 + $0x3bc] sm:$0xf]
      %v1161 = vld [vmem:[%s3 + $0x3c0] sm:$0xf]
      %v1162 = vld [vmem:[%s3 + $0x3c4] sm:$0xf]
      %v1163 = vld [vmem:[%s3 + $0x3c8] sm:$0xf]
      %v1164 = vld [vmem:[%s3 + $0x3cc] sm:$0xf]
      %v1165 = vld [vmem:[%s3 + $0x3d0] sm:$0xf]
      %v1166 = vld [vmem:[%s3 + $0x3d4] sm:$0xf]
      %v1167 = vld [vmem:[%s3 + $0x3d8] sm:$0xf]
      %v1168 = vld [vmem:[%s3 + $0x3dc] sm:$0xf]
      %v1169 = vld [vmem:[%s3 + $0x3e0] sm:$0xf]
      %v1170 = vld [vmem:[%s3 + $0x3e4] sm:$0xf]
      %v1171 = vld [vmem:[%s3 + $0x3e8] sm:$0xf]
      %v1172 = vld [vmem:[%s3 + $0x3ec] sm:$0xf]
      %v1173 = vld [vmem:[%s3 + $0x3f0] sm:$0xf]
      %v1174 = vld [vmem:[%s3 + $0x3f4] sm:$0xf]
      %v1175 = vld [vmem:[%s3 + $0x3f8] sm:$0xf]
      %v1176 = vld [vmem:[%s3 + $0x3fc] sm:$0xf]
      %v1177 = vld [vmem:[%s4] sm:$0x1]
      %v1179 = vperm.slane %v1177, 0
      %v1437 = vunpack.c.l.b16 %v921
      %v1438 = vunpack.c.l.b16 %v922
      %v1439 = vunpack.c.l.b16 %v923
      %v1440 = vunpack.c.l.b16 %v924
      %v1441 = vunpack.c.l.b16 %v925
      %v1442 = vunpack.c.l.b16 %v926
      %v1443 = vunpack.c.l.b16 %v927
      %v1444 = vunpack.c.l.b16 %v928
      %v1445 = vunpack.c.l.b16 %v929
      %v1446 = vunpack.c.l.b16 %v930
      %v1447 = vunpack.c.l.b16 %v931
      %v1448 = vunpack.c.l.b16 %v932
      %v1449 = vunpack.c.l.b16 %v933
      %v1450 = vunpack.c.l.b16 %v934
      %v1451 = vunpack.c.l.b16 %v935
      %v1452 = vunpack.c.l.b16 %v936
      %v1453 = vunpack.c.l.b16 %v937
      %v1454 = vunpack.c.l.b16 %v938
      %v1455 = vunpack.c.l.b16 %v939
      %v1456 = vunpack.c.l.b16 %v940
      %v1457 = vunpack.c.l.b16 %v941
      %v1458 = vunpack.c.l.b16 %v942
      %v1459 = vunpack.c.l.b16 %v943
      %v1460 = vunpack.c.l.b16 %v944
      %v1461 = vunpack.c.l.b16 %v945
      %v1462 = vunpack.c.l.b16 %v946
      %v1463 = vunpack.c.l.b16 %v947
      %v1464 = vunpack.c.l.b16 %v948
      %v1465 = vunpack.c.l.b16 %v949
      %v1466 = vunpack.c.l.b16 %v950
      %v1467 = vunpack.c.l.b16 %v951
      %v1468 = vunpack.c.l.b16 %v952
      %v1469 = vunpack.c.l.b16 %v953
      %v1470 = vunpack.c.l.b16 %v954
      %v1471 = vunpack.c.l.b16 %v955
      %v1472 = vunpack.c.l.b16 %v956
      %v1473 = vunpack.c.l.b16 %v957
      %v1474 = vunpack.c.l.b16 %v958
      %v1475 = vunpack.c.l.b16 %v959
      %v1476 = vunpack.c.l.b16 %v960
      %v1477 = vunpack.c.l.b16 %v961
      %v1478 = vunpack.c.l.b16 %v962
      %v1479 = vunpack.c.l.b16 %v963
      %v1480 = vunpack.c.l.b16 %v964
      %v1481 = vunpack.c.l.b16 %v965
      %v1482 = vunpack.c.l.b16 %v966
      %v1483 = vunpack.c.l.b16 %v967
      %v1484 = vunpack.c.l.b16 %v968
      %v1485 = vunpack.c.l.b16 %v969
      %v1486 = vunpack.c.l.b16 %v970
      %v1487 = vunpack.c.l.b16 %v971
      %v1488 = vunpack.c.l.b16 %v972
      %v1489 = vunpack.c.l.b16 %v973
      %v1490 = vunpack.c.l.b16 %v974
      %v1491 = vunpack.c.l.b16 %v975
      %v1492 = vunpack.c.l.b16 %v976
      %v1493 = vunpack.c.l.b16 %v977
      %v1494 = vunpack.c.l.b16 %v978
      %v1495 = vunpack.c.l.b16 %v979
      %v1496 = vunpack.c.l.b16 %v980
      %v1497 = vunpack.c.l.b16 %v981
      %v1498 = vunpack.c.l.b16 %v982
      %v1499 = vunpack.c.l.b16 %v983
      %v1500 = vunpack.c.l.b16 %v984
      %v1501 = vunpack.c.l.b16 %v985
      %v1502 = vunpack.c.l.b16 %v986
      %v1503 = vunpack.c.l.b16 %v987
      %v1504 = vunpack.c.l.b16 %v988
      %v1505 = vunpack.c.l.b16 %v989
      %v1506 = vunpack.c.l.b16 %v990
      %v1507 = vunpack.c.l.b16 %v991
      %v1508 = vunpack.c.l.b16 %v992
      %v1509 = vunpack.c.l.b16 %v993
      %v1510 = vunpack.c.l.b16 %v994
      %v1511 = vunpack.c.l.b16 %v995
      %v1512 = vunpack.c.l.b16 %v996
      %v1513 = vunpack.c.l.b16 %v997
      %v1514 = vunpack.c.l.b16 %v998
      %v1515 = vunpack.c.l.b16 %v999
      %v1516 = vunpack.c.l.b16 %v1000
      %v1517 = vunpack.c.l.b16 %v1001
      %v1518 = vunpack.c.l.b16 %v1002
      %v1519 = vunpack.c.l.b16 %v1003
      %v1520 = vunpack.c.l.b16 %v1004
      %v1521 = vunpack.c.l.b16 %v1005
      %v1522 = vunpack.c.l.b16 %v1006
      %v1523 = vunpack.c.l.b16 %v1007
      %v1524 = vunpack.c.l.b16 %v1008
      %v1525 = vunpack.c.l.b16 %v1009
      %v1526 = vunpack.c.l.b16 %v1010
      %v1527 = vunpack.c.l.b16 %v1011
      %v1528 = vunpack.c.l.b16 %v1012
      %v1529 = vunpack.c.l.b16 %v1013
      %v1530 = vunpack.c.l.b16 %v1014
      %v1531 = vunpack.c.l.b16 %v1015
      %v1532 = vunpack.c.l.b16 %v1016
      %v1533 = vunpack.c.l.b16 %v1017
      %v1534 = vunpack.c.l.b16 %v1018
      %v1535 = vunpack.c.l.b16 %v1019
      %v1536 = vunpack.c.l.b16 %v1020
      %v1537 = vunpack.c.l.b16 %v1021
      %v1538 = vunpack.c.l.b16 %v1022
      %v1539 = vunpack.c.l.b16 %v1023
      %v1540 = vunpack.c.l.b16 %v1024
      %v1541 = vunpack.c.l.b16 %v1025
      %v1542 = vunpack.c.l.b16 %v1026
      %v1543 = vunpack.c.l.b16 %v1027
      %v1544 = vunpack.c.l.b16 %v1028
      %v1545 = vunpack.c.l.b16 %v1029
      %v1546 = vunpack.c.l.b16 %v1030
      %v1547 = vunpack.c.l.b16 %v1031
      %v1548 = vunpack.c.l.b16 %v1032
      %v1549 = vunpack.c.l.b16 %v1033
      %v1550 = vunpack.c.l.b16 %v1034
      %v1551 = vunpack.c.l.b16 %v1035
      %v1552 = vunpack.c.l.b16 %v1036
      %v1553 = vunpack.c.l.b16 %v1037
      %v1554 = vunpack.c.l.b16 %v1038
      %v1555 = vunpack.c.l.b16 %v1039
      %v1556 = vunpack.c.l.b16 %v1040
      %v1557 = vunpack.c.l.b16 %v1041
      %v1558 = vunpack.c.l.b16 %v1042
      %v1559 = vunpack.c.l.b16 %v1043
      %v1560 = vunpack.c.l.b16 %v1044
      %v1561 = vunpack.c.l.b16 %v1045
      %v1562 = vunpack.c.l.b16 %v1046
      %v1563 = vunpack.c.l.b16 %v1047
      %v1564 = vunpack.c.l.b16 %v1048
      %v1565 = vunpack.c.l.b16 %v1049
      %v1566 = vunpack.c.l.b16 %v1050
      %v1567 = vunpack.c.l.b16 %v1051
      %v1568 = vunpack.c.l.b16 %v1052
      %v1569 = vunpack.c.l.b16 %v1053
      %v1570 = vunpack.c.l.b16 %v1054
      %v1571 = vunpack.c.l.b16 %v1055
      %v1572 = vunpack.c.l.b16 %v1056
      %v1573 = vunpack.c.l.b16 %v1057
      %v1574 = vunpack.c.l.b16 %v1058
      %v1575 = vunpack.c.l.b16 %v1059
      %v1576 = vunpack.c.l.b16 %v1060
      %v1577 = vunpack.c.l.b16 %v1061
      %v1578 = vunpack.c.l.b16 %v1062
      %v1579 = vunpack.c.l.b16 %v1063
      %v1580 = vunpack.c.l.b16 %v1064
      %v1581 = vunpack.c.l.b16 %v1065
      %v1582 = vunpack.c.l.b16 %v1066
      %v1583 = vunpack.c.l.b16 %v1067
      %v1584 = vunpack.c.l.b16 %v1068
      %v1585 = vunpack.c.l.b16 %v1069
      %v1586 = vunpack.c.l.b16 %v1070
      %v1587 = vunpack.c.l.b16 %v1071
      %v1588 = vunpack.c.l.b16 %v1072
      %v1589 = vunpack.c.l.b16 %v1073
      %v1590 = vunpack.c.l.b16 %v1074
      %v1591 = vunpack.c.l.b16 %v1075
      %v1592 = vunpack.c.l.b16 %v1076
      %v1593 = vunpack.c.l.b16 %v1077
      %v1594 = vunpack.c.l.b16 %v1078
      %v1595 = vunpack.c.l.b16 %v1079
      %v1596 = vunpack.c.l.b16 %v1080
      %v1597 = vunpack.c.l.b16 %v1081
      %v1598 = vunpack.c.l.b16 %v1082
      %v1599 = vunpack.c.l.b16 %v1083
      %v1600 = vunpack.c.l.b16 %v1084
      %v1601 = vunpack.c.l.b16 %v1085
      %v1602 = vunpack.c.l.b16 %v1086
      %v1603 = vunpack.c.l.b16 %v1087
      %v1604 = vunpack.c.l.b16 %v1088
      %v1605 = vunpack.c.l.b16 %v1089
      %v1606 = vunpack.c.l.b16 %v1090
      %v1607 = vunpack.c.l.b16 %v1091
      %v1608 = vunpack.c.l.b16 %v1092
      %v1609 = vunpack.c.l.b16 %v1093
      %v1610 = vunpack.c.l.b16 %v1094
      %v1611 = vunpack.c.l.b16 %v1095
      %v1612 = vunpack.c.l.b16 %v1096
      %v1613 = vunpack.c.l.b16 %v1097
      %v1614 = vunpack.c.l.b16 %v1098
      %v1615 = vunpack.c.l.b16 %v1099
      %v1616 = vunpack.c.l.b16 %v1100
      %v1617 = vunpack.c.l.b16 %v1101
      %v1618 = vunpack.c.l.b16 %v1102
      %v1619 = vunpack.c.l.b16 %v1103
      %v1620 = vunpack.c.l.b16 %v1104
      %v1621 = vunpack.c.l.b16 %v1105
      %v1622 = vunpack.c.l.b16 %v1106
      %v1623 = vunpack.c.l.b16 %v1107
      %v1624 = vunpack.c.l.b16 %v1108
      %v1625 = vunpack.c.l.b16 %v1109
      %v1626 = vunpack.c.l.b16 %v1110
      %v1627 = vunpack.c.l.b16 %v1111
      %v1628 = vunpack.c.l.b16 %v1112
      %v1629 = vunpack.c.l.b16 %v1113
      %v1630 = vunpack.c.l.b16 %v1114
      %v1631 = vunpack.c.l.b16 %v1115
      %v1632 = vunpack.c.l.b16 %v1116
      %v1633 = vunpack.c.l.b16 %v1117
      %v1634 = vunpack.c.l.b16 %v1118
      %v1635 = vunpack.c.l.b16 %v1119
      %v1636 = vunpack.c.l.b16 %v1120
      %v1637 = vunpack.c.l.b16 %v1121
      %v1638 = vunpack.c.l.b16 %v1122
      %v1639 = vunpack.c.l.b16 %v1123
      %v1640 = vunpack.c.l.b16 %v1124
      %v1641 = vunpack.c.l.b16 %v1125
      %v1642 = vunpack.c.l.b16 %v1126
      %v1643 = vunpack.c.l.b16 %v1127
      %v1644 = vunpack.c.l.b16 %v1128
      %v1645 = vunpack.c.l.b16 %v1129
      %v1646 = vunpack.c.l.b16 %v1130
      %v1647 = vunpack.c.l.b16 %v1131
      %v1648 = vunpack.c.l.b16 %v1132
      %v1649 = vunpack.c.l.b16 %v1133
      %v1650 = vunpack.c.l.b16 %v1134
      %v1651 = vunpack.c.l.b16 %v1135
      %v1652 = vunpack.c.l.b16 %v1136
      %v1653 = vunpack.c.l.b16 %v1137
      %v1654 = vunpack.c.l.b16 %v1138
      %v1655 = vunpack.c.l.b16 %v1139
      %v1656 = vunpack.c.l.b16 %v1140
      %v1657 = vunpack.c.l.b16 %v1141
      %v1658 = vunpack.c.l.b16 %v1142
      %v1659 = vunpack.c.l.b16 %v1143
      %v1660 = vunpack.c.l.b16 %v1144
      %v1661 = vunpack.c.l.b16 %v1145
      %v1662 = vunpack.c.l.b16 %v1146
      %v1663 = vunpack.c.l.b16 %v1147
      %v1664 = vunpack.c.l.b16 %v1148
      %v1665 = vunpack.c.l.b16 %v1149
      %v1666 = vunpack.c.l.b16 %v1150
      %v1667 = vunpack.c.l.b16 %v1151
      %v1668 = vunpack.c.l.b16 %v1152
      %v1669 = vunpack.c.l.b16 %v1153
      %v1670 = vunpack.c.l.b16 %v1154
      %v1671 = vunpack.c.l.b16 %v1155
      %v1672 = vunpack.c.l.b16 %v1156
      %v1673 = vunpack.c.l.b16 %v1157
      %v1674 = vunpack.c.l.b16 %v1158
      %v1675 = vunpack.c.l.b16 %v1159
      %v1676 = vunpack.c.l.b16 %v1160
      %v1677 = vunpack.c.l.b16 %v1161
      %v1678 = vunpack.c.l.b16 %v1162
      %v1679 = vunpack.c.l.b16 %v1163
      %v1680 = vunpack.c.l.b16 %v1164
      %v1681 = vunpack.c.l.b16 %v1165
      %v1682 = vunpack.c.l.b16 %v1166
      %v1683 = vunpack.c.l.b16 %v1167
      %v1684 = vunpack.c.l.b16 %v1168
      %v1685 = vunpack.c.l.b16 %v1169
      %v1686 = vunpack.c.l.b16 %v1170
      %v1687 = vunpack.c.l.b16 %v1171
      %v1688 = vunpack.c.l.b16 %v1172
      %v1689 = vunpack.c.l.b16 %v1173
      %v1690 = vunpack.c.l.b16 %v1174
      %v1691 = vunpack.c.l.b16 %v1175
      %v1692 = vunpack.c.l.b16 %v1176
      %v1693 = vpack.c.b16 %v1438, %v1437
      %v1694 = vpack.c.b16 %v1440, %v1439
      %v1695 = vpack.c.b16 %v1442, %v1441
      %v1696 = vpack.c.b16 %v1444, %v1443
      %v1697 = vpack.c.b16 %v1446, %v1445
      %v1698 = vpack.c.b16 %v1448, %v1447
      %v1699 = vpack.c.b16 %v1450, %v1449
      %v1700 = vpack.c.b16 %v1452, %v1451
      %v1701 = vpack.c.b16 %v1454, %v1453
      %v1702 = vpack.c.b16 %v1456, %v1455
      %v1703 = vpack.c.b16 %v1458, %v1457
      %v1704 = vpack.c.b16 %v1460, %v1459
      %v1705 = vpack.c.b16 %v1462, %v1461
      %v1706 = vpack.c.b16 %v1464, %v1463
      %v1707 = vpack.c.b16 %v1466, %v1465
      %v1708 = vpack.c.b16 %v1468, %v1467
      %v1709 = vpack.c.b16 %v1470, %v1469
      %v1710 = vpack.c.b16 %v1472, %v1471
      %v1711 = vpack.c.b16 %v1474, %v1473
      %v1712 = vpack.c.b16 %v1476, %v1475
      %v1713 = vpack.c.b16 %v1478, %v1477
      %v1714 = vpack.c.b16 %v1480, %v1479
      %v1715 = vpack.c.b16 %v1482, %v1481
      %v1716 = vpack.c.b16 %v1484, %v1483
      %v1717 = vpack.c.b16 %v1486, %v1485
      %v1718 = vpack.c.b16 %v1488, %v1487
      %v1719 = vpack.c.b16 %v1490, %v1489
      %v1720 = vpack.c.b16 %v1492, %v1491
      %v1721 = vpack.c.b16 %v1494, %v1493
      %v1722 = vpack.c.b16 %v1496, %v1495
      %v1723 = vpack.c.b16 %v1498, %v1497
      %v1724 = vpack.c.b16 %v1500, %v1499
      %v1725 = vpack.c.b16 %v1502, %v1501
      %v1726 = vpack.c.b16 %v1504, %v1503
      %v1727 = vpack.c.b16 %v1506, %v1505
      %v1728 = vpack.c.b16 %v1508, %v1507
      %v1729 = vpack.c.b16 %v1510, %v1509
      %v1730 = vpack.c.b16 %v1512, %v1511
      %v1731 = vpack.c.b16 %v1514, %v1513
      %v1732 = vpack.c.b16 %v1516, %v1515
      %v1733 = vpack.c.b16 %v1518, %v1517
      %v1734 = vpack.c.b16 %v1520, %v1519
      %v1735 = vpack.c.b16 %v1522, %v1521
      %v1736 = vpack.c.b16 %v1524, %v1523
      %v1737 = vpack.c.b16 %v1526, %v1525
      %v1738 = vpack.c.b16 %v1528, %v1527
      %v1739 = vpack.c.b16 %v1530, %v1529
      %v1740 = vpack.c.b16 %v1532, %v1531
      %v1741 = vpack.c.b16 %v1534, %v1533
      %v1742 = vpack.c.b16 %v1536, %v1535
      %v1743 = vpack.c.b16 %v1538, %v1537
      %v1744 = vpack.c.b16 %v1540, %v1539
      %v1745 = vpack.c.b16 %v1542, %v1541
      %v1746 = vpack.c.b16 %v1544, %v1543
      %v1747 = vpack.c.b16 %v1546, %v1545
      %v1748 = vpack.c.b16 %v1548, %v1547
      %v1749 = vpack.c.b16 %v1550, %v1549
      %v1750 = vpack.c.b16 %v1552, %v1551
      %v1751 = vpack.c.b16 %v1554, %v1553
      %v1752 = vpack.c.b16 %v1556, %v1555
      %v1753 = vpack.c.b16 %v1558, %v1557
      %v1754 = vpack.c.b16 %v1560, %v1559
      %v1755 = vpack.c.b16 %v1562, %v1561
      %v1756 = vpack.c.b16 %v1564, %v1563
      %v1757 = vpack.c.b16 %v1566, %v1565
      %v1758 = vpack.c.b16 %v1568, %v1567
      %v1759 = vpack.c.b16 %v1570, %v1569
      %v1760 = vpack.c.b16 %v1572, %v1571
      %v1761 = vpack.c.b16 %v1574, %v1573
      %v1762 = vpack.c.b16 %v1576, %v1575
      %v1763 = vpack.c.b16 %v1578, %v1577
      %v1764 = vpack.c.b16 %v1580, %v1579
      %v1765 = vpack.c.b16 %v1582, %v1581
      %v1766 = vpack.c.b16 %v1584, %v1583
      %v1767 = vpack.c.b16 %v1586, %v1585
      %v1768 = vpack.c.b16 %v1588, %v1587
      %v1769 = vpack.c.b16 %v1590, %v1589
      %v1770 = vpack.c.b16 %v1592, %v1591
      %v1771 = vpack.c.b16 %v1594, %v1593
      %v1772 = vpack.c.b16 %v1596, %v1595
      %v1773 = vpack.c.b16 %v1598, %v1597
      %v1774 = vpack.c.b16 %v1600, %v1599
      %v1775 = vpack.c.b16 %v1602, %v1601
      %v1776 = vpack.c.b16 %v1604, %v1603
      %v1777 = vpack.c.b16 %v1606, %v1605
      %v1778 = vpack.c.b16 %v1608, %v1607
      %v1779 = vpack.c.b16 %v1610, %v1609
      %v1780 = vpack.c.b16 %v1612, %v1611
      %v1781 = vpack.c.b16 %v1614, %v1613
      %v1782 = vpack.c.b16 %v1616, %v1615
      %v1783 = vpack.c.b16 %v1618, %v1617
      %v1784 = vpack.c.b16 %v1620, %v1619
      %v1785 = vpack.c.b16 %v1622, %v1621
      %v1786 = vpack.c.b16 %v1624, %v1623
      %v1787 = vpack.c.b16 %v1626, %v1625
      %v1788 = vpack.c.b16 %v1628, %v1627
      %v1789 = vpack.c.b16 %v1630, %v1629
      %v1790 = vpack.c.b16 %v1632, %v1631
      %v1791 = vpack.c.b16 %v1634, %v1633
      %v1792 = vpack.c.b16 %v1636, %v1635
      %v1793 = vpack.c.b16 %v1638, %v1637
      %v1794 = vpack.c.b16 %v1640, %v1639
      %v1795 = vpack.c.b16 %v1642, %v1641
      %v1796 = vpack.c.b16 %v1644, %v1643
      %v1797 = vpack.c.b16 %v1646, %v1645
      %v1798 = vpack.c.b16 %v1648, %v1647
      %v1799 = vpack.c.b16 %v1650, %v1649
      %v1800 = vpack.c.b16 %v1652, %v1651
      %v1801 = vpack.c.b16 %v1654, %v1653
      %v1802 = vpack.c.b16 %v1656, %v1655
      %v1803 = vpack.c.b16 %v1658, %v1657
      %v1804 = vpack.c.b16 %v1660, %v1659
      %v1805 = vpack.c.b16 %v1662, %v1661
      %v1806 = vpack.c.b16 %v1664, %v1663
      %v1807 = vpack.c.b16 %v1666, %v1665
      %v1808 = vpack.c.b16 %v1668, %v1667
      %v1809 = vpack.c.b16 %v1670, %v1669
      %v1810 = vpack.c.b16 %v1672, %v1671
      %v1811 = vpack.c.b16 %v1674, %v1673
      %v1812 = vpack.c.b16 %v1676, %v1675
      %v1813 = vpack.c.b16 %v1678, %v1677
      %v1814 = vpack.c.b16 %v1680, %v1679
      %v1815 = vpack.c.b16 %v1682, %v1681
      %v1816 = vpack.c.b16 %v1684, %v1683
      %v1817 = vpack.c.b16 %v1686, %v1685
      %v1818 = vpack.c.b16 %v1688, %v1687
      %v1819 = vpack.c.b16 %v1690, %v1689
      %v1820 = vpack.c.b16 %v1692, %v1691
      %1949 = vmatpush.bf16.msra.mxu0 %v1700
      %1950 = vmatpush.bf16.msra.mxu0 %v1699
      %1951 = vmatpush.bf16.msra.mxu0 %v1698
      %1952 = vmatpush.bf16.msra.mxu0 %v1697
      %1953 = vmatpush.bf16.msra.mxu0 %v1696
      %1954 = vmatpush.bf16.msra.mxu0 %v1695
      %1955 = vmatpush.bf16.msra.mxu0 %v1694
      %1956 = vmatpush.bf16.msra.mxu0 %v1693
      %1957 = vmatmul.bf16.gmra.mxu0 %v905
      %v1958 = vpop.f32.mrf.mxu0
      %v1959 = vadd.f32 %v1179, %v1958
      %v1960 = vpop.f32.mrf.mxu0
      %1961 = vdwg.mxu0
      %1962 = vmatpush.bf16.msra.mxu0 %v1708
      %1963 = vmatpush.bf16.msra.mxu0 %v1707
      %1964 = vmatpush.bf16.msra.mxu0 %v1706
      %1965 = vmatpush.bf16.msra.mxu0 %v1705
      %1966 = vmatpush.bf16.msra.mxu0 %v1704
      %1967 = vmatpush.bf16.msra.mxu0 %v1703
      %1968 = vmatpush.bf16.msra.mxu0 %v1702
      %1969 = vmatpush.bf16.msra.mxu0 %v1701
      %1970 = vmatmul.bf16.gmra.mxu0 %v906
      %v1971 = vpop.f32.mrf.mxu0
      %v1972 = vadd.f32 %v1959, %v1971
      %v1973 = vpop.f32.mrf.mxu0
      %1974 = vdwg.mxu0
      %1975 = vmatpush.bf16.msra.mxu0 %v1716
      %1976 = vmatpush.bf16.msra.mxu0 %v1715
      %1977 = vmatpush.bf16.msra.mxu0 %v1714
      %1978 = vmatpush.bf16.msra.mxu0 %v1713
      %1979 = vmatpush.bf16.msra.mxu0 %v1712
      %1980 = vmatpush.bf16.msra.mxu0 %v1711
      %1981 = vmatpush.bf16.msra.mxu0 %v1710
      %1982 = vmatpush.bf16.msra.mxu0 %v1709
      %1983 = vmatmul.bf16.gmra.mxu0 %v907
      %v1984 = vpop.f32.mrf.mxu0
      %v1985 = vadd.f32 %v1972, %v1984
      %v1986 = vpop.f32.mrf.mxu0
      %1987 = vdwg.mxu0
      %1988 = vmatpush.bf16.msra.mxu0 %v1724
      %1989 = vmatpush.bf16.msra.mxu0 %v1723
      %1990 = vmatpush.bf16.msra.mxu0 %v1722
      %1991 = vmatpush.bf16.msra.mxu0 %v1721
      %1992 = vmatpush.bf16.msra.mxu0 %v1720
      %1993 = vmatpush.bf16.msra.mxu0 %v1719
      %1994 = vmatpush.bf16.msra.mxu0 %v1718
      %1995 = vmatpush.bf16.msra.mxu0 %v1717
      %1996 = vmatmul.bf16.gmra.mxu0 %v908
      %v1997 = vpop.f32.mrf.mxu0
      %v1998 = vadd.f32 %v1985, %v1997
      %v1999 = vpop.f32.mrf.mxu0
      %2000 = vdwg.mxu0
      %2001 = vmatpush.bf16.msra.mxu0 %v1732
      %2002 = vmatpush.bf16.msra.mxu0 %v1731
      %2003 = vmatpush.bf16.msra.mxu0 %v1730
      %2004 = vmatpush.bf16.msra.mxu0 %v1729
      %2005 = vmatpush.bf16.msra.mxu0 %v1728
      %2006 = vmatpush.bf16.msra.mxu0 %v1727
      %2007 = vmatpush.bf16.msra.mxu0 %v1726
      %2008 = vmatpush.bf16.msra.mxu0 %v1725
      %2009 = vmatmul.bf16.gmra.mxu0 %v909
      %v2010 = vpop.f32.mrf.mxu0
      %v2011 = vadd.f32 %v1998, %v2010
      %v2012 = vpop.f32.mrf.mxu0
      %2013 = vdwg.mxu0
      %2014 = vmatpush.bf16.msra.mxu0 %v1740
      %2015 = vmatpush.bf16.msra.mxu0 %v1739
      %2016 = vmatpush.bf16.msra.mxu0 %v1738
      %2017 = vmatpush.bf16.msra.mxu0 %v1737
      %2018 = vmatpush.bf16.msra.mxu0 %v1736
      %2019 = vmatpush.bf16.msra.mxu0 %v1735
      %2020 = vmatpush.bf16.msra.mxu0 %v1734
      %2021 = vmatpush.bf16.msra.mxu0 %v1733
      %2022 = vmatmul.bf16.gmra.mxu0 %v910
      %v2023 = vpop.f32.mrf.mxu0
      %v2024 = vadd.f32 %v2011, %v2023
      %v2025 = vpop.f32.mrf.mxu0
      %2026 = vdwg.mxu0
      %2027 = vmatpush.bf16.msra.mxu0 %v1748
      %2028 = vmatpush.bf16.msra.mxu0 %v1747
      %2029 = vmatpush.bf16.msra.mxu0 %v1746
      %2030 = vmatpush.bf16.msra.mxu0 %v1745
      %2031 = vmatpush.bf16.msra.mxu0 %v1744
      %2032 = vmatpush.bf16.msra.mxu0 %v1743
      %2033 = vmatpush.bf16.msra.mxu0 %v1742
      %2034 = vmatpush.bf16.msra.mxu0 %v1741
      %2035 = vmatmul.bf16.gmra.mxu0 %v911
      %v2036 = vpop.f32.mrf.mxu0
      %v2037 = vadd.f32 %v2024, %v2036
      %v2038 = vpop.f32.mrf.mxu0
      %2039 = vdwg.mxu0
      %2040 = vmatpush.bf16.msra.mxu0 %v1756
      %2041 = vmatpush.bf16.msra.mxu0 %v1755
      %2042 = vmatpush.bf16.msra.mxu0 %v1754
      %2043 = vmatpush.bf16.msra.mxu0 %v1753
      %2044 = vmatpush.bf16.msra.mxu0 %v1752
      %2045 = vmatpush.bf16.msra.mxu0 %v1751
      %2046 = vmatpush.bf16.msra.mxu0 %v1750
      %2047 = vmatpush.bf16.msra.mxu0 %v1749
      %2048 = vmatmul.bf16.gmra.mxu0 %v912
      %v2049 = vpop.f32.mrf.mxu0
      %v2050 = vadd.f32 %v2037, %v2049
      %v2051 = vpop.f32.mrf.mxu0
      %2052 = vdwg.mxu0
      %2053 = vmatpush.bf16.msra.mxu0 %v1764
      %2054 = vmatpush.bf16.msra.mxu0 %v1763
      %2055 = vmatpush.bf16.msra.mxu0 %v1762
      %2056 = vmatpush.bf16.msra.mxu0 %v1761
      %2057 = vmatpush.bf16.msra.mxu0 %v1760
      %2058 = vmatpush.bf16.msra.mxu0 %v1759
      %2059 = vmatpush.bf16.msra.mxu0 %v1758
      %2060 = vmatpush.bf16.msra.mxu0 %v1757
      %2061 = vmatmul.bf16.gmra.mxu0 %v913
      %v2062 = vpop.f32.mrf.mxu0
      %v2063 = vadd.f32 %v2050, %v2062
      %v2064 = vpop.f32.mrf.mxu0
      %2065 = vdwg.mxu0
      %2066 = vmatpush.bf16.msra.mxu0 %v1772
      %2067 = vmatpush.bf16.msra.mxu0 %v1771
      %2068 = vmatpush.bf16.msra.mxu0 %v1770
      %2069 = vmatpush.bf16.msra.mxu0 %v1769
      %2070 = vmatpush.bf16.msra.mxu0 %v1768
      %2071 = vmatpush.bf16.msra.mxu0 %v1767
      %2072 = vmatpush.bf16.msra.mxu0 %v1766
      %2073 = vmatpush.bf16.msra.mxu0 %v1765
      %2074 = vmatmul.bf16.gmra.mxu0 %v914
      %v2075 = vpop.f32.mrf.mxu0
      %v2076 = vadd.f32 %v2063, %v2075
      %v2077 = vpop.f32.mrf.mxu0
      %2078 = vdwg.mxu0
      %2079 = vmatpush.bf16.msra.mxu0 %v1780
      %2080 = vmatpush.bf16.msra.mxu0 %v1779
      %2081 = vmatpush.bf16.msra.mxu0 %v1778
      %2082 = vmatpush.bf16.msra.mxu0 %v1777
      %2083 = vmatpush.bf16.msra.mxu0 %v1776
      %2084 = vmatpush.bf16.msra.mxu0 %v1775
      %2085 = vmatpush.bf16.msra.mxu0 %v1774
      %2086 = vmatpush.bf16.msra.mxu0 %v1773
      %2087 = vmatmul.bf16.gmra.mxu0 %v915
      %v2088 = vpop.f32.mrf.mxu0
      %v2089 = vadd.f32 %v2076, %v2088
      %v2090 = vpop.f32.mrf.mxu0
      %2091 = vdwg.mxu0
      %2092 = vmatpush.bf16.msra.mxu0 %v1788
      %2093 = vmatpush.bf16.msra.mxu0 %v1787
      %2094 = vmatpush.bf16.msra.mxu0 %v1786
      %2095 = vmatpush.bf16.msra.mxu0 %v1785
      %2096 = vmatpush.bf16.msra.mxu0 %v1784
      %2097 = vmatpush.bf16.msra.mxu0 %v1783
      %2098 = vmatpush.bf16.msra.mxu0 %v1782
      %2099 = vmatpush.bf16.msra.mxu0 %v1781
      %2100 = vmatmul.bf16.gmra.mxu0 %v916
      %v2101 = vpop.f32.mrf.mxu0
      %v2102 = vadd.f32 %v2089, %v2101
      %v2103 = vpop.f32.mrf.mxu0
      %2104 = vdwg.mxu0
      %2105 = vmatpush.bf16.msra.mxu0 %v1796
      %2106 = vmatpush.bf16.msra.mxu0 %v1795
      %2107 = vmatpush.bf16.msra.mxu0 %v1794
      %2108 = vmatpush.bf16.msra.mxu0 %v1793
      %2109 = vmatpush.bf16.msra.mxu0 %v1792
      %2110 = vmatpush.bf16.msra.mxu0 %v1791
      %2111 = vmatpush.bf16.msra.mxu0 %v1790
      %2112 = vmatpush.bf16.msra.mxu0 %v1789
      %2113 = vmatmul.bf16.gmra.mxu0 %v917
      %v2114 = vpop.f32.mrf.mxu0
      %v2115 = vadd.f32 %v2102, %v2114
      %v2116 = vpop.f32.mrf.mxu0
      %2117 = vdwg.mxu0
      %2118 = vmatpush.bf16.msra.mxu0 %v1804
      %2119 = vmatpush.bf16.msra.mxu0 %v1803
      %2120 = vmatpush.bf16.msra.mxu0 %v1802
      %2121 = vmatpush.bf16.msra.mxu0 %v1801
      %2122 = vmatpush.bf16.msra.mxu0 %v1800
      %2123 = vmatpush.bf16.msra.mxu0 %v1799
      %2124 = vmatpush.bf16.msra.mxu0 %v1798
      %2125 = vmatpush.bf16.msra.mxu0 %v1797
      %2126 = vmatmul.bf16.gmra.mxu0 %v918
      %v2127 = vpop.f32.mrf.mxu0
      %v2128 = vadd.f32 %v2115, %v2127
      %v2129 = vpop.f32.mrf.mxu0
      %2130 = vdwg.mxu0
      %2131 = vmatpush.bf16.msra.mxu0 %v1812
      %2132 = vmatpush.bf16.msra.mxu0 %v1811
      %2133 = vmatpush.bf16.msra.mxu0 %v1810
      %2134 = vmatpush.bf16.msra.mxu0 %v1809
      %2135 = vmatpush.bf16.msra.mxu0 %v1808
      %2136 = vmatpush.bf16.msra.mxu0 %v1807
      %2137 = vmatpush.bf16.msra.mxu0 %v1806
      %2138 = vmatpush.bf16.msra.mxu0 %v1805
      %2139 = vmatmul.bf16.gmra.mxu0 %v919
      %v2140 = vpop.f32.mrf.mxu0
      %v2141 = vadd.f32 %v2128, %v2140
      %v2142 = vpop.f32.mrf.mxu0
      %2143 = vdwg.mxu0
      %2144 = vmatpush.bf16.msra.mxu0 %v1820
      %2145 = vmatpush.bf16.msra.mxu0 %v1819
      %2146 = vmatpush.bf16.msra.mxu0 %v1818
      %2147 = vmatpush.bf16.msra.mxu0 %v1817
      %2148 = vmatpush.bf16.msra.mxu0 %v1816
      %2149 = vmatpush.bf16.msra.mxu0 %v1815
      %2150 = vmatpush.bf16.msra.mxu0 %v1814
      %2151 = vmatpush.bf16.msra.mxu0 %v1813
      %2152 = vmatmul.bf16.gmra.mxu0 %v920
      %v2153 = vpop.f32.mrf.mxu0
      %v2154 = vadd.f32 %v2141, %v2153
      %v2155 = vpop.f32.mrf.mxu0
      %2156 = vdwg.mxu0
      %v2157 = vpack.c.bf16 %v2154, %v2154
      %v2158 = vld [vmem:[%s5] sm:$0xf]
      %v2159 = vld [vmem:[%s5 + $0x4] sm:$0xf]
      %v2160 = vld [vmem:[%s5 + $0x8] sm:$0xf]
      %v2161 = vld [vmem:[%s5 + $0xc] sm:$0xf]
      %v2162 = vld [vmem:[%s6] sm:$0x1]
      %v2164 = vperm.slane %v2162, 0
      %v2170 = vunpack.c.l.b16 %v2158
      %v2171 = vunpack.c.l.b16 %v2159
      %v2172 = vunpack.c.l.b16 %v2160
      %v2173 = vunpack.c.l.b16 %v2161
      %v2174 = vpack.c.b16 %v2171, %v2170
      %v2175 = vpack.c.b16 %v2173, %v2172
      %v2179 = vsel %vm677, %v2157, 0
      %2181 = vmatpush.bf16.msra.mxu0 0
      %2182 = vmatpush.bf16.msra.mxu0 0
      %2183 = vmatpush.bf16.msra.mxu0 0
      %2184 = vmatpush.bf16.msra.mxu0 0
      %2185 = vmatpush.bf16.msra.mxu0 0
      %2186 = vmatpush.bf16.msra.mxu0 0
      %2187 = vmatpush.bf16.msra.mxu0 %v2175
      %2188 = vmatpush.bf16.msra.mxu0 %v2174
      %2189 = vmatmul.bf16.gmra.mxu0 %v2179
      %v2190 = vpop.f32.mrf.mxu0
      %v2191 = vadd.f32 %v2164, %v2190
      %v2192 = vpop.f32.mrf.mxu0
      %2193 = vdwg.mxu0
      %v2194 = vpack.c.bf16 %v2191, %v2191
      %2195 = vst.msk [vmem:[%s422] sm:$0xff] %vm677, %v2154
      %2197 = vrot.lane.b32.xlu0 %v2194, 124
      %v2198 = vpop.permute.xlu0 %2197
      %2200 = vrot.lane.b32.xlu0 %v2194, 120
      %v2201 = vpop.permute.xlu0 %2200
      %2203 = vrot.lane.b32.xlu0 %v2194, 116
      %v2204 = vpop.permute.xlu0 %2203
      %2206 = vrot.lane.b32.xlu0 %v2194, 112
      %v2207 = vpop.permute.xlu0 %2206
      %2209 = vrot.lane.b32.xlu0 %v2194, 108
      %v2210 = vpop.permute.xlu0 %2209
      %2212 = vrot.lane.b32.xlu0 %v2194, 104
      %v2213 = vpop.permute.xlu0 %2212
      %2215 = vrot.lane.b32.xlu0 %v2194, 100
      %v2216 = vpop.permute.xlu0 %2215
      %vm2218 = vcmask 27648
      %2219 = vst.msk [vmem:[%s430] sm:$0xf] %vm2218, %v2194
      %2220 = vst.msk [vmem:[%s430 + $0x4] sm:$0xf] %vm2218, %v2198
      %2221 = vst.msk [vmem:[%s430 + $0x8] sm:$0xf] %vm2218, %v2201
      %2222 = vst.msk [vmem:[%s430 + $0xc] sm:$0xf] %vm2218, %v2204
      %2223 = vst.msk [vmem:[%s430 + $0x10] sm:$0xf] %vm2218, %v2207
      %2224 = vst.msk [vmem:[%s430 + $0x14] sm:$0xf] %vm2218, %v2210
      %2225 = vst.msk [vmem:[%s430 + $0x18] sm:$0xf] %vm2218, %v2213
      %2226 = vst.msk [vmem:[%s430 + $0x1c] sm:$0xf] %vm2218, %v2216
      %2227 = vrot.lane.b32.xlu0 %v2194, 96
      %v2228 = vpop.permute.xlu0 %2227
      %2229 = vrot.lane.b32.xlu0 %v2198, 96
      %v2230 = vpop.permute.xlu0 %2229
      %2231 = vrot.lane.b32.xlu0 %v2201, 96
      %v2232 = vpop.permute.xlu0 %2231
      %2233 = vrot.lane.b32.xlu0 %v2204, 96
      %v2234 = vpop.permute.xlu0 %2233
      %2235 = vrot.lane.b32.xlu0 %v2207, 96
      %v2236 = vpop.permute.xlu0 %2235
      %2237 = vrot.lane.b32.xlu0 %v2210, 96
      %v2238 = vpop.permute.xlu0 %2237
      %2239 = vrot.lane.b32.xlu0 %v2213, 96
      %v2240 = vpop.permute.xlu0 %2239
      %2241 = vrot.lane.b32.xlu0 %v2216, 96
      %v2242 = vpop.permute.xlu0 %2241
      %2251 = vst.msk [vmem:[%s438] sm:$0xf] %vm2218, %v2228
      %2252 = vst.msk [vmem:[%s438 + $0x4] sm:$0xf] %vm2218, %v2230
      %2253 = vst.msk [vmem:[%s438 + $0x8] sm:$0xf] %vm2218, %v2232
      %2254 = vst.msk [vmem:[%s438 + $0xc] sm:$0xf] %vm2218, %v2234
      %2255 = vst.msk [vmem:[%s438 + $0x10] sm:$0xf] %vm2218, %v2236
      %2256 = vst.msk [vmem:[%s438 + $0x14] sm:$0xf] %vm2218, %v2238
      %2257 = vst.msk [vmem:[%s438 + $0x18] sm:$0xf] %vm2218, %v2240
      %2258 = vst.msk [vmem:[%s438 + $0x1c] sm:$0xf] %vm2218, %v2242
      %2259 = vrot.lane.b32.xlu0 %v2194, 64
      %v2260 = vpop.permute.xlu0 %2259
      %2261 = vrot.lane.b32.xlu0 %v2198, 64
      %v2262 = vpop.permute.xlu0 %2261
      %2263 = vrot.lane.b32.xlu0 %v2201, 64
      %v2264 = vpop.permute.xlu0 %2263
      %2265 = vrot.lane.b32.xlu0 %v2204, 64
      %v2266 = vpop.permute.xlu0 %2265
      %2267 = vrot.lane.b32.xlu0 %v2207, 64
      %v2268 = vpop.permute.xlu0 %2267
      %2269 = vrot.lane.b32.xlu0 %v2210, 64
      %v2270 = vpop.permute.xlu0 %2269
      %2271 = vrot.lane.b32.xlu0 %v2213, 64
      %v2272 = vpop.permute.xlu0 %2271
      %2273 = vrot.lane.b32.xlu0 %v2216, 64
      %v2274 = vpop.permute.xlu0 %2273
      %2283 = vst.msk [vmem:[%s446] sm:$0xf] %vm2218, %v2260
      %2284 = vst.msk [vmem:[%s446 + $0x4] sm:$0xf] %vm2218, %v2262
      %2285 = vst.msk [vmem:[%s446 + $0x8] sm:$0xf] %vm2218, %v2264
      %2286 = vst.msk [vmem:[%s446 + $0xc] sm:$0xf] %vm2218, %v2266
      %2287 = vst.msk [vmem:[%s446 + $0x10] sm:$0xf] %vm2218, %v2268
      %2288 = vst.msk [vmem:[%s446 + $0x14] sm:$0xf] %vm2218, %v2270
      %2289 = vst.msk [vmem:[%s446 + $0x18] sm:$0xf] %vm2218, %v2272
      %2290 = vst.msk [vmem:[%s446 + $0x1c] sm:$0xf] %vm2218, %v2274
      %p2291 = scmp.lt.s32.totalorder %s26, 1
      %s2292 = scalar_select %p2291, %s26, 1
      %p2293 = scmp.lt.s32.totalorder %s27, 0
      %s2294 = scalar_select %p2293, %s27, 0
      %s2295 = sadd.s32 %s2294, %s2292
      %s2296 = smul.addr %s2295, 8
      %s2297 = scalar_lea.vmem %s7, %s2296
      %p2298 = scmp.lt.s32.totalorder %s26, 1
      %s2299 = scalar_select %p2298, %s26, 1
      %p2300 = scmp.lt.s32.totalorder %s27, 0
      %s2301 = scalar_select %p2300, %s27, 0
      %s2302 = smul.addr %s2299, 8
      %s2303 = sadd.s32 %s2301, %s2302
      %s2304 = smul.addr %s2303, 4
      %s2305 = scalar_lea.vmem %s8, %s2304
      %p2306 = scmp.lt.s32.totalorder %s26, 1
      %s2307 = scalar_select %p2306, %s26, 1
      %p2308 = scmp.lt.s32.totalorder %s27, 0
      %s2309 = scalar_select %p2308, %s27, 0
      %s2310 = smul.addr %s2307, 8
      %s2311 = sadd.s32 %s2309, %s2310
      %s2312 = smul.addr %s2311, 4
      %s2313 = scalar_lea.vmem %s9, %s2312
      %p2314 = scmp.lt.s32.totalorder %s26, 1
      %s2315 = scalar_select %p2314, %s26, 1
      %p2316 = scmp.lt.s32.totalorder %s27, 0
      %s2317 = scalar_select %p2316, %s27, 0
      %s2318 = smul.addr %s2315, 8
      %s2319 = sadd.s32 %s2317, %s2318
      %s2320 = smul.addr %s2319, 4
      %s2321 = scalar_lea.vmem %s10, %s2320
      // Predicated region
      $region49: #{transformer_encoder_forward.6} parent=47 // pred_check
        %p2322 = pneg %p208
      $region50: #{transformer_encoder_forward.6} parent=47 // pred_check_branch
        %2324 = sbr.rel (%p2322) target = $region52
      $region51: #{transformer_encoder_forward.6} parent=47 // pred_region
        _
      $region52: #{transformer_encoder_forward.6} parent=47 // pred_fallthru
        _
      // Predicated region
      $region53: #{transformer_encoder_forward.6} parent=47 // pred_check
        %p2325 = pneg %p236
      $region54: #{transformer_encoder_forward.6} parent=47 // pred_check_branch
        %2327 = sbr.rel (%p2325) target = $region56
      $region55: #{transformer_encoder_forward.6} parent=47 // pred_region
        _
      $region56: #{transformer_encoder_forward.6} parent=47 // pred_fallthru
        _
      // Predicated region
      $region57: #{transformer_encoder_forward.6} parent=47 // pred_check
        %p2328 = pneg %p264
      $region58: #{transformer_encoder_forward.6} parent=47 // pred_check_branch
        %2330 = sbr.rel (%p2328) target = $region60
      $region59: #{transformer_encoder_forward.6} parent=47 // pred_region
        _
      $region60: #{transformer_encoder_forward.6} parent=47 // pred_fallthru
        _
      // Predicated region
      $region61: #{transformer_encoder_forward.6} parent=47 // pred_check
        %p2331 = pneg %p292
      $region62: #{transformer_encoder_forward.6} parent=47 // pred_check_branch
        %2333 = sbr.rel (%p2331) target = $region64
      $region63: #{transformer_encoder_forward.6} parent=47 // pred_region
        _
      $region64: #{transformer_encoder_forward.6} parent=47 // pred_fallthru
        _
    $region48: #{transformer_encoder_forward.6} parent=5 // pred_fallthru
      _
    %p2334 = scmp.le.s32.totalorder 2, %s17
    // Predicated region
    $region65: #{transformer_encoder_forward.6} parent=5 // pred_check
      %p2335 = pneg %p2334
    $region66: #{transformer_encoder_forward.6} parent=5 // pred_check_branch
      %2337 = sbr.rel (%p2335) target = $region68
    $region67: #{transformer_encoder_forward.6} parent=5 // pred_region
      %s2338 = ssub.s32 %s17, 2
      // Predicated region
      $region69: #{transformer_encoder_forward.6} parent=67 // pred_check
        %p2339 = pneg %p214
      $region70: #{transformer_encoder_forward.6} parent=67 // pred_check_branch
        %2341 = sbr.rel (%p2339) target = $region72
      $region71: #{transformer_encoder_forward.6} parent=67 // pred_region
        %p2342 = scmp.lt.s32.totalorder %s28, 1
        %s2343 = scalar_select %p2342, %s28, 1
        %p2344 = scmp.lt.s32.totalorder %s29, 0
        %s2345 = scalar_select %p2344, %s29, 0
        %s2346 = sadd.s32 %s2345, %s2343
        %s2347 = smul.addr %s2346, 8
        %s2348 = scalar_lea.vmem %s7, %s2347
      $region72: #{transformer_encoder_forward.6} parent=67 // pred_fallthru
        _
      // Predicated region
      $region73: #{transformer_encoder_forward.6} parent=67 // pred_check
        %p2349 = pneg %p242
      $region74: #{transformer_encoder_forward.6} parent=67 // pred_check_branch
        %2351 = sbr.rel (%p2349) target = $region76
      $region75: #{transformer_encoder_forward.6} parent=67 // pred_region
        %p2352 = scmp.lt.s32.totalorder %s28, 1
        %s2353 = scalar_select %p2352, %s28, 1
        %p2354 = scmp.lt.s32.totalorder %s29, 0
        %s2355 = scalar_select %p2354, %s29, 0
        %s2356 = smul.addr %s2353, 8
        %s2357 = sadd.s32 %s2355, %s2356
        %s2358 = smul.addr %s2357, 4
        %s2359 = scalar_lea.vmem %s8, %s2358
      $region76: #{transformer_encoder_forward.6} parent=67 // pred_fallthru
        _
      // Predicated region
      $region77: #{transformer_encoder_forward.6} parent=67 // pred_check
        %p2360 = pneg %p270
      $region78: #{transformer_encoder_forward.6} parent=67 // pred_check_branch
        %2362 = sbr.rel (%p2360) target = $region80
      $region79: #{transformer_encoder_forward.6} parent=67 // pred_region
        %p2363 = scmp.lt.s32.totalorder %s28, 1
        %s2364 = scalar_select %p2363, %s28, 1
        %p2365 = scmp.lt.s32.totalorder %s29, 0
        %s2366 = scalar_select %p2365, %s29, 0
        %s2367 = smul.addr %s2364, 8
        %s2368 = sadd.s32 %s2366, %s2367
        %s2369 = smul.addr %s2368, 4
        %s2370 = scalar_lea.vmem %s9, %s2369
      $region80: #{transformer_encoder_forward.6} parent=67 // pred_fallthru
        _
      // Predicated region
      $region81: #{transformer_encoder_forward.6} parent=67 // pred_check
        %p2371 = pneg %p298
      $region82: #{transformer_encoder_forward.6} parent=67 // pred_check_branch
        %2373 = sbr.rel (%p2371) target = $region84
      $region83: #{transformer_encoder_forward.6} parent=67 // pred_region
        %p2374 = scmp.lt.s32.totalorder %s28, 1
        %s2375 = scalar_select %p2374, %s28, 1
        %p2376 = scmp.lt.s32.totalorder %s29, 0
        %s2377 = scalar_select %p2376, %s29, 0
        %s2378 = smul.addr %s2375, 8
        %s2379 = sadd.s32 %s2377, %s2378
        %s2380 = smul.addr %s2379, 4
        %s2381 = scalar_lea.vmem %s10, %s2380
      $region84: #{transformer_encoder_forward.6} parent=67 // pred_fallthru
        _
    $region68: #{transformer_encoder_forward.6} parent=5 // pred_fallthru
      _
  $region6: #{transformer_encoder_forward.6} parent=0 // loop_footer
    %s21 = sadd.s32 1, %s17
  $region7: #{transformer_encoder_forward.6} parent=0 // loop_footer_branch
    %16 = sbr.rel target = $region3
  $region8: #{transformer_encoder_forward.6} parent=0 // loop_exit
    _

// kernel: transformer_encoder_forward.8
$region0: #{transformer_encoder_forward.8}
  #allocation0 [shape = 'u32[]', space=smem, size = 0x4, offset = 0x4, fixed_abs, tag = 'smem constant byte address 0x4 - core index']
  #allocation1 [shape = 'u32[72,128]{1,0:T(1,128)}', space=vmem, size = 0x9000, scoped, tag = 'internal scratch']
  %s0 = inlined_call_operand.vmem [shape: f32[2,8,32], index: 0, kind: input, shape index: {}]
  %s1 = inlined_call_operand.vmem [shape: bf16[2,8,32], index: 1, kind: input, shape index: {}]
  %s2 = inlined_call_operand.vmem [shape: bf16[32,32], index: 2, kind: input, shape index: {}]
  %s3 = inlined_call_operand.vmem [shape: f32[1,32], index: 3, kind: input, shape index: {}]
  %s4 = inlined_call_operand.vmem [shape: f32[1,32], index: 4, kind: input, shape index: {}]
  %s5 = inlined_call_operand.vmem [shape: f32[1,32], index: 5, kind: input, shape index: {}]
  %s6 = inlined_call_operand.vmem [shape: bf16[32,2048], index: 6, kind: input, shape index: {}]
  %s7 = inlined_call_operand.vmem [shape: f32[1,2048], index: 7, kind: input, shape index: {}]
  %s8 = inlined_call_operand.vmem [shape: bf16[2048,32], index: 8, kind: input, shape index: {}]
  %s9 = inlined_call_operand.vmem [shape: f32[1,32], index: 9, kind: input, shape index: {}]
  %s10 = inlined_call_operand.vmem [shape: f32[1,32], index: 10, kind: input, shape index: {}]
  %s11 = inlined_call_operand.vmem [shape: f32[1,32], index: 11, kind: input, shape index: {}]
  %s12 = inlined_call_operand.vmem [shape: bf16[2,8,32], index: 12, kind: output, shape index: {}]
  %s13 = sld [smem:[#allocation0]]
  $region81: #{transformer_encoder_forward.8} parent=0
    _
  %s15 = ssub.s32 1, %s13
  %s16 = scalar_select 0, %s15, %s13
  loop: start=0, step=1, limit=4
  $region2: #{transformer_encoder_forward.8} parent=0 // loop_pre_header
    _
  $region3: #{transformer_encoder_forward.8} parent=0 // loop_header
    %s18 = sphi 0, %s22
    %p19 = scmp.ge.s32.totalorder %s18, 4
    %s25 = sphi 0, %s37
    %s26 = sphi 0, %s33
    %s27 = sphi 0, %s25
    %s28 = sphi 0, %s26
    %s29 = sphi 0, %s27
    %s30 = sphi 0, %s28
    %s42 = sphi 0, %s44
    %s45 = sphi 0, %s42
    %s46 = sphi 0, %s45
    %s62 = sphi 0, %s46
    %s70 = sphi 0, %s72
    %s73 = sphi 0, %s70
    %s74 = sphi 0, %s73
    %s90 = sphi 0, %s74
    %s94 = sphi 0, %s94
    %s96 = sphi 0, %s94
    %s97 = sphi 0, %s96
    %s111 = sphi 0, %s97
    %s115 = sphi 0, %s115
    %s117 = sphi 0, %s115
    %s118 = sphi 0, %s117
    %s132 = sphi 0, %s118
    %s136 = sphi 0, %s136
    %s138 = sphi 0, %s136
    %s139 = sphi 0, %s138
    %s153 = sphi 0, %s139
    %s157 = sphi 0, %s157
    %s159 = sphi 0, %s157
    %s160 = sphi 0, %s159
    %s174 = sphi 0, %s160
    %s178 = sphi 0, %s178
    %s180 = sphi 0, %s178
    %s181 = sphi 0, %s180
    %s195 = sphi 0, %s181
    %s199 = sphi 0, %s199
    %s201 = sphi 0, %s199
    %s202 = sphi 0, %s201
    %s216 = sphi 0, %s202
    %s220 = sphi 0, %s220
    %s222 = sphi 0, %s220
    %s223 = sphi 0, %s222
    %s237 = sphi 0, %s223
    %s241 = sphi 0, %s241
    %s243 = sphi 0, %s241
    %s244 = sphi 0, %s243
    %s258 = sphi 0, %s244
    %s262 = sphi 0, %s262
    %s264 = sphi 0, %s262
    %s265 = sphi 0, %s264
    %s279 = sphi 0, %s265
    %s283 = sphi 0, %s283
    %s285 = sphi 0, %s283
    %s286 = sphi 0, %s285
    %s300 = sphi 0, %s286
    %s308 = sphi 0, %s310
    %s311 = sphi 0, %s308
    %s312 = sphi 0, %s311
    %s328 = sphi 0, %s312
  $region4: #{transformer_encoder_forward.8} parent=0 // loop_header_branch
    %21 = sbr.rel (%p19) target = $region8
  $region5: #{transformer_encoder_forward.8} parent=0 // loop_body
    %s23 = ssub.s32 %s18, 1
    %s24 = ssub.s32 %s18, 2
    %s31 = sadd.s32 1, %s26
    %p32 = scmp.ge.s32.totalorder %s31, 1
    %s33 = scalar_select %p32, 0, %s31
    %s34 = sadd.s32 1, %s25
    %s35 = scalar_select %p32, %s34, %s25
    %p36 = scmp.ge.s32.totalorder %s35, 2
    %s37 = scalar_select %p36, 0, %s35
    %s38 = ssub.s32 %s25, %s37
    %s39 = ssub.s32 %s26, %s33
    %s40 = sor.u32 %s38, %s39
    %p41 = scmp.eq.s32.totalorder %s40, 0
    %s43 = sadd.s32 %s42, 1
    %s44 = scalar_select %p41, %s42, %s43
    %p47 = pneg %p41
    %p48 = scmp.eq.s32.totalorder %s18, 1
    %p49 = por %p47, %p48
    %p50 = scmp.ne.s32.totalorder %s42, %s45
    %p51 = scmp.eq.s32.totalorder %s18, 0
    %p52 = por %p50, %p51
    %p53 = scmp.ne.s32.totalorder %s42, %s45
    %p54 = scmp.eq.s32.totalorder %s23, 1
    %p55 = por %p53, %p54
    %p56 = scmp.ne.s32.totalorder %s45, %s46
    %p57 = scmp.eq.s32.totalorder %s23, 0
    %p58 = por %p56, %p57
    %p59 = scmp.ne.s32.totalorder %s45, %s46
    %p60 = scmp.eq.s32.totalorder %s24, 1
    %p61 = por %p59, %p60
    %p63 = scmp.ne.s32.totalorder %s46, %s62
    %p64 = scmp.eq.s32.totalorder %s24, 0
    %p65 = por %p63, %p64
    %s66 = ssub.s32 %s25, %s37
    %s67 = ssub.s32 %s26, %s33
    %s68 = sor.u32 %s66, %s67
    %p69 = scmp.eq.s32.totalorder %s68, 0
    %s71 = sadd.s32 %s70, 1
    %s72 = scalar_select %p69, %s70, %s71
    %p75 = pneg %p69
    %p76 = scmp.eq.s32.totalorder %s18, 1
    %p77 = por %p75, %p76
    %p78 = scmp.ne.s32.totalorder %s70, %s73
    %p79 = scmp.eq.s32.totalorder %s18, 0
    %p80 = por %p78, %p79
    %p81 = scmp.ne.s32.totalorder %s70, %s73
    %p82 = scmp.eq.s32.totalorder %s23, 1
    %p83 = por %p81, %p82
    %p84 = scmp.ne.s32.totalorder %s73, %s74
    %p85 = scmp.eq.s32.totalorder %s23, 0
    %p86 = por %p84, %p85
    %p87 = scmp.ne.s32.totalorder %s73, %s74
    %p88 = scmp.eq.s32.totalorder %s24, 1
    %p89 = por %p87, %p88
    %p91 = scmp.ne.s32.totalorder %s74, %s90
    %p92 = scmp.eq.s32.totalorder %s24, 0
    %p93 = por %p91, %p92
    %s95 = sadd.s32 %s94, 1
    %p98 = scmp.eq.s32.totalorder %s18, 1
    %p99 = scmp.ne.s32.totalorder %s94, %s96
    %p100 = scmp.eq.s32.totalorder %s18, 0
    %p101 = por %p99, %p100
    %p102 = scmp.ne.s32.totalorder %s94, %s96
    %p103 = scmp.eq.s32.totalorder %s23, 1
    %p104 = por %p102, %p103
    %p105 = scmp.ne.s32.totalorder %s96, %s97
    %p106 = scmp.eq.s32.totalorder %s23, 0
    %p107 = por %p105, %p106
    %p108 = scmp.ne.s32.totalorder %s96, %s97
    %p109 = scmp.eq.s32.totalorder %s24, 1
    %p110 = por %p108, %p109
    %p112 = scmp.ne.s32.totalorder %s97, %s111
    %p113 = scmp.eq.s32.totalorder %s24, 0
    %p114 = por %p112, %p113
    %s116 = sadd.s32 %s115, 1
    %p119 = scmp.eq.s32.totalorder %s18, 1
    %p120 = scmp.ne.s32.totalorder %s115, %s117
    %p121 = scmp.eq.s32.totalorder %s18, 0
    %p122 = por %p120, %p121
    %p123 = scmp.ne.s32.totalorder %s115, %s117
    %p124 = scmp.eq.s32.totalorder %s23, 1
    %p125 = por %p123, %p124
    %p126 = scmp.ne.s32.totalorder %s117, %s118
    %p127 = scmp.eq.s32.totalorder %s23, 0
    %p128 = por %p126, %p127
    %p129 = scmp.ne.s32.totalorder %s117, %s118
    %p130 = scmp.eq.s32.totalorder %s24, 1
    %p131 = por %p129, %p130
    %p133 = scmp.ne.s32.totalorder %s118, %s132
    %p134 = scmp.eq.s32.totalorder %s24, 0
    %p135 = por %p133, %p134
    %s137 = sadd.s32 %s136, 1
    %p140 = scmp.eq.s32.totalorder %s18, 1
    %p141 = scmp.ne.s32.totalorder %s136, %s138
    %p142 = scmp.eq.s32.totalorder %s18, 0
    %p143 = por %p141, %p142
    %p144 = scmp.ne.s32.totalorder %s136, %s138
    %p145 = scmp.eq.s32.totalorder %s23, 1
    %p146 = por %p144, %p145
    %p147 = scmp.ne.s32.totalorder %s138, %s139
    %p148 = scmp.eq.s32.totalorder %s23, 0
    %p149 = por %p147, %p148
    %p150 = scmp.ne.s32.totalorder %s138, %s139
    %p151 = scmp.eq.s32.totalorder %s24, 1
    %p152 = por %p150, %p151
    %p154 = scmp.ne.s32.totalorder %s139, %s153
    %p155 = scmp.eq.s32.totalorder %s24, 0
    %p156 = por %p154, %p155
    %s158 = sadd.s32 %s157, 1
    %p161 = scmp.eq.s32.totalorder %s18, 1
    %p162 = scmp.ne.s32.totalorder %s157, %s159
    %p163 = scmp.eq.s32.totalorder %s18, 0
    %p164 = por %p162, %p163
    %p165 = scmp.ne.s32.totalorder %s157, %s159
    %p166 = scmp.eq.s32.totalorder %s23, 1
    %p167 = por %p165, %p166
    %p168 = scmp.ne.s32.totalorder %s159, %s160
    %p169 = scmp.eq.s32.totalorder %s23, 0
    %p170 = por %p168, %p169
    %p171 = scmp.ne.s32.totalorder %s159, %s160
    %p172 = scmp.eq.s32.totalorder %s24, 1
    %p173 = por %p171, %p172
    %p175 = scmp.ne.s32.totalorder %s160, %s174
    %p176 = scmp.eq.s32.totalorder %s24, 0
    %p177 = por %p175, %p176
    %s179 = sadd.s32 %s178, 1
    %p182 = scmp.eq.s32.totalorder %s18, 1
    %p183 = scmp.ne.s32.totalorder %s178, %s180
    %p184 = scmp.eq.s32.totalorder %s18, 0
    %p185 = por %p183, %p184
    %p186 = scmp.ne.s32.totalorder %s178, %s180
    %p187 = scmp.eq.s32.totalorder %s23, 1
    %p188 = por %p186, %p187
    %p189 = scmp.ne.s32.totalorder %s180, %s181
    %p190 = scmp.eq.s32.totalorder %s23, 0
    %p191 = por %p189, %p190
    %p192 = scmp.ne.s32.totalorder %s180, %s181
    %p193 = scmp.eq.s32.totalorder %s24, 1
    %p194 = por %p192, %p193
    %p196 = scmp.ne.s32.totalorder %s181, %s195
    %p197 = scmp.eq.s32.totalorder %s24, 0
    %p198 = por %p196, %p197
    %s200 = sadd.s32 %s199, 1
    %p203 = scmp.eq.s32.totalorder %s18, 1
    %p204 = scmp.ne.s32.totalorder %s199, %s201
    %p205 = scmp.eq.s32.totalorder %s18, 0
    %p206 = por %p204, %p205
    %p207 = scmp.ne.s32.totalorder %s199, %s201
    %p208 = scmp.eq.s32.totalorder %s23, 1
    %p209 = por %p207, %p208
    %p210 = scmp.ne.s32.totalorder %s201, %s202
    %p211 = scmp.eq.s32.totalorder %s23, 0
    %p212 = por %p210, %p211
    %p213 = scmp.ne.s32.totalorder %s201, %s202
    %p214 = scmp.eq.s32.totalorder %s24, 1
    %p215 = por %p213, %p214
    %p217 = scmp.ne.s32.totalorder %s202, %s216
    %p218 = scmp.eq.s32.totalorder %s24, 0
    %p219 = por %p217, %p218
    %s221 = sadd.s32 %s220, 1
    %p224 = scmp.eq.s32.totalorder %s18, 1
    %p225 = scmp.ne.s32.totalorder %s220, %s222
    %p226 = scmp.eq.s32.totalorder %s18, 0
    %p227 = por %p225, %p226
    %p228 = scmp.ne.s32.totalorder %s220, %s222
    %p229 = scmp.eq.s32.totalorder %s23, 1
    %p230 = por %p228, %p229
    %p231 = scmp.ne.s32.totalorder %s222, %s223
    %p232 = scmp.eq.s32.totalorder %s23, 0
    %p233 = por %p231, %p232
    %p234 = scmp.ne.s32.totalorder %s222, %s223
    %p235 = scmp.eq.s32.totalorder %s24, 1
    %p236 = por %p234, %p235
    %p238 = scmp.ne.s32.totalorder %s223, %s237
    %p239 = scmp.eq.s32.totalorder %s24, 0
    %p240 = por %p238, %p239
    %s242 = sadd.s32 %s241, 1
    %p245 = scmp.eq.s32.totalorder %s18, 1
    %p246 = scmp.ne.s32.totalorder %s241, %s243
    %p247 = scmp.eq.s32.totalorder %s18, 0
    %p248 = por %p246, %p247
    %p249 = scmp.ne.s32.totalorder %s241, %s243
    %p250 = scmp.eq.s32.totalorder %s23, 1
    %p251 = por %p249, %p250
    %p252 = scmp.ne.s32.totalorder %s243, %s244
    %p253 = scmp.eq.s32.totalorder %s23, 0
    %p254 = por %p252, %p253
    %p255 = scmp.ne.s32.totalorder %s243, %s244
    %p256 = scmp.eq.s32.totalorder %s24, 1
    %p257 = por %p255, %p256
    %p259 = scmp.ne.s32.totalorder %s244, %s258
    %p260 = scmp.eq.s32.totalorder %s24, 0
    %p261 = por %p259, %p260
    %s263 = sadd.s32 %s262, 1
    %p266 = scmp.eq.s32.totalorder %s18, 1
    %p267 = scmp.ne.s32.totalorder %s262, %s264
    %p268 = scmp.eq.s32.totalorder %s18, 0
    %p269 = por %p267, %p268
    %p270 = scmp.ne.s32.totalorder %s262, %s264
    %p271 = scmp.eq.s32.totalorder %s23, 1
    %p272 = por %p270, %p271
    %p273 = scmp.ne.s32.totalorder %s264, %s265
    %p274 = scmp.eq.s32.totalorder %s23, 0
    %p275 = por %p273, %p274
    %p276 = scmp.ne.s32.totalorder %s264, %s265
    %p277 = scmp.eq.s32.totalorder %s24, 1
    %p278 = por %p276, %p277
    %p280 = scmp.ne.s32.totalorder %s265, %s279
    %p281 = scmp.eq.s32.totalorder %s24, 0
    %p282 = por %p280, %p281
    %s284 = sadd.s32 %s283, 1
    %p287 = scmp.eq.s32.totalorder %s18, 1
    %p288 = scmp.ne.s32.totalorder %s283, %s285
    %p289 = scmp.eq.s32.totalorder %s18, 0
    %p290 = por %p288, %p289
    %p291 = scmp.ne.s32.totalorder %s283, %s285
    %p292 = scmp.eq.s32.totalorder %s23, 1
    %p293 = por %p291, %p292
    %p294 = scmp.ne.s32.totalorder %s285, %s286
    %p295 = scmp.eq.s32.totalorder %s23, 0
    %p296 = por %p294, %p295
    %p297 = scmp.ne.s32.totalorder %s285, %s286
    %p298 = scmp.eq.s32.totalorder %s24, 1
    %p299 = por %p297, %p298
    %p301 = scmp.ne.s32.totalorder %s286, %s300
    %p302 = scmp.eq.s32.totalorder %s24, 0
    %p303 = por %p301, %p302
    %s304 = ssub.s32 %s25, %s37
    %s305 = ssub.s32 %s26, %s33
    %s306 = sor.u32 %s304, %s305
    %p307 = scmp.eq.s32.totalorder %s306, 0
    %s309 = sadd.s32 %s308, 1
    %s310 = scalar_select %p307, %s308, %s309
    %p313 = pneg %p307
    %p314 = scmp.eq.s32.totalorder %s18, 1
    %p315 = por %p313, %p314
    %p316 = scmp.ne.s32.totalorder %s308, %s311
    %p317 = scmp.eq.s32.totalorder %s18, 0
    %p318 = por %p316, %p317
    %p319 = scmp.ne.s32.totalorder %s308, %s311
    %p320 = scmp.eq.s32.totalorder %s23, 1
    %p321 = por %p319, %p320
    %p322 = scmp.ne.s32.totalorder %s311, %s312
    %p323 = scmp.eq.s32.totalorder %s23, 0
    %p324 = por %p322, %p323
    %p325 = scmp.ne.s32.totalorder %s311, %s312
    %p326 = scmp.eq.s32.totalorder %s24, 1
    %p327 = por %p325, %p326
    %p329 = scmp.ne.s32.totalorder %s312, %s328
    %p330 = scmp.eq.s32.totalorder %s24, 0
    %p331 = por %p329, %p330
    %p332 = scmp.le.s32.totalorder 1, %s18
    %p333 = scmp.lt.s32.totalorder %s18, 3
    %p334 = pnand %p332, %p333
    %p335 = pneg %p334
    // Predicated region
    $region9: #{transformer_encoder_forward.8} parent=5 // pred_check
      _
    $region10: #{transformer_encoder_forward.8} parent=5 // pred_check_branch
      %337 = sbr.rel (%p334) target = $region12
    $region11: #{transformer_encoder_forward.8} parent=5 // pred_region
      %s338 = ssub.s32 %s18, 1
      // Predicated region
      $region13: #{transformer_encoder_forward.8} parent=11 // pred_check
        %p339 = pneg %p107
      $region14: #{transformer_encoder_forward.8} parent=11 // pred_check_branch
        %341 = sbr.rel (%p339) target = $region16
      $region15: #{transformer_encoder_forward.8} parent=11 // pred_region
        _
      $region16: #{transformer_encoder_forward.8} parent=11 // pred_fallthru
        _
      // Predicated region
      $region17: #{transformer_encoder_forward.8} parent=11 // pred_check
        %p342 = pneg %p128
      $region18: #{transformer_encoder_forward.8} parent=11 // pred_check_branch
        %344 = sbr.rel (%p342) target = $region20
      $region19: #{transformer_encoder_forward.8} parent=11 // pred_region
        _
      $region20: #{transformer_encoder_forward.8} parent=11 // pred_fallthru
        _
      // Predicated region
      $region21: #{transformer_encoder_forward.8} parent=11 // pred_check
        %p345 = pneg %p149
      $region22: #{transformer_encoder_forward.8} parent=11 // pred_check_branch
        %347 = sbr.rel (%p345) target = $region24
      $region23: #{transformer_encoder_forward.8} parent=11 // pred_region
        _
      $region24: #{transformer_encoder_forward.8} parent=11 // pred_fallthru
        _
      // Predicated region
      $region25: #{transformer_encoder_forward.8} parent=11 // pred_check
        %p348 = pneg %p170
      $region26: #{transformer_encoder_forward.8} parent=11 // pred_check_branch
        %350 = sbr.rel (%p348) target = $region28
      $region27: #{transformer_encoder_forward.8} parent=11 // pred_region
        _
      $region28: #{transformer_encoder_forward.8} parent=11 // pred_fallthru
        _
      // Predicated region
      $region29: #{transformer_encoder_forward.8} parent=11 // pred_check
        %p351 = pneg %p191
      $region30: #{transformer_encoder_forward.8} parent=11 // pred_check_branch
        %353 = sbr.rel (%p351) target = $region32
      $region31: #{transformer_encoder_forward.8} parent=11 // pred_region
        _
      $region32: #{transformer_encoder_forward.8} parent=11 // pred_fallthru
        _
      // Predicated region
      $region33: #{transformer_encoder_forward.8} parent=11 // pred_check
        %p354 = pneg %p212
      $region34: #{transformer_encoder_forward.8} parent=11 // pred_check_branch
        %356 = sbr.rel (%p354) target = $region36
      $region35: #{transformer_encoder_forward.8} parent=11 // pred_region
        _
      $region36: #{transformer_encoder_forward.8} parent=11 // pred_fallthru
        _
      // Predicated region
      $region37: #{transformer_encoder_forward.8} parent=11 // pred_check
        %p357 = pneg %p233
      $region38: #{transformer_encoder_forward.8} parent=11 // pred_check_branch
        %359 = sbr.rel (%p357) target = $region40
      $region39: #{transformer_encoder_forward.8} parent=11 // pred_region
        _
      $region40: #{transformer_encoder_forward.8} parent=11 // pred_fallthru
        _
      // Predicated region
      $region41: #{transformer_encoder_forward.8} parent=11 // pred_check
        %p360 = pneg %p254
      $region42: #{transformer_encoder_forward.8} parent=11 // pred_check_branch
        %362 = sbr.rel (%p360) target = $region44
      $region43: #{transformer_encoder_forward.8} parent=11 // pred_region
        _
      $region44: #{transformer_encoder_forward.8} parent=11 // pred_fallthru
        _
      // Predicated region
      $region45: #{transformer_encoder_forward.8} parent=11 // pred_check
        %p363 = pneg %p275
      $region46: #{transformer_encoder_forward.8} parent=11 // pred_check_branch
        %365 = sbr.rel (%p363) target = $region48
      $region47: #{transformer_encoder_forward.8} parent=11 // pred_region
        _
      $region48: #{transformer_encoder_forward.8} parent=11 // pred_fallthru
        _
      // Predicated region
      $region49: #{transformer_encoder_forward.8} parent=11 // pred_check
        %p366 = pneg %p296
      $region50: #{transformer_encoder_forward.8} parent=11 // pred_check_branch
        %368 = sbr.rel (%p366) target = $region52
      $region51: #{transformer_encoder_forward.8} parent=11 // pred_region
        _
      $region52: #{transformer_encoder_forward.8} parent=11 // pred_fallthru
        _
    $region12: #{transformer_encoder_forward.8} parent=5 // pred_fallthru
      _
    %p369 = scmp.lt.s32.totalorder %s18, 2
    // Predicated region
    $region53: #{transformer_encoder_forward.8} parent=5 // pred_check
      %p370 = pneg %p369
    $region54: #{transformer_encoder_forward.8} parent=5 // pred_check_branch
      %372 = sbr.rel (%p370) target = $region56
    $region55: #{transformer_encoder_forward.8} parent=5 // pred_region
      // Predicated region
      $region57: #{transformer_encoder_forward.8} parent=55 // pred_check
        %p373 = pneg %p52
      $region58: #{transformer_encoder_forward.8} parent=55 // pred_check_branch
        %375 = sbr.rel (%p373) target = $region60
      $region59: #{transformer_encoder_forward.8} parent=55 // pred_region
        %p376 = scmp.lt.s32.totalorder %s25, 1
        %s377 = scalar_select %p376, %s25, 1
        %p378 = scmp.lt.s32.totalorder %s26, 0
        %s379 = scalar_select %p378, %s26, 0
        %s380 = sadd.s32 %s379, %s377
        %s381 = smul.addr %s380, 8
        %s382 = scalar_lea.vmem %s0, %s381
      $region60: #{transformer_encoder_forward.8} parent=55 // pred_fallthru
        _
      // Predicated region
      $region61: #{transformer_encoder_forward.8} parent=55 // pred_check
        %p383 = pneg %p80
      $region62: #{transformer_encoder_forward.8} parent=55 // pred_check_branch
        %385 = sbr.rel (%p383) target = $region64
      $region63: #{transformer_encoder_forward.8} parent=55 // pred_region
        %p386 = scmp.lt.s32.totalorder %s25, 1
        %s387 = scalar_select %p386, %s25, 1
        %p388 = scmp.lt.s32.totalorder %s26, 0
        %s389 = scalar_select %p388, %s26, 0
        %s390 = sadd.s32 %s389, %s387
        %s391 = smul.addr %s390, 4
        %s392 = scalar_lea.vmem %s1, %s391
      $region64: #{transformer_encoder_forward.8} parent=55 // pred_fallthru
        _
    $region56: #{transformer_encoder_forward.8} parent=5 // pred_fallthru
      _
    %p393 = scmp.le.s32.totalorder 1, %s18
    %p394 = scmp.lt.s32.totalorder %s18, 3
    %p395 = pnand %p393, %p394
    %p396 = pneg %p395
    // Predicated region
    $region65: #{transformer_encoder_forward.8} parent=5 // pred_check
      _
    $region66: #{transformer_encoder_forward.8} parent=5 // pred_check_branch
      %398 = sbr.rel (%p395) target = $region68
    $region67: #{transformer_encoder_forward.8} parent=5 // pred_region
      %s399 = ssub.s32 %s18, 1
      %p400 = scmp.lt.s32.totalorder %s27, 1
      %s401 = scalar_select %p400, %s27, 1
      %p402 = scmp.lt.s32.totalorder %s28, 0
      %s403 = scalar_select %p402, %s28, 0
      %s404 = sadd.s32 %s403, %s401
      %s405 = smul.addr %s404, 8
      %s406 = scalar_lea.vmem %s0, %s405
      %p407 = pneg %p58
      %p408 = pneg %p55
      %p409 = scmp.lt.s32.totalorder %s27, 1
      %s410 = scalar_select %p409, %s27, 1
      %p411 = scmp.lt.s32.totalorder %s28, 0
      %s412 = scalar_select %p411, %s28, 0
      %s413 = sadd.s32 %s412, %s410
      %s414 = smul.addr %s413, 4
      %s415 = scalar_lea.vmem %s1, %s414
      %p416 = pneg %p86
      %p417 = pneg %p83
      %p418 = pneg %p107
      %p419 = pneg %p104
      %p420 = pneg %p128
      %p421 = pneg %p125
      %p422 = pneg %p149
      %p423 = pneg %p146
      %p424 = pneg %p170
      %p425 = pneg %p167
      %p426 = pneg %p191
      %p427 = pneg %p188
      %p428 = pneg %p212
      %p429 = pneg %p209
      %p430 = pneg %p233
      %p431 = pneg %p230
      %p432 = pneg %p254
      %p433 = pneg %p251
      %p434 = pneg %p275
      %p435 = pneg %p272
      %p436 = pneg %p296
      %p437 = pneg %p293
      %p438 = pneg %p324
      %p439 = pneg %p321
      %p440 = scmp.lt.s32.totalorder %s27, 1
      %s441 = scalar_select %p440, %s27, 1
      %p442 = scmp.lt.s32.totalorder %s28, 0
      %s443 = scalar_select %p442, %s28, 0
      %s444 = sadd.s32 %s443, %s441
      %s445 = smul.addr %s444, 4
      %s446 = scalar_lea.vmem %s12, %s445
      %p447 = scmp.lt.s32.totalorder %s27, 1
      %s448 = scalar_select %p447, %s27, 1
      %p449 = scmp.lt.s32.totalorder %s28, 0
      %s450 = scalar_select %p449, %s28, 0
      %s451 = sadd.s32 %s450, %s448
      %s452 = smul.addr %s451, 8
      %s453 = scalar_lea.vmem %s0, %s452
      %p454 = scmp.lt.s32.totalorder %s27, 1
      %s455 = scalar_select %p454, %s27, 1
      %p456 = scmp.lt.s32.totalorder %s28, 0
      %s457 = scalar_select %p456, %s28, 0
      %s458 = sadd.s32 %s457, %s455
      %s459 = smul.addr %s458, 4
      %s460 = scalar_lea.vmem %s1, %s459
      %p461 = scmp.lt.s32.totalorder %s27, 1
      %s462 = scalar_select %p461, %s27, 1
      %p463 = scmp.lt.s32.totalorder %s28, 0
      %s464 = scalar_select %p463, %s28, 0
      %s465 = sadd.s32 %s464, %s462
      %s466 = smul.addr %s465, 4
      %s467 = scalar_lea.vmem %s12, %s466
      %v469 = vld [vmem:[%s453] sm:$0xff]
      %v470 = vld [vmem:[%s460] sm:$0xf]
      %v471 = vld [vmem:[%s2] sm:$0xf]
      %v472 = vld [vmem:[%s2 + $0x4] sm:$0xf]
      %v473 = vld [vmem:[%s2 + $0x8] sm:$0xf]
      %v474 = vld [vmem:[%s2 + $0xc] sm:$0xf]
      %v475 = vld [vmem:[%s3] sm:$0x1]
      %v477 = vperm.slane %v475, 0
      %v483 = vunpack.c.l.b16 %v471
      %v484 = vunpack.c.l.b16 %v472
      %v485 = vunpack.c.l.b16 %v473
      %v486 = vunpack.c.l.b16 %v474
      %v487 = vpack.c.b16 %v484, %v483
      %v488 = vpack.c.b16 %v486, %v485
      %vm491 = vcmask 261120
      %v493 = vsel %vm491, %v470, 0
      %495 = vmatpush.bf16.msra.mxu0 0
      %496 = vmatpush.bf16.msra.mxu0 0
      %497 = vmatpush.bf16.msra.mxu0 0
      %498 = vmatpush.bf16.msra.mxu0 0
      %499 = vmatpush.bf16.msra.mxu0 0
      %500 = vmatpush.bf16.msra.mxu0 0
      %501 = vmatpush.bf16.msra.mxu0 %v488
      %502 = vmatpush.bf16.msra.mxu0 %v487
      %503 = vmatmul.bf16.gmra.mxu0 %v493
      %v504 = vpop.f32.mrf.mxu0
      %v505 = vadd.f32 %v477, %v504
      %v506 = vpop.f32.mrf.mxu0
      %507 = vdwg.mxu0
      %v508 = vadd.f32 %v469, %v505
      %v509 = vld [vmem:[%s4] sm:$0x1]
      %v510 = vld [vmem:[%s5] sm:$0x1]
      %v511 = vsel %vm491, %v508, 0.0
      %512 = vadd.xlane.f32.xlu0 %v511
      %v513 = vpop.xlane.xlu0 %512
      %v514 = vrcp.pop 32.0
      %v515 = vmul.f32 32.0, %v514
      %v516 = vsub.f32 1.0, %v515
      %v517 = vmul.f32 %v514, %v516
      %v518 = vadd.f32 %v514, %v517
      %vm519 = vweird.f32 %v514
      %v520 = vsel %vm519, %v514, %v518
      %v521 = vmul.f32 %v513, %v520
      %v522 = vsub.f32 %v508, %v521
      %v523 = vmul.f32 %v522, %v522
      %v524 = vsel %vm491, %v523, 0.0
      %525 = vadd.xlane.f32.xlu0 %v524
      %v526 = vpop.xlane.xlu0 %525
      %v527 = vmul.f32 %v526, %v520
      %v528 = vadd.f32 %v527, 1e-05
      %v529 = vrsqrt.pop %v528
      %v530 = vmul.f32 %v529, %v528
      %v531 = vmul.f32 %v530, %v529
      %v532 = vmul.f32 0.5, %v531
      %v533 = vsub.f32 1.5, %v532
      %v534 = vmul.f32 %v529, %v533
      %vm535 = vweird.f32 %v528
      %vm536 = vweird.f32 %v529
      %vm537 = vmor %vm535, %vm536
      %v538 = vsel %vm537, %v529, %v534
      %v539 = vmul.f32 %v522, %v538
      %v541 = vperm.slane %v509, 0
      %v543 = vmul.f32 %v539, %v541
      %v545 = vperm.slane %v510, 0
      %v547 = vadd.f32 %v543, %v545
      %v548 = vpack.c.bf16 %v547, %v547
      %v549 = vld [vmem:[%s6] sm:$0xff]
      %v550 = vld [vmem:[%s6 + $0x8] sm:$0xff]
      %v551 = vld [vmem:[%s6 + $0x10] sm:$0xff]
      %v552 = vld [vmem:[%s6 + $0x18] sm:$0xff]
      %v553 = vld [vmem:[%s6 + $0x20] sm:$0xff]
      %v554 = vld [vmem:[%s6 + $0x28] sm:$0xff]
      %v555 = vld [vmem:[%s6 + $0x30] sm:$0xff]
      %v556 = vld [vmem:[%s6 + $0x38] sm:$0xff]
      %v557 = vld [vmem:[%s6 + $0x40] sm:$0xff]
      %v558 = vld [vmem:[%s6 + $0x48] sm:$0xff]
      %v559 = vld [vmem:[%s6 + $0x50] sm:$0xff]
      %v560 = vld [vmem:[%s6 + $0x58] sm:$0xff]
      %v561 = vld [vmem:[%s6 + $0x60] sm:$0xff]
      %v562 = vld [vmem:[%s6 + $0x68] sm:$0xff]
      %v563 = vld [vmem:[%s6 + $0x70] sm:$0xff]
      %v564 = vld [vmem:[%s6 + $0x78] sm:$0xff]
      %v565 = vld [vmem:[%s6 + $0x80] sm:$0xff]
      %v566 = vld [vmem:[%s6 + $0x88] sm:$0xff]
      %v567 = vld [vmem:[%s6 + $0x90] sm:$0xff]
      %v568 = vld [vmem:[%s6 + $0x98] sm:$0xff]
      %v569 = vld [vmem:[%s6 + $0xa0] sm:$0xff]
      %v570 = vld [vmem:[%s6 + $0xa8] sm:$0xff]
      %v571 = vld [vmem:[%s6 + $0xb0] sm:$0xff]
      %v572 = vld [vmem:[%s6 + $0xb8] sm:$0xff]
      %v573 = vld [vmem:[%s6 + $0xc0] sm:$0xff]
      %v574 = vld [vmem:[%s6 + $0xc8] sm:$0xff]
      %v575 = vld [vmem:[%s6 + $0xd0] sm:$0xff]
      %v576 = vld [vmem:[%s6 + $0xd8] sm:$0xff]
      %v577 = vld [vmem:[%s6 + $0xe0] sm:$0xff]
      %v578 = vld [vmem:[%s6 + $0xe8] sm:$0xff]
      %v579 = vld [vmem:[%s6 + $0xf0] sm:$0xff]
      %v580 = vld [vmem:[%s6 + $0xf8] sm:$0xff]
      %v581 = vld [vmem:[%s7] sm:$0xff]
      %v582 = vld [vmem:[%s7 + $0x8] sm:$0xff]
      %v585 = vperm.slane %v581, 0
      %v586 = vperm.slane %v581, 1
      %v587 = vperm.slane %v581, 2
      %v588 = vperm.slane %v581, 3
      %v589 = vperm.slane %v581, 4
      %v590 = vperm.slane %v581, 5
      %v591 = vperm.slane %v581, 6
      %v592 = vperm.slane %v581, 7
      %v593 = vperm.slane %v582, 0
      %v594 = vperm.slane %v582, 1
      %v595 = vperm.slane %v582, 2
      %v596 = vperm.slane %v582, 3
      %v597 = vperm.slane %v582, 4
      %v598 = vperm.slane %v582, 5
      %v599 = vperm.slane %v582, 6
      %v600 = vperm.slane %v582, 7
      %v649 = vunpack.c.l.b16 %v549
      %v650 = vunpack.c.h.b16 %v549
      %v651 = vunpack.c.l.b16 %v550
      %v652 = vunpack.c.h.b16 %v550
      %v653 = vunpack.c.l.b16 %v551
      %v654 = vunpack.c.h.b16 %v551
      %v655 = vunpack.c.l.b16 %v552
      %v656 = vunpack.c.h.b16 %v552
      %v657 = vunpack.c.l.b16 %v553
      %v658 = vunpack.c.h.b16 %v553
      %v659 = vunpack.c.l.b16 %v554
      %v660 = vunpack.c.h.b16 %v554
      %v661 = vunpack.c.l.b16 %v555
      %v662 = vunpack.c.h.b16 %v555
      %v663 = vunpack.c.l.b16 %v556
      %v664 = vunpack.c.h.b16 %v556
      %v665 = vunpack.c.l.b16 %v557
      %v666 = vunpack.c.h.b16 %v557
      %v667 = vunpack.c.l.b16 %v558
      %v668 = vunpack.c.h.b16 %v558
      %v669 = vunpack.c.l.b16 %v559
      %v670 = vunpack.c.h.b16 %v559
      %v671 = vunpack.c.l.b16 %v560
      %v672 = vunpack.c.h.b16 %v560
      %v673 = vunpack.c.l.b16 %v561
      %v674 = vunpack.c.h.b16 %v561
      %v675 = vunpack.c.l.b16 %v562
      %v676 = vunpack.c.h.b16 %v562
      %v677 = vunpack.c.l.b16 %v563
      %v678 = vunpack.c.h.b16 %v563
      %v679 = vunpack.c.l.b16 %v564
      %v680 = vunpack.c.h.b16 %v564
      %v681 = vunpack.c.l.b16 %v565
      %v682 = vunpack.c.h.b16 %v565
      %v683 = vunpack.c.l.b16 %v566
      %v684 = vunpack.c.h.b16 %v566
      %v685 = vunpack.c.l.b16 %v567
      %v686 = vunpack.c.h.b16 %v567
      %v687 = vunpack.c.l.b16 %v568
      %v688 = vunpack.c.h.b16 %v568
      %v689 = vunpack.c.l.b16 %v569
      %v690 = vunpack.c.h.b16 %v569
      %v691 = vunpack.c.l.b16 %v570
      %v692 = vunpack.c.h.b16 %v570
      %v693 = vunpack.c.l.b16 %v571
      %v694 = vunpack.c.h.b16 %v571
      %v695 = vunpack.c.l.b16 %v572
      %v696 = vunpack.c.h.b16 %v572
      %v697 = vunpack.c.l.b16 %v573
      %v698 = vunpack.c.h.b16 %v573
      %v699 = vunpack.c.l.b16 %v574
      %v700 = vunpack.c.h.b16 %v574
      %v701 = vunpack.c.l.b16 %v575
      %v702 = vunpack.c.h.b16 %v575
      %v703 = vunpack.c.l.b16 %v576
      %v704 = vunpack.c.h.b16 %v576
      %v705 = vunpack.c.l.b16 %v577
      %v706 = vunpack.c.h.b16 %v577
      %v707 = vunpack.c.l.b16 %v578
      %v708 = vunpack.c.h.b16 %v578
      %v709 = vunpack.c.l.b16 %v579
      %v710 = vunpack.c.h.b16 %v579
      %v711 = vunpack.c.l.b16 %v580
      %v712 = vunpack.c.h.b16 %v580
      %v713 = vpack.c.b16 %v665, %v649
      %v714 = vpack.c.b16 %v666, %v650
      %v715 = vpack.c.b16 %v667, %v651
      %v716 = vpack.c.b16 %v668, %v652
      %v717 = vpack.c.b16 %v669, %v653
      %v718 = vpack.c.b16 %v670, %v654
      %v719 = vpack.c.b16 %v671, %v655
      %v720 = vpack.c.b16 %v672, %v656
      %v721 = vpack.c.b16 %v673, %v657
      %v722 = vpack.c.b16 %v674, %v658
      %v723 = vpack.c.b16 %v675, %v659
      %v724 = vpack.c.b16 %v676, %v660
      %v725 = vpack.c.b16 %v677, %v661
      %v726 = vpack.c.b16 %v678, %v662
      %v727 = vpack.c.b16 %v679, %v663
      %v728 = vpack.c.b16 %v680, %v664
      %v729 = vpack.c.b16 %v697, %v681
      %v730 = vpack.c.b16 %v698, %v682
      %v731 = vpack.c.b16 %v699, %v683
      %v732 = vpack.c.b16 %v700, %v684
      %v733 = vpack.c.b16 %v701, %v685
      %v734 = vpack.c.b16 %v702, %v686
      %v735 = vpack.c.b16 %v703, %v687
      %v736 = vpack.c.b16 %v704, %v688
      %v737 = vpack.c.b16 %v705, %v689
      %v738 = vpack.c.b16 %v706, %v690
      %v739 = vpack.c.b16 %v707, %v691
      %v740 = vpack.c.b16 %v708, %v692
      %v741 = vpack.c.b16 %v709, %v693
      %v742 = vpack.c.b16 %v710, %v694
      %v743 = vpack.c.b16 %v711, %v695
      %v744 = vpack.c.b16 %v712, %v696
      %v778 = vsel %vm491, %v548, 0
      %780 = vmatpush.bf16.msra.mxu0 0
      %781 = vmatpush.bf16.msra.mxu0 0
      %782 = vmatpush.bf16.msra.mxu0 0
      %783 = vmatpush.bf16.msra.mxu0 0
      %784 = vmatpush.bf16.msra.mxu0 0
      %785 = vmatpush.bf16.msra.mxu0 0
      %786 = vmatpush.bf16.msra.mxu0 %v729
      %787 = vmatpush.bf16.msra.mxu0 %v713
      %788 = vmatmul.bf16.gmra.mxu0 %v778
      %v789 = vpop.f32.mrf.mxu0
      %v790 = vadd.f32 %v585, %v789
      %v791 = vpop.f32.mrf.mxu0
      %792 = vdwg.mxu0
      %793 = vmatpush.bf16.msra.mxu0 0
      %794 = vmatpush.bf16.msra.mxu0 0
      %795 = vmatpush.bf16.msra.mxu0 0
      %796 = vmatpush.bf16.msra.mxu0 0
      %797 = vmatpush.bf16.msra.mxu0 0
      %798 = vmatpush.bf16.msra.mxu0 0
      %799 = vmatpush.bf16.msra.mxu0 %v730
      %800 = vmatpush.bf16.msra.mxu0 %v714
      %801 = vmatmul.bf16.gmra.mxu0 %v778
      %v802 = vpop.f32.mrf.mxu0
      %v803 = vadd.f32 %v586, %v802
      %v804 = vpop.f32.mrf.mxu0
      %805 = vdwg.mxu0
      %806 = vmatpush.bf16.msra.mxu0 0
      %807 = vmatpush.bf16.msra.mxu0 0
      %808 = vmatpush.bf16.msra.mxu0 0
      %809 = vmatpush.bf16.msra.mxu0 0
      %810 = vmatpush.bf16.msra.mxu0 0
      %811 = vmatpush.bf16.msra.mxu0 0
      %812 = vmatpush.bf16.msra.mxu0 %v731
      %813 = vmatpush.bf16.msra.mxu0 %v715
      %814 = vmatmul.bf16.gmra.mxu0 %v778
      %v815 = vpop.f32.mrf.mxu0
      %v816 = vadd.f32 %v587, %v815
      %v817 = vpop.f32.mrf.mxu0
      %818 = vdwg.mxu0
      %819 = vmatpush.bf16.msra.mxu0 0
      %820 = vmatpush.bf16.msra.mxu0 0
      %821 = vmatpush.bf16.msra.mxu0 0
      %822 = vmatpush.bf16.msra.mxu0 0
      %823 = vmatpush.bf16.msra.mxu0 0
      %824 = vmatpush.bf16.msra.mxu0 0
      %825 = vmatpush.bf16.msra.mxu0 %v732
      %826 = vmatpush.bf16.msra.mxu0 %v716
      %827 = vmatmul.bf16.gmra.mxu0 %v778
      %v828 = vpop.f32.mrf.mxu0
      %v829 = vadd.f32 %v588, %v828
      %v830 = vpop.f32.mrf.mxu0
      %831 = vdwg.mxu0
      %832 = vmatpush.bf16.msra.mxu0 0
      %833 = vmatpush.bf16.msra.mxu0 0
      %834 = vmatpush.bf16.msra.mxu0 0
      %835 = vmatpush.bf16.msra.mxu0 0
      %836 = vmatpush.bf16.msra.mxu0 0
      %837 = vmatpush.bf16.msra.mxu0 0
      %838 = vmatpush.bf16.msra.mxu0 %v733
      %839 = vmatpush.bf16.msra.mxu0 %v717
      %840 = vmatmul.bf16.gmra.mxu0 %v778
      %v841 = vpop.f32.mrf.mxu0
      %v842 = vadd.f32 %v589, %v841
      %v843 = vpop.f32.mrf.mxu0
      %844 = vdwg.mxu0
      %845 = vmatpush.bf16.msra.mxu0 0
      %846 = vmatpush.bf16.msra.mxu0 0
      %847 = vmatpush.bf16.msra.mxu0 0
      %848 = vmatpush.bf16.msra.mxu0 0
      %849 = vmatpush.bf16.msra.mxu0 0
      %850 = vmatpush.bf16.msra.mxu0 0
      %851 = vmatpush.bf16.msra.mxu0 %v734
      %852 = vmatpush.bf16.msra.mxu0 %v718
      %853 = vmatmul.bf16.gmra.mxu0 %v778
      %v854 = vpop.f32.mrf.mxu0
      %v855 = vadd.f32 %v590, %v854
      %v856 = vpop.f32.mrf.mxu0
      %857 = vdwg.mxu0
      %858 = vmatpush.bf16.msra.mxu0 0
      %859 = vmatpush.bf16.msra.mxu0 0
      %860 = vmatpush.bf16.msra.mxu0 0
      %861 = vmatpush.bf16.msra.mxu0 0
      %862 = vmatpush.bf16.msra.mxu0 0
      %863 = vmatpush.bf16.msra.mxu0 0
      %864 = vmatpush.bf16.msra.mxu0 %v735
      %865 = vmatpush.bf16.msra.mxu0 %v719
      %866 = vmatmul.bf16.gmra.mxu0 %v778
      %v867 = vpop.f32.mrf.mxu0
      %v868 = vadd.f32 %v591, %v867
      %v869 = vpop.f32.mrf.mxu0
      %870 = vdwg.mxu0
      %871 = vmatpush.bf16.msra.mxu0 0
      %872 = vmatpush.bf16.msra.mxu0 0
      %873 = vmatpush.bf16.msra.mxu0 0
      %874 = vmatpush.bf16.msra.mxu0 0
      %875 = vmatpush.bf16.msra.mxu0 0
      %876 = vmatpush.bf16.msra.mxu0 0
      %877 = vmatpush.bf16.msra.mxu0 %v736
      %878 = vmatpush.bf16.msra.mxu0 %v720
      %879 = vmatmul.bf16.gmra.mxu0 %v778
      %v880 = vpop.f32.mrf.mxu0
      %v881 = vadd.f32 %v592, %v880
      %v882 = vpop.f32.mrf.mxu0
      %883 = vdwg.mxu0
      %884 = vmatpush.bf16.msra.mxu0 0
      %885 = vmatpush.bf16.msra.mxu0 0
      %886 = vmatpush.bf16.msra.mxu0 0
      %887 = vmatpush.bf16.msra.mxu0 0
      %888 = vmatpush.bf16.msra.mxu0 0
      %889 = vmatpush.bf16.msra.mxu0 0
      %890 = vmatpush.bf16.msra.mxu0 %v737
      %891 = vmatpush.bf16.msra.mxu0 %v721
      %892 = vmatmul.bf16.gmra.mxu0 %v778
      %v893 = vpop.f32.mrf.mxu0
      %v894 = vadd.f32 %v593, %v893
      %v895 = vpop.f32.mrf.mxu0
      %896 = vdwg.mxu0
      %897 = vmatpush.bf16.msra.mxu0 0
      %898 = vmatpush.bf16.msra.mxu0 0
      %899 = vmatpush.bf16.msra.mxu0 0
      %900 = vmatpush.bf16.msra.mxu0 0
      %901 = vmatpush.bf16.msra.mxu0 0
      %902 = vmatpush.bf16.msra.mxu0 0
      %903 = vmatpush.bf16.msra.mxu0 %v738
      %904 = vmatpush.bf16.msra.mxu0 %v722
      %905 = vmatmul.bf16.gmra.mxu0 %v778
      %v906 = vpop.f32.mrf.mxu0
      %v907 = vadd.f32 %v594, %v906
      %v908 = vpop.f32.mrf.mxu0
      %909 = vdwg.mxu0
      %910 = vmatpush.bf16.msra.mxu0 0
      %911 = vmatpush.bf16.msra.mxu0 0
      %912 = vmatpush.bf16.msra.mxu0 0
      %913 = vmatpush.bf16.msra.mxu0 0
      %914 = vmatpush.bf16.msra.mxu0 0
      %915 = vmatpush.bf16.msra.mxu0 0
      %916 = vmatpush.bf16.msra.mxu0 %v739
      %917 = vmatpush.bf16.msra.mxu0 %v723
      %918 = vmatmul.bf16.gmra.mxu0 %v778
      %v919 = vpop.f32.mrf.mxu0
      %v920 = vadd.f32 %v595, %v919
      %v921 = vpop.f32.mrf.mxu0
      %922 = vdwg.mxu0
      %923 = vmatpush.bf16.msra.mxu0 0
      %924 = vmatpush.bf16.msra.mxu0 0
      %925 = vmatpush.bf16.msra.mxu0 0
      %926 = vmatpush.bf16.msra.mxu0 0
      %927 = vmatpush.bf16.msra.mxu0 0
      %928 = vmatpush.bf16.msra.mxu0 0
      %929 = vmatpush.bf16.msra.mxu0 %v740
      %930 = vmatpush.bf16.msra.mxu0 %v724
      %931 = vmatmul.bf16.gmra.mxu0 %v778
      %v932 = vpop.f32.mrf.mxu0
      %v933 = vadd.f32 %v596, %v932
      %v934 = vpop.f32.mrf.mxu0
      %935 = vdwg.mxu0
      %936 = vmatpush.bf16.msra.mxu0 0
      %937 = vmatpush.bf16.msra.mxu0 0
      %938 = vmatpush.bf16.msra.mxu0 0
      %939 = vmatpush.bf16.msra.mxu0 0
      %940 = vmatpush.bf16.msra.mxu0 0
      %941 = vmatpush.bf16.msra.mxu0 0
      %942 = vmatpush.bf16.msra.mxu0 %v741
      %943 = vmatpush.bf16.msra.mxu0 %v725
      %944 = vmatmul.bf16.gmra.mxu0 %v778
      %v945 = vpop.f32.mrf.mxu0
      %v946 = vadd.f32 %v597, %v945
      %v947 = vpop.f32.mrf.mxu0
      %948 = vdwg.mxu0
      %949 = vmatpush.bf16.msra.mxu0 0
      %950 = vmatpush.bf16.msra.mxu0 0
      %951 = vmatpush.bf16.msra.mxu0 0
      %952 = vmatpush.bf16.msra.mxu0 0
      %953 = vmatpush.bf16.msra.mxu0 0
      %954 = vmatpush.bf16.msra.mxu0 0
      %955 = vmatpush.bf16.msra.mxu0 %v742
      %956 = vmatpush.bf16.msra.mxu0 %v726
      %957 = vmatmul.bf16.gmra.mxu0 %v778
      %v958 = vpop.f32.mrf.mxu0
      %v959 = vadd.f32 %v598, %v958
      %v960 = vpop.f32.mrf.mxu0
      %961 = vdwg.mxu0
      %962 = vmatpush.bf16.msra.mxu0 0
      %963 = vmatpush.bf16.msra.mxu0 0
      %964 = vmatpush.bf16.msra.mxu0 0
      %965 = vmatpush.bf16.msra.mxu0 0
      %966 = vmatpush.bf16.msra.mxu0 0
      %967 = vmatpush.bf16.msra.mxu0 0
      %968 = vmatpush.bf16.msra.mxu0 %v743
      %969 = vmatpush.bf16.msra.mxu0 %v727
      %970 = vmatmul.bf16.gmra.mxu0 %v778
      %v971 = vpop.f32.mrf.mxu0
      %v972 = vadd.f32 %v599, %v971
      %v973 = vpop.f32.mrf.mxu0
      %974 = vdwg.mxu0
      %975 = vmatpush.bf16.msra.mxu0 0
      %976 = vmatpush.bf16.msra.mxu0 0
      %977 = vmatpush.bf16.msra.mxu0 0
      %978 = vmatpush.bf16.msra.mxu0 0
      %979 = vmatpush.bf16.msra.mxu0 0
      %980 = vmatpush.bf16.msra.mxu0 0
      %981 = vmatpush.bf16.msra.mxu0 %v744
      %982 = vmatpush.bf16.msra.mxu0 %v728
      %983 = vmatmul.bf16.gmra.mxu0 %v778
      %v984 = vpop.f32.mrf.mxu0
      %v985 = vadd.f32 %v600, %v984
      %v986 = vpop.f32.mrf.mxu0
      %987 = vdwg.mxu0
      %v988 = vmax.f32 %v790, 0.0
      %v989 = vmax.f32 %v803, 0.0
      %v990 = vmax.f32 %v816, 0.0
      %v991 = vmax.f32 %v829, 0.0
      %v992 = vmax.f32 %v842, 0.0
      %v993 = vmax.f32 %v855, 0.0
      %v994 = vmax.f32 %v868, 0.0
      %v995 = vmax.f32 %v881, 0.0
      %v996 = vmax.f32 %v894, 0.0
      %v997 = vmax.f32 %v907, 0.0
      %v998 = vmax.f32 %v920, 0.0
      %v999 = vmax.f32 %v933, 0.0
      %v1000 = vmax.f32 %v946, 0.0
      %v1001 = vmax.f32 %v959, 0.0
      %v1002 = vmax.f32 %v972, 0.0
      %v1003 = vmax.f32 %v985, 0.0
      %v1004 = vpack.c.bf16 %v988, %v988
      %v1005 = vpack.c.bf16 %v989, %v989
      %v1006 = vpack.c.bf16 %v990, %v990
      %v1007 = vpack.c.bf16 %v991, %v991
      %v1008 = vpack.c.bf16 %v992, %v992
      %v1009 = vpack.c.bf16 %v993, %v993
      %v1010 = vpack.c.bf16 %v994, %v994
      %v1011 = vpack.c.bf16 %v995, %v995
      %v1012 = vpack.c.bf16 %v996, %v996
      %v1013 = vpack.c.bf16 %v997, %v997
      %v1014 = vpack.c.bf16 %v998, %v998
      %v1015 = vpack.c.bf16 %v999, %v999
      %v1016 = vpack.c.bf16 %v1000, %v1000
      %v1017 = vpack.c.bf16 %v1001, %v1001
      %v1018 = vpack.c.bf16 %v1002, %v1002
      %v1019 = vpack.c.bf16 %v1003, %v1003
      %v1020 = vld [vmem:[%s8] sm:$0xf]
      %v1021 = vld [vmem:[%s8 + $0x4] sm:$0xf]
      %v1022 = vld [vmem:[%s8 + $0x8] sm:$0xf]
      %v1023 = vld [vmem:[%s8 + $0xc] sm:$0xf]
      %v1024 = vld [vmem:[%s8 + $0x10] sm:$0xf]
      %v1025 = vld [vmem:[%s8 + $0x14] sm:$0xf]
      %v1026 = vld [vmem:[%s8 + $0x18] sm:$0xf]
      %v1027 = vld [vmem:[%s8 + $0x1c] sm:$0xf]
      %v1028 = vld [vmem:[%s8 + $0x20] sm:$0xf]
      %v1029 = vld [vmem:[%s8 + $0x24] sm:$0xf]
      %v1030 = vld [vmem:[%s8 + $0x28] sm:$0xf]
      %v1031 = vld [vmem:[%s8 + $0x2c] sm:$0xf]
      %v1032 = vld [vmem:[%s8 + $0x30] sm:$0xf]
      %v1033 = vld [vmem:[%s8 + $0x34] sm:$0xf]
      %v1034 = vld [vmem:[%s8 + $0x38] sm:$0xf]
      %v1035 = vld [vmem:[%s8 + $0x3c] sm:$0xf]
      %v1036 = vld [vmem:[%s8 + $0x40] sm:$0xf]
      %v1037 = vld [vmem:[%s8 + $0x44] sm:$0xf]
      %v1038 = vld [vmem:[%s8 + $0x48] sm:$0xf]
      %v1039 = vld [vmem:[%s8 + $0x4c] sm:$0xf]
      %v1040 = vld [vmem:[%s8 + $0x50] sm:$0xf]
      %v1041 = vld [vmem:[%s8 + $0x54] sm:$0xf]
      %v1042 = vld [vmem:[%s8 + $0x58] sm:$0xf]
      %v1043 = vld [vmem:[%s8 + $0x5c] sm:$0xf]
      %v1044 = vld [vmem:[%s8 + $0x60] sm:$0xf]
      %v1045 = vld [vmem:[%s8 + $0x64] sm:$0xf]
      %v1046 = vld [vmem:[%s8 + $0x68] sm:$0xf]
      %v1047 = vld [vmem:[%s8 + $0x6c] sm:$0xf]
      %v1048 = vld [vmem:[%s8 + $0x70] sm:$0xf]
      %v1049 = vld [vmem:[%s8 + $0x74] sm:$0xf]
      %v1050 = vld [vmem:[%s8 + $0x78] sm:$0xf]
      %v1051 = vld [vmem:[%s8 + $0x7c] sm:$0xf]
      %v1052 = vld [vmem:[%s8 + $0x80] sm:$0xf]
      %v1053 = vld [vmem:[%s8 + $0x84] sm:$0xf]
      %v1054 = vld [vmem:[%s8 + $0x88] sm:$0xf]
      %v1055 = vld [vmem:[%s8 + $0x8c] sm:$0xf]
      %v1056 = vld [vmem:[%s8 + $0x90] sm:$0xf]
      %v1057 = vld [vmem:[%s8 + $0x94] sm:$0xf]
      %v1058 = vld [vmem:[%s8 + $0x98] sm:$0xf]
      %v1059 = vld [vmem:[%s8 + $0x9c] sm:$0xf]
      %v1060 = vld [vmem:[%s8 + $0xa0] sm:$0xf]
      %v1061 = vld [vmem:[%s8 + $0xa4] sm:$0xf]
      %v1062 = vld [vmem:[%s8 + $0xa8] sm:$0xf]
      %v1063 = vld [vmem:[%s8 + $0xac] sm:$0xf]
      %v1064 = vld [vmem:[%s8 + $0xb0] sm:$0xf]
      %v1065 = vld [vmem:[%s8 + $0xb4] sm:$0xf]
      %v1066 = vld [vmem:[%s8 + $0xb8] sm:$0xf]
      %v1067 = vld [vmem:[%s8 + $0xbc] sm:$0xf]
      %v1068 = vld [vmem:[%s8 + $0xc0] sm:$0xf]
      %v1069 = vld [vmem:[%s8 + $0xc4] sm:$0xf]
      %v1070 = vld [vmem:[%s8 + $0xc8] sm:$0xf]
      %v1071 = vld [vmem:[%s8 + $0xcc] sm:$0xf]
      %v1072 = vld [vmem:[%s8 + $0xd0] sm:$0xf]
      %v1073 = vld [vmem:[%s8 + $0xd4] sm:$0xf]
      %v1074 = vld [vmem:[%s8 + $0xd8] sm:$0xf]
      %v1075 = vld [vmem:[%s8 + $0xdc] sm:$0xf]
      %v1076 = vld [vmem:[%s8 + $0xe0] sm:$0xf]
      %v1077 = vld [vmem:[%s8 + $0xe4] sm:$0xf]
      %v1078 = vld [vmem:[%s8 + $0xe8] sm:$0xf]
      %v1079 = vld [vmem:[%s8 + $0xec] sm:$0xf]
      %v1080 = vld [vmem:[%s8 + $0xf0] sm:$0xf]
      %v1081 = vld [vmem:[%s8 + $0xf4] sm:$0xf]
      %v1082 = vld [vmem:[%s8 + $0xf8] sm:$0xf]
      %v1083 = vld [vmem:[%s8 + $0xfc] sm:$0xf]
      %v1084 = vld [vmem:[%s8 + $0x100] sm:$0xf]
      %v1085 = vld [vmem:[%s8 + $0x104] sm:$0xf]
      %v1086 = vld [vmem:[%s8 + $0x108] sm:$0xf]
      %v1087 = vld [vmem:[%s8 + $0x10c] sm:$0xf]
      %v1088 = vld [vmem:[%s8 + $0x110] sm:$0xf]
      %v1089 = vld [vmem:[%s8 + $0x114] sm:$0xf]
      %v1090 = vld [vmem:[%s8 + $0x118] sm:$0xf]
      %v1091 = vld [vmem:[%s8 + $0x11c] sm:$0xf]
      %v1092 = vld [vmem:[%s8 + $0x120] sm:$0xf]
      %v1093 = vld [vmem:[%s8 + $0x124] sm:$0xf]
      %v1094 = vld [vmem:[%s8 + $0x128] sm:$0xf]
      %v1095 = vld [vmem:[%s8 + $0x12c] sm:$0xf]
      %v1096 = vld [vmem:[%s8 + $0x130] sm:$0xf]
      %v1097 = vld [vmem:[%s8 + $0x134] sm:$0xf]
      %v1098 = vld [vmem:[%s8 + $0x138] sm:$0xf]
      %v1099 = vld [vmem:[%s8 + $0x13c] sm:$0xf]
      %v1100 = vld [vmem:[%s8 + $0x140] sm:$0xf]
      %v1101 = vld [vmem:[%s8 + $0x144] sm:$0xf]
      %v1102 = vld [vmem:[%s8 + $0x148] sm:$0xf]
      %v1103 = vld [vmem:[%s8 + $0x14c] sm:$0xf]
      %v1104 = vld [vmem:[%s8 + $0x150] sm:$0xf]
      %v1105 = vld [vmem:[%s8 + $0x154] sm:$0xf]
      %v1106 = vld [vmem:[%s8 + $0x158] sm:$0xf]
      %v1107 = vld [vmem:[%s8 + $0x15c] sm:$0xf]
      %v1108 = vld [vmem:[%s8 + $0x160] sm:$0xf]
      %v1109 = vld [vmem:[%s8 + $0x164] sm:$0xf]
      %v1110 = vld [vmem:[%s8 + $0x168] sm:$0xf]
      %v1111 = vld [vmem:[%s8 + $0x16c] sm:$0xf]
      %v1112 = vld [vmem:[%s8 + $0x170] sm:$0xf]
      %v1113 = vld [vmem:[%s8 + $0x174] sm:$0xf]
      %v1114 = vld [vmem:[%s8 + $0x178] sm:$0xf]
      %v1115 = vld [vmem:[%s8 + $0x17c] sm:$0xf]
      %v1116 = vld [vmem:[%s8 + $0x180] sm:$0xf]
      %v1117 = vld [vmem:[%s8 + $0x184] sm:$0xf]
      %v1118 = vld [vmem:[%s8 + $0x188] sm:$0xf]
      %v1119 = vld [vmem:[%s8 + $0x18c] sm:$0xf]
      %v1120 = vld [vmem:[%s8 + $0x190] sm:$0xf]
      %v1121 = vld [vmem:[%s8 + $0x194] sm:$0xf]
      %v1122 = vld [vmem:[%s8 + $0x198] sm:$0xf]
      %v1123 = vld [vmem:[%s8 + $0x19c] sm:$0xf]
      %v1124 = vld [vmem:[%s8 + $0x1a0] sm:$0xf]
      %v1125 = vld [vmem:[%s8 + $0x1a4] sm:$0xf]
      %v1126 = vld [vmem:[%s8 + $0x1a8] sm:$0xf]
      %v1127 = vld [vmem:[%s8 + $0x1ac] sm:$0xf]
      %v1128 = vld [vmem:[%s8 + $0x1b0] sm:$0xf]
      %v1129 = vld [vmem:[%s8 + $0x1b4] sm:$0xf]
      %v1130 = vld [vmem:[%s8 + $0x1b8] sm:$0xf]
      %v1131 = vld [vmem:[%s8 + $0x1bc] sm:$0xf]
      %v1132 = vld [vmem:[%s8 + $0x1c0] sm:$0xf]
      %v1133 = vld [vmem:[%s8 + $0x1c4] sm:$0xf]
      %v1134 = vld [vmem:[%s8 + $0x1c8] sm:$0xf]
      %v1135 = vld [vmem:[%s8 + $0x1cc] sm:$0xf]
      %v1136 = vld [vmem:[%s8 + $0x1d0] sm:$0xf]
      %v1137 = vld [vmem:[%s8 + $0x1d4] sm:$0xf]
      %v1138 = vld [vmem:[%s8 + $0x1d8] sm:$0xf]
      %v1139 = vld [vmem:[%s8 + $0x1dc] sm:$0xf]
      %v1140 = vld [vmem:[%s8 + $0x1e0] sm:$0xf]
      %v1141 = vld [vmem:[%s8 + $0x1e4] sm:$0xf]
      %v1142 = vld [vmem:[%s8 + $0x1e8] sm:$0xf]
      %v1143 = vld [vmem:[%s8 + $0x1ec] sm:$0xf]
      %v1144 = vld [vmem:[%s8 + $0x1f0] sm:$0xf]
      %v1145 = vld [vmem:[%s8 + $0x1f4] sm:$0xf]
      %v1146 = vld [vmem:[%s8 + $0x1f8] sm:$0xf]
      %v1147 = vld [vmem:[%s8 + $0x1fc] sm:$0xf]
      %v1148 = vld [vmem:[%s8 + $0x200] sm:$0xf]
      %v1149 = vld [vmem:[%s8 + $0x204] sm:$0xf]
      %v1150 = vld [vmem:[%s8 + $0x208] sm:$0xf]
      %v1151 = vld [vmem:[%s8 + $0x20c] sm:$0xf]
      %v1152 = vld [vmem:[%s8 + $0x210] sm:$0xf]
      %v1153 = vld [vmem:[%s8 + $0x214] sm:$0xf]
      %v1154 = vld [vmem:[%s8 + $0x218] sm:$0xf]
      %v1155 = vld [vmem:[%s8 + $0x21c] sm:$0xf]
      %v1156 = vld [vmem:[%s8 + $0x220] sm:$0xf]
      %v1157 = vld [vmem:[%s8 + $0x224] sm:$0xf]
      %v1158 = vld [vmem:[%s8 + $0x228] sm:$0xf]
      %v1159 = vld [vmem:[%s8 + $0x22c] sm:$0xf]
      %v1160 = vld [vmem:[%s8 + $0x230] sm:$0xf]
      %v1161 = vld [vmem:[%s8 + $0x234] sm:$0xf]
      %v1162 = vld [vmem:[%s8 + $0x238] sm:$0xf]
      %v1163 = vld [vmem:[%s8 + $0x23c] sm:$0xf]
      %v1164 = vld [vmem:[%s8 + $0x240] sm:$0xf]
      %v1165 = vld [vmem:[%s8 + $0x244] sm:$0xf]
      %v1166 = vld [vmem:[%s8 + $0x248] sm:$0xf]
      %v1167 = vld [vmem:[%s8 + $0x24c] sm:$0xf]
      %v1168 = vld [vmem:[%s8 + $0x250] sm:$0xf]
      %v1169 = vld [vmem:[%s8 + $0x254] sm:$0xf]
      %v1170 = vld [vmem:[%s8 + $0x258] sm:$0xf]
      %v1171 = vld [vmem:[%s8 + $0x25c] sm:$0xf]
      %v1172 = vld [vmem:[%s8 + $0x260] sm:$0xf]
      %v1173 = vld [vmem:[%s8 + $0x264] sm:$0xf]
      %v1174 = vld [vmem:[%s8 + $0x268] sm:$0xf]
      %v1175 = vld [vmem:[%s8 + $0x26c] sm:$0xf]
      %v1176 = vld [vmem:[%s8 + $0x270] sm:$0xf]
      %v1177 = vld [vmem:[%s8 + $0x274] sm:$0xf]
      %v1178 = vld [vmem:[%s8 + $0x278] sm:$0xf]
      %v1179 = vld [vmem:[%s8 + $0x27c] sm:$0xf]
      %v1180 = vld [vmem:[%s8 + $0x280] sm:$0xf]
      %v1181 = vld [vmem:[%s8 + $0x284] sm:$0xf]
      %v1182 = vld [vmem:[%s8 + $0x288] sm:$0xf]
      %v1183 = vld [vmem:[%s8 + $0x28c] sm:$0xf]
      %v1184 = vld [vmem:[%s8 + $0x290] sm:$0xf]
      %v1185 = vld [vmem:[%s8 + $0x294] sm:$0xf]
      %v1186 = vld [vmem:[%s8 + $0x298] sm:$0xf]
      %v1187 = vld [vmem:[%s8 + $0x29c] sm:$0xf]
      %v1188 = vld [vmem:[%s8 + $0x2a0] sm:$0xf]
      %v1189 = vld [vmem:[%s8 + $0x2a4] sm:$0xf]
      %v1190 = vld [vmem:[%s8 + $0x2a8] sm:$0xf]
      %v1191 = vld [vmem:[%s8 + $0x2ac] sm:$0xf]
      %v1192 = vld [vmem:[%s8 + $0x2b0] sm:$0xf]
      %v1193 = vld [vmem:[%s8 + $0x2b4] sm:$0xf]
      %v1194 = vld [vmem:[%s8 + $0x2b8] sm:$0xf]
      %v1195 = vld [vmem:[%s8 + $0x2bc] sm:$0xf]
      %v1196 = vld [vmem:[%s8 + $0x2c0] sm:$0xf]
      %v1197 = vld [vmem:[%s8 + $0x2c4] sm:$0xf]
      %v1198 = vld [vmem:[%s8 + $0x2c8] sm:$0xf]
      %v1199 = vld [vmem:[%s8 + $0x2cc] sm:$0xf]
      %v1200 = vld [vmem:[%s8 + $0x2d0] sm:$0xf]
      %v1201 = vld [vmem:[%s8 + $0x2d4] sm:$0xf]
      %v1202 = vld [vmem:[%s8 + $0x2d8] sm:$0xf]
      %v1203 = vld [vmem:[%s8 + $0x2dc] sm:$0xf]
      %v1204 = vld [vmem:[%s8 + $0x2e0] sm:$0xf]
      %v1205 = vld [vmem:[%s8 + $0x2e4] sm:$0xf]
      %v1206 = vld [vmem:[%s8 + $0x2e8] sm:$0xf]
      %v1207 = vld [vmem:[%s8 + $0x2ec] sm:$0xf]
      %v1208 = vld [vmem:[%s8 + $0x2f0] sm:$0xf]
      %v1209 = vld [vmem:[%s8 + $0x2f4] sm:$0xf]
      %v1210 = vld [vmem:[%s8 + $0x2f8] sm:$0xf]
      %v1211 = vld [vmem:[%s8 + $0x2fc] sm:$0xf]
      %v1212 = vld [vmem:[%s8 + $0x300] sm:$0xf]
      %v1213 = vld [vmem:[%s8 + $0x304] sm:$0xf]
      %v1214 = vld [vmem:[%s8 + $0x308] sm:$0xf]
      %v1215 = vld [vmem:[%s8 + $0x30c] sm:$0xf]
      %v1216 = vld [vmem:[%s8 + $0x310] sm:$0xf]
      %v1217 = vld [vmem:[%s8 + $0x314] sm:$0xf]
      %v1218 = vld [vmem:[%s8 + $0x318] sm:$0xf]
      %v1219 = vld [vmem:[%s8 + $0x31c] sm:$0xf]
      %v1220 = vld [vmem:[%s8 + $0x320] sm:$0xf]
      %v1221 = vld [vmem:[%s8 + $0x324] sm:$0xf]
      %v1222 = vld [vmem:[%s8 + $0x328] sm:$0xf]
      %v1223 = vld [vmem:[%s8 + $0x32c] sm:$0xf]
      %v1224 = vld [vmem:[%s8 + $0x330] sm:$0xf]
      %v1225 = vld [vmem:[%s8 + $0x334] sm:$0xf]
      %v1226 = vld [vmem:[%s8 + $0x338] sm:$0xf]
      %v1227 = vld [vmem:[%s8 + $0x33c] sm:$0xf]
      %v1228 = vld [vmem:[%s8 + $0x340] sm:$0xf]
      %v1229 = vld [vmem:[%s8 + $0x344] sm:$0xf]
      %v1230 = vld [vmem:[%s8 + $0x348] sm:$0xf]
      %v1231 = vld [vmem:[%s8 + $0x34c] sm:$0xf]
      %v1232 = vld [vmem:[%s8 + $0x350] sm:$0xf]
      %v1233 = vld [vmem:[%s8 + $0x354] sm:$0xf]
      %v1234 = vld [vmem:[%s8 + $0x358] sm:$0xf]
      %v1235 = vld [vmem:[%s8 + $0x35c] sm:$0xf]
      %v1236 = vld [vmem:[%s8 + $0x360] sm:$0xf]
      %v1237 = vld [vmem:[%s8 + $0x364] sm:$0xf]
      %v1238 = vld [vmem:[%s8 + $0x368] sm:$0xf]
      %v1239 = vld [vmem:[%s8 + $0x36c] sm:$0xf]
      %v1240 = vld [vmem:[%s8 + $0x370] sm:$0xf]
      %v1241 = vld [vmem:[%s8 + $0x374] sm:$0xf]
      %v1242 = vld [vmem:[%s8 + $0x378] sm:$0xf]
      %v1243 = vld [vmem:[%s8 + $0x37c] sm:$0xf]
      %v1244 = vld [vmem:[%s8 + $0x380] sm:$0xf]
      %v1245 = vld [vmem:[%s8 + $0x384] sm:$0xf]
      %v1246 = vld [vmem:[%s8 + $0x388] sm:$0xf]
      %v1247 = vld [vmem:[%s8 + $0x38c] sm:$0xf]
      %v1248 = vld [vmem:[%s8 + $0x390] sm:$0xf]
      %v1249 = vld [vmem:[%s8 + $0x394] sm:$0xf]
      %v1250 = vld [vmem:[%s8 + $0x398] sm:$0xf]
      %v1251 = vld [vmem:[%s8 + $0x39c] sm:$0xf]
      %v1252 = vld [vmem:[%s8 + $0x3a0] sm:$0xf]
      %v1253 = vld [vmem:[%s8 + $0x3a4] sm:$0xf]
      %v1254 = vld [vmem:[%s8 + $0x3a8] sm:$0xf]
      %v1255 = vld [vmem:[%s8 + $0x3ac] sm:$0xf]
      %v1256 = vld [vmem:[%s8 + $0x3b0] sm:$0xf]
      %v1257 = vld [vmem:[%s8 + $0x3b4] sm:$0xf]
      %v1258 = vld [vmem:[%s8 + $0x3b8] sm:$0xf]
      %v1259 = vld [vmem:[%s8 + $0x3bc] sm:$0xf]
      %v1260 = vld [vmem:[%s8 + $0x3c0] sm:$0xf]
      %v1261 = vld [vmem:[%s8 + $0x3c4] sm:$0xf]
      %v1262 = vld [vmem:[%s8 + $0x3c8] sm:$0xf]
      %v1263 = vld [vmem:[%s8 + $0x3cc] sm:$0xf]
      %v1264 = vld [vmem:[%s8 + $0x3d0] sm:$0xf]
      %v1265 = vld [vmem:[%s8 + $0x3d4] sm:$0xf]
      %v1266 = vld [vmem:[%s8 + $0x3d8] sm:$0xf]
      %v1267 = vld [vmem:[%s8 + $0x3dc] sm:$0xf]
      %v1268 = vld [vmem:[%s8 + $0x3e0] sm:$0xf]
      %v1269 = vld [vmem:[%s8 + $0x3e4] sm:$0xf]
      %v1270 = vld [vmem:[%s8 + $0x3e8] sm:$0xf]
      %v1271 = vld [vmem:[%s8 + $0x3ec] sm:$0xf]
      %v1272 = vld [vmem:[%s8 + $0x3f0] sm:$0xf]
      %v1273 = vld [vmem:[%s8 + $0x3f4] sm:$0xf]
      %v1274 = vld [vmem:[%s8 + $0x3f8] sm:$0xf]
      %v1275 = vld [vmem:[%s8 + $0x3fc] sm:$0xf]
      %v1276 = vld [vmem:[%s9] sm:$0x1]
      %v1278 = vperm.slane %v1276, 0
      %v1536 = vunpack.c.l.b16 %v1020
      %v1537 = vunpack.c.l.b16 %v1021
      %v1538 = vunpack.c.l.b16 %v1022
      %v1539 = vunpack.c.l.b16 %v1023
      %v1540 = vunpack.c.l.b16 %v1024
      %v1541 = vunpack.c.l.b16 %v1025
      %v1542 = vunpack.c.l.b16 %v1026
      %v1543 = vunpack.c.l.b16 %v1027
      %v1544 = vunpack.c.l.b16 %v1028
      %v1545 = vunpack.c.l.b16 %v1029
      %v1546 = vunpack.c.l.b16 %v1030
      %v1547 = vunpack.c.l.b16 %v1031
      %v1548 = vunpack.c.l.b16 %v1032
      %v1549 = vunpack.c.l.b16 %v1033
      %v1550 = vunpack.c.l.b16 %v1034
      %v1551 = vunpack.c.l.b16 %v1035
      %v1552 = vunpack.c.l.b16 %v1036
      %v1553 = vunpack.c.l.b16 %v1037
      %v1554 = vunpack.c.l.b16 %v1038
      %v1555 = vunpack.c.l.b16 %v1039
      %v1556 = vunpack.c.l.b16 %v1040
      %v1557 = vunpack.c.l.b16 %v1041
      %v1558 = vunpack.c.l.b16 %v1042
      %v1559 = vunpack.c.l.b16 %v1043
      %v1560 = vunpack.c.l.b16 %v1044
      %v1561 = vunpack.c.l.b16 %v1045
      %v1562 = vunpack.c.l.b16 %v1046
      %v1563 = vunpack.c.l.b16 %v1047
      %v1564 = vunpack.c.l.b16 %v1048
      %v1565 = vunpack.c.l.b16 %v1049
      %v1566 = vunpack.c.l.b16 %v1050
      %v1567 = vunpack.c.l.b16 %v1051
      %v1568 = vunpack.c.l.b16 %v1052
      %v1569 = vunpack.c.l.b16 %v1053
      %v1570 = vunpack.c.l.b16 %v1054
      %v1571 = vunpack.c.l.b16 %v1055
      %v1572 = vunpack.c.l.b16 %v1056
      %v1573 = vunpack.c.l.b16 %v1057
      %v1574 = vunpack.c.l.b16 %v1058
      %v1575 = vunpack.c.l.b16 %v1059
      %v1576 = vunpack.c.l.b16 %v1060
      %v1577 = vunpack.c.l.b16 %v1061
      %v1578 = vunpack.c.l.b16 %v1062
      %v1579 = vunpack.c.l.b16 %v1063
      %v1580 = vunpack.c.l.b16 %v1064
      %v1581 = vunpack.c.l.b16 %v1065
      %v1582 = vunpack.c.l.b16 %v1066
      %v1583 = vunpack.c.l.b16 %v1067
      %v1584 = vunpack.c.l.b16 %v1068
      %v1585 = vunpack.c.l.b16 %v1069
      %v1586 = vunpack.c.l.b16 %v1070
      %v1587 = vunpack.c.l.b16 %v1071
      %v1588 = vunpack.c.l.b16 %v1072
      %v1589 = vunpack.c.l.b16 %v1073
      %v1590 = vunpack.c.l.b16 %v1074
      %v1591 = vunpack.c.l.b16 %v1075
      %v1592 = vunpack.c.l.b16 %v1076
      %v1593 = vunpack.c.l.b16 %v1077
      %v1594 = vunpack.c.l.b16 %v1078
      %v1595 = vunpack.c.l.b16 %v1079
      %v1596 = vunpack.c.l.b16 %v1080
      %v1597 = vunpack.c.l.b16 %v1081
      %v1598 = vunpack.c.l.b16 %v1082
      %v1599 = vunpack.c.l.b16 %v1083
      %v1600 = vunpack.c.l.b16 %v1084
      %v1601 = vunpack.c.l.b16 %v1085
      %v1602 = vunpack.c.l.b16 %v1086
      %v1603 = vunpack.c.l.b16 %v1087
      %v1604 = vunpack.c.l.b16 %v1088
      %v1605 = vunpack.c.l.b16 %v1089
      %v1606 = vunpack.c.l.b16 %v1090
      %v1607 = vunpack.c.l.b16 %v1091
      %v1608 = vunpack.c.l.b16 %v1092
      %v1609 = vunpack.c.l.b16 %v1093
      %v1610 = vunpack.c.l.b16 %v1094
      %v1611 = vunpack.c.l.b16 %v1095
      %v1612 = vunpack.c.l.b16 %v1096
      %v1613 = vunpack.c.l.b16 %v1097
      %v1614 = vunpack.c.l.b16 %v1098
      %v1615 = vunpack.c.l.b16 %v1099
      %v1616 = vunpack.c.l.b16 %v1100
      %v1617 = vunpack.c.l.b16 %v1101
      %v1618 = vunpack.c.l.b16 %v1102
      %v1619 = vunpack.c.l.b16 %v1103
      %v1620 = vunpack.c.l.b16 %v1104
      %v1621 = vunpack.c.l.b16 %v1105
      %v1622 = vunpack.c.l.b16 %v1106
      %v1623 = vunpack.c.l.b16 %v1107
      %v1624 = vunpack.c.l.b16 %v1108
      %v1625 = vunpack.c.l.b16 %v1109
      %v1626 = vunpack.c.l.b16 %v1110
      %v1627 = vunpack.c.l.b16 %v1111
      %v1628 = vunpack.c.l.b16 %v1112
      %v1629 = vunpack.c.l.b16 %v1113
      %v1630 = vunpack.c.l.b16 %v1114
      %v1631 = vunpack.c.l.b16 %v1115
      %v1632 = vunpack.c.l.b16 %v1116
      %v1633 = vunpack.c.l.b16 %v1117
      %v1634 = vunpack.c.l.b16 %v1118
      %v1635 = vunpack.c.l.b16 %v1119
      %v1636 = vunpack.c.l.b16 %v1120
      %v1637 = vunpack.c.l.b16 %v1121
      %v1638 = vunpack.c.l.b16 %v1122
      %v1639 = vunpack.c.l.b16 %v1123
      %v1640 = vunpack.c.l.b16 %v1124
      %v1641 = vunpack.c.l.b16 %v1125
      %v1642 = vunpack.c.l.b16 %v1126
      %v1643 = vunpack.c.l.b16 %v1127
      %v1644 = vunpack.c.l.b16 %v1128
      %v1645 = vunpack.c.l.b16 %v1129
      %v1646 = vunpack.c.l.b16 %v1130
      %v1647 = vunpack.c.l.b16 %v1131
      %v1648 = vunpack.c.l.b16 %v1132
      %v1649 = vunpack.c.l.b16 %v1133
      %v1650 = vunpack.c.l.b16 %v1134
      %v1651 = vunpack.c.l.b16 %v1135
      %v1652 = vunpack.c.l.b16 %v1136
      %v1653 = vunpack.c.l.b16 %v1137
      %v1654 = vunpack.c.l.b16 %v1138
      %v1655 = vunpack.c.l.b16 %v1139
      %v1656 = vunpack.c.l.b16 %v1140
      %v1657 = vunpack.c.l.b16 %v1141
      %v1658 = vunpack.c.l.b16 %v1142
      %v1659 = vunpack.c.l.b16 %v1143
      %v1660 = vunpack.c.l.b16 %v1144
      %v1661 = vunpack.c.l.b16 %v1145
      %v1662 = vunpack.c.l.b16 %v1146
      %v1663 = vunpack.c.l.b16 %v1147
      %v1664 = vunpack.c.l.b16 %v1148
      %v1665 = vunpack.c.l.b16 %v1149
      %v1666 = vunpack.c.l.b16 %v1150
      %v1667 = vunpack.c.l.b16 %v1151
      %v1668 = vunpack.c.l.b16 %v1152
      %v1669 = vunpack.c.l.b16 %v1153
      %v1670 = vunpack.c.l.b16 %v1154
      %v1671 = vunpack.c.l.b16 %v1155
      %v1672 = vunpack.c.l.b16 %v1156
      %v1673 = vunpack.c.l.b16 %v1157
      %v1674 = vunpack.c.l.b16 %v1158
      %v1675 = vunpack.c.l.b16 %v1159
      %v1676 = vunpack.c.l.b16 %v1160
      %v1677 = vunpack.c.l.b16 %v1161
      %v1678 = vunpack.c.l.b16 %v1162
      %v1679 = vunpack.c.l.b16 %v1163
      %v1680 = vunpack.c.l.b16 %v1164
      %v1681 = vunpack.c.l.b16 %v1165
      %v1682 = vunpack.c.l.b16 %v1166
      %v1683 = vunpack.c.l.b16 %v1167
      %v1684 = vunpack.c.l.b16 %v1168
      %v1685 = vunpack.c.l.b16 %v1169
      %v1686 = vunpack.c.l.b16 %v1170
      %v1687 = vunpack.c.l.b16 %v1171
      %v1688 = vunpack.c.l.b16 %v1172
      %v1689 = vunpack.c.l.b16 %v1173
      %v1690 = vunpack.c.l.b16 %v1174
      %v1691 = vunpack.c.l.b16 %v1175
      %v1692 = vunpack.c.l.b16 %v1176
      %v1693 = vunpack.c.l.b16 %v1177
      %v1694 = vunpack.c.l.b16 %v1178
      %v1695 = vunpack.c.l.b16 %v1179
      %v1696 = vunpack.c.l.b16 %v1180
      %v1697 = vunpack.c.l.b16 %v1181
      %v1698 = vunpack.c.l.b16 %v1182
      %v1699 = vunpack.c.l.b16 %v1183
      %v1700 = vunpack.c.l.b16 %v1184
      %v1701 = vunpack.c.l.b16 %v1185
      %v1702 = vunpack.c.l.b16 %v1186
      %v1703 = vunpack.c.l.b16 %v1187
      %v1704 = vunpack.c.l.b16 %v1188
      %v1705 = vunpack.c.l.b16 %v1189
      %v1706 = vunpack.c.l.b16 %v1190
      %v1707 = vunpack.c.l.b16 %v1191
      %v1708 = vunpack.c.l.b16 %v1192
      %v1709 = vunpack.c.l.b16 %v1193
      %v1710 = vunpack.c.l.b16 %v1194
      %v1711 = vunpack.c.l.b16 %v1195
      %v1712 = vunpack.c.l.b16 %v1196
      %v1713 = vunpack.c.l.b16 %v1197
      %v1714 = vunpack.c.l.b16 %v1198
      %v1715 = vunpack.c.l.b16 %v1199
      %v1716 = vunpack.c.l.b16 %v1200
      %v1717 = vunpack.c.l.b16 %v1201
      %v1718 = vunpack.c.l.b16 %v1202
      %v1719 = vunpack.c.l.b16 %v1203
      %v1720 = vunpack.c.l.b16 %v1204
      %v1721 = vunpack.c.l.b16 %v1205
      %v1722 = vunpack.c.l.b16 %v1206
      %v1723 = vunpack.c.l.b16 %v1207
      %v1724 = vunpack.c.l.b16 %v1208
      %v1725 = vunpack.c.l.b16 %v1209
      %v1726 = vunpack.c.l.b16 %v1210
      %v1727 = vunpack.c.l.b16 %v1211
      %v1728 = vunpack.c.l.b16 %v1212
      %v1729 = vunpack.c.l.b16 %v1213
      %v1730 = vunpack.c.l.b16 %v1214
      %v1731 = vunpack.c.l.b16 %v1215
      %v1732 = vunpack.c.l.b16 %v1216
      %v1733 = vunpack.c.l.b16 %v1217
      %v1734 = vunpack.c.l.b16 %v1218
      %v1735 = vunpack.c.l.b16 %v1219
      %v1736 = vunpack.c.l.b16 %v1220
      %v1737 = vunpack.c.l.b16 %v1221
      %v1738 = vunpack.c.l.b16 %v1222
      %v1739 = vunpack.c.l.b16 %v1223
      %v1740 = vunpack.c.l.b16 %v1224
      %v1741 = vunpack.c.l.b16 %v1225
      %v1742 = vunpack.c.l.b16 %v1226
      %v1743 = vunpack.c.l.b16 %v1227
      %v1744 = vunpack.c.l.b16 %v1228
      %v1745 = vunpack.c.l.b16 %v1229
      %v1746 = vunpack.c.l.b16 %v1230
      %v1747 = vunpack.c.l.b16 %v1231
      %v1748 = vunpack.c.l.b16 %v1232
      %v1749 = vunpack.c.l.b16 %v1233
      %v1750 = vunpack.c.l.b16 %v1234
      %v1751 = vunpack.c.l.b16 %v1235
      %v1752 = vunpack.c.l.b16 %v1236
      %v1753 = vunpack.c.l.b16 %v1237
      %v1754 = vunpack.c.l.b16 %v1238
      %v1755 = vunpack.c.l.b16 %v1239
      %v1756 = vunpack.c.l.b16 %v1240
      %v1757 = vunpack.c.l.b16 %v1241
      %v1758 = vunpack.c.l.b16 %v1242
      %v1759 = vunpack.c.l.b16 %v1243
      %v1760 = vunpack.c.l.b16 %v1244
      %v1761 = vunpack.c.l.b16 %v1245
      %v1762 = vunpack.c.l.b16 %v1246
      %v1763 = vunpack.c.l.b16 %v1247
      %v1764 = vunpack.c.l.b16 %v1248
      %v1765 = vunpack.c.l.b16 %v1249
      %v1766 = vunpack.c.l.b16 %v1250
      %v1767 = vunpack.c.l.b16 %v1251
      %v1768 = vunpack.c.l.b16 %v1252
      %v1769 = vunpack.c.l.b16 %v1253
      %v1770 = vunpack.c.l.b16 %v1254
      %v1771 = vunpack.c.l.b16 %v1255
      %v1772 = vunpack.c.l.b16 %v1256
      %v1773 = vunpack.c.l.b16 %v1257
      %v1774 = vunpack.c.l.b16 %v1258
      %v1775 = vunpack.c.l.b16 %v1259
      %v1776 = vunpack.c.l.b16 %v1260
      %v1777 = vunpack.c.l.b16 %v1261
      %v1778 = vunpack.c.l.b16 %v1262
      %v1779 = vunpack.c.l.b16 %v1263
      %v1780 = vunpack.c.l.b16 %v1264
      %v1781 = vunpack.c.l.b16 %v1265
      %v1782 = vunpack.c.l.b16 %v1266
      %v1783 = vunpack.c.l.b16 %v1267
      %v1784 = vunpack.c.l.b16 %v1268
      %v1785 = vunpack.c.l.b16 %v1269
      %v1786 = vunpack.c.l.b16 %v1270
      %v1787 = vunpack.c.l.b16 %v1271
      %v1788 = vunpack.c.l.b16 %v1272
      %v1789 = vunpack.c.l.b16 %v1273
      %v1790 = vunpack.c.l.b16 %v1274
      %v1791 = vunpack.c.l.b16 %v1275
      %v1792 = vpack.c.b16 %v1537, %v1536
      %v1793 = vpack.c.b16 %v1539, %v1538
      %v1794 = vpack.c.b16 %v1541, %v1540
      %v1795 = vpack.c.b16 %v1543, %v1542
      %v1796 = vpack.c.b16 %v1545, %v1544
      %v1797 = vpack.c.b16 %v1547, %v1546
      %v1798 = vpack.c.b16 %v1549, %v1548
      %v1799 = vpack.c.b16 %v1551, %v1550
      %v1800 = vpack.c.b16 %v1553, %v1552
      %v1801 = vpack.c.b16 %v1555, %v1554
      %v1802 = vpack.c.b16 %v1557, %v1556
      %v1803 = vpack.c.b16 %v1559, %v1558
      %v1804 = vpack.c.b16 %v1561, %v1560
      %v1805 = vpack.c.b16 %v1563, %v1562
      %v1806 = vpack.c.b16 %v1565, %v1564
      %v1807 = vpack.c.b16 %v1567, %v1566
      %v1808 = vpack.c.b16 %v1569, %v1568
      %v1809 = vpack.c.b16 %v1571, %v1570
      %v1810 = vpack.c.b16 %v1573, %v1572
      %v1811 = vpack.c.b16 %v1575, %v1574
      %v1812 = vpack.c.b16 %v1577, %v1576
      %v1813 = vpack.c.b16 %v1579, %v1578
      %v1814 = vpack.c.b16 %v1581, %v1580
      %v1815 = vpack.c.b16 %v1583, %v1582
      %v1816 = vpack.c.b16 %v1585, %v1584
      %v1817 = vpack.c.b16 %v1587, %v1586
      %v1818 = vpack.c.b16 %v1589, %v1588
      %v1819 = vpack.c.b16 %v1591, %v1590
      %v1820 = vpack.c.b16 %v1593, %v1592
      %v1821 = vpack.c.b16 %v1595, %v1594
      %v1822 = vpack.c.b16 %v1597, %v1596
      %v1823 = vpack.c.b16 %v1599, %v1598
      %v1824 = vpack.c.b16 %v1601, %v1600
      %v1825 = vpack.c.b16 %v1603, %v1602
      %v1826 = vpack.c.b16 %v1605, %v1604
      %v1827 = vpack.c.b16 %v1607, %v1606
      %v1828 = vpack.c.b16 %v1609, %v1608
      %v1829 = vpack.c.b16 %v1611, %v1610
      %v1830 = vpack.c.b16 %v1613, %v1612
      %v1831 = vpack.c.b16 %v1615, %v1614
      %v1832 = vpack.c.b16 %v1617, %v1616
      %v1833 = vpack.c.b16 %v1619, %v1618
      %v1834 = vpack.c.b16 %v1621, %v1620
      %v1835 = vpack.c.b16 %v1623, %v1622
      %v1836 = vpack.c.b16 %v1625, %v1624
      %v1837 = vpack.c.b16 %v1627, %v1626
      %v1838 = vpack.c.b16 %v1629, %v1628
      %v1839 = vpack.c.b16 %v1631, %v1630
      %v1840 = vpack.c.b16 %v1633, %v1632
      %v1841 = vpack.c.b16 %v1635, %v1634
      %v1842 = vpack.c.b16 %v1637, %v1636
      %v1843 = vpack.c.b16 %v1639, %v1638
      %v1844 = vpack.c.b16 %v1641, %v1640
      %v1845 = vpack.c.b16 %v1643, %v1642
      %v1846 = vpack.c.b16 %v1645, %v1644
      %v1847 = vpack.c.b16 %v1647, %v1646
      %v1848 = vpack.c.b16 %v1649, %v1648
      %v1849 = vpack.c.b16 %v1651, %v1650
      %v1850 = vpack.c.b16 %v1653, %v1652
      %v1851 = vpack.c.b16 %v1655, %v1654
      %v1852 = vpack.c.b16 %v1657, %v1656
      %v1853 = vpack.c.b16 %v1659, %v1658
      %v1854 = vpack.c.b16 %v1661, %v1660
      %v1855 = vpack.c.b16 %v1663, %v1662
      %v1856 = vpack.c.b16 %v1665, %v1664
      %v1857 = vpack.c.b16 %v1667, %v1666
      %v1858 = vpack.c.b16 %v1669, %v1668
      %v1859 = vpack.c.b16 %v1671, %v1670
      %v1860 = vpack.c.b16 %v1673, %v1672
      %v1861 = vpack.c.b16 %v1675, %v1674
      %v1862 = vpack.c.b16 %v1677, %v1676
      %v1863 = vpack.c.b16 %v1679, %v1678
      %v1864 = vpack.c.b16 %v1681, %v1680
      %v1865 = vpack.c.b16 %v1683, %v1682
      %v1866 = vpack.c.b16 %v1685, %v1684
      %v1867 = vpack.c.b16 %v1687, %v1686
      %v1868 = vpack.c.b16 %v1689, %v1688
      %v1869 = vpack.c.b16 %v1691, %v1690
      %v1870 = vpack.c.b16 %v1693, %v1692
      %v1871 = vpack.c.b16 %v1695, %v1694
      %v1872 = vpack.c.b16 %v1697, %v1696
      %v1873 = vpack.c.b16 %v1699, %v1698
      %v1874 = vpack.c.b16 %v1701, %v1700
      %v1875 = vpack.c.b16 %v1703, %v1702
      %v1876 = vpack.c.b16 %v1705, %v1704
      %v1877 = vpack.c.b16 %v1707, %v1706
      %v1878 = vpack.c.b16 %v1709, %v1708
      %v1879 = vpack.c.b16 %v1711, %v1710
      %v1880 = vpack.c.b16 %v1713, %v1712
      %v1881 = vpack.c.b16 %v1715, %v1714
      %v1882 = vpack.c.b16 %v1717, %v1716
      %v1883 = vpack.c.b16 %v1719, %v1718
      %v1884 = vpack.c.b16 %v1721, %v1720
      %v1885 = vpack.c.b16 %v1723, %v1722
      %v1886 = vpack.c.b16 %v1725, %v1724
      %v1887 = vpack.c.b16 %v1727, %v1726
      %v1888 = vpack.c.b16 %v1729, %v1728
      %v1889 = vpack.c.b16 %v1731, %v1730
      %v1890 = vpack.c.b16 %v1733, %v1732
      %v1891 = vpack.c.b16 %v1735, %v1734
      %v1892 = vpack.c.b16 %v1737, %v1736
      %v1893 = vpack.c.b16 %v1739, %v1738
      %v1894 = vpack.c.b16 %v1741, %v1740
      %v1895 = vpack.c.b16 %v1743, %v1742
      %v1896 = vpack.c.b16 %v1745, %v1744
      %v1897 = vpack.c.b16 %v1747, %v1746
      %v1898 = vpack.c.b16 %v1749, %v1748
      %v1899 = vpack.c.b16 %v1751, %v1750
      %v1900 = vpack.c.b16 %v1753, %v1752
      %v1901 = vpack.c.b16 %v1755, %v1754
      %v1902 = vpack.c.b16 %v1757, %v1756
      %v1903 = vpack.c.b16 %v1759, %v1758
      %v1904 = vpack.c.b16 %v1761, %v1760
      %v1905 = vpack.c.b16 %v1763, %v1762
      %v1906 = vpack.c.b16 %v1765, %v1764
      %v1907 = vpack.c.b16 %v1767, %v1766
      %v1908 = vpack.c.b16 %v1769, %v1768
      %v1909 = vpack.c.b16 %v1771, %v1770
      %v1910 = vpack.c.b16 %v1773, %v1772
      %v1911 = vpack.c.b16 %v1775, %v1774
      %v1912 = vpack.c.b16 %v1777, %v1776
      %v1913 = vpack.c.b16 %v1779, %v1778
      %v1914 = vpack.c.b16 %v1781, %v1780
      %v1915 = vpack.c.b16 %v1783, %v1782
      %v1916 = vpack.c.b16 %v1785, %v1784
      %v1917 = vpack.c.b16 %v1787, %v1786
      %v1918 = vpack.c.b16 %v1789, %v1788
      %v1919 = vpack.c.b16 %v1791, %v1790
      %2048 = vmatpush.bf16.msra.mxu0 %v1799
      %2049 = vmatpush.bf16.msra.mxu0 %v1798
      %2050 = vmatpush.bf16.msra.mxu0 %v1797
      %2051 = vmatpush.bf16.msra.mxu0 %v1796
      %2052 = vmatpush.bf16.msra.mxu0 %v1795
      %2053 = vmatpush.bf16.msra.mxu0 %v1794
      %2054 = vmatpush.bf16.msra.mxu0 %v1793
      %2055 = vmatpush.bf16.msra.mxu0 %v1792
      %2056 = vmatmul.bf16.gmra.mxu0 %v1004
      %v2057 = vpop.f32.mrf.mxu0
      %v2058 = vadd.f32 %v1278, %v2057
      %v2059 = vpop.f32.mrf.mxu0
      %2060 = vdwg.mxu0
      %2061 = vmatpush.bf16.msra.mxu0 %v1807
      %2062 = vmatpush.bf16.msra.mxu0 %v1806
      %2063 = vmatpush.bf16.msra.mxu0 %v1805
      %2064 = vmatpush.bf16.msra.mxu0 %v1804
      %2065 = vmatpush.bf16.msra.mxu0 %v1803
      %2066 = vmatpush.bf16.msra.mxu0 %v1802
      %2067 = vmatpush.bf16.msra.mxu0 %v1801
      %2068 = vmatpush.bf16.msra.mxu0 %v1800
      %2069 = vmatmul.bf16.gmra.mxu0 %v1005
      %v2070 = vpop.f32.mrf.mxu0
      %v2071 = vadd.f32 %v2058, %v2070
      %v2072 = vpop.f32.mrf.mxu0
      %2073 = vdwg.mxu0
      %2074 = vmatpush.bf16.msra.mxu0 %v1815
      %2075 = vmatpush.bf16.msra.mxu0 %v1814
      %2076 = vmatpush.bf16.msra.mxu0 %v1813
      %2077 = vmatpush.bf16.msra.mxu0 %v1812
      %2078 = vmatpush.bf16.msra.mxu0 %v1811
      %2079 = vmatpush.bf16.msra.mxu0 %v1810
      %2080 = vmatpush.bf16.msra.mxu0 %v1809
      %2081 = vmatpush.bf16.msra.mxu0 %v1808
      %2082 = vmatmul.bf16.gmra.mxu0 %v1006
      %v2083 = vpop.f32.mrf.mxu0
      %v2084 = vadd.f32 %v2071, %v2083
      %v2085 = vpop.f32.mrf.mxu0
      %2086 = vdwg.mxu0
      %2087 = vmatpush.bf16.msra.mxu0 %v1823
      %2088 = vmatpush.bf16.msra.mxu0 %v1822
      %2089 = vmatpush.bf16.msra.mxu0 %v1821
      %2090 = vmatpush.bf16.msra.mxu0 %v1820
      %2091 = vmatpush.bf16.msra.mxu0 %v1819
      %2092 = vmatpush.bf16.msra.mxu0 %v1818
      %2093 = vmatpush.bf16.msra.mxu0 %v1817
      %2094 = vmatpush.bf16.msra.mxu0 %v1816
      %2095 = vmatmul.bf16.gmra.mxu0 %v1007
      %v2096 = vpop.f32.mrf.mxu0
      %v2097 = vadd.f32 %v2084, %v2096
      %v2098 = vpop.f32.mrf.mxu0
      %2099 = vdwg.mxu0
      %2100 = vmatpush.bf16.msra.mxu0 %v1831
      %2101 = vmatpush.bf16.msra.mxu0 %v1830
      %2102 = vmatpush.bf16.msra.mxu0 %v1829
      %2103 = vmatpush.bf16.msra.mxu0 %v1828
      %2104 = vmatpush.bf16.msra.mxu0 %v1827
      %2105 = vmatpush.bf16.msra.mxu0 %v1826
      %2106 = vmatpush.bf16.msra.mxu0 %v1825
      %2107 = vmatpush.bf16.msra.mxu0 %v1824
      %2108 = vmatmul.bf16.gmra.mxu0 %v1008
      %v2109 = vpop.f32.mrf.mxu0
      %v2110 = vadd.f32 %v2097, %v2109
      %v2111 = vpop.f32.mrf.mxu0
      %2112 = vdwg.mxu0
      %2113 = vmatpush.bf16.msra.mxu0 %v1839
      %2114 = vmatpush.bf16.msra.mxu0 %v1838
      %2115 = vmatpush.bf16.msra.mxu0 %v1837
      %2116 = vmatpush.bf16.msra.mxu0 %v1836
      %2117 = vmatpush.bf16.msra.mxu0 %v1835
      %2118 = vmatpush.bf16.msra.mxu0 %v1834
      %2119 = vmatpush.bf16.msra.mxu0 %v1833
      %2120 = vmatpush.bf16.msra.mxu0 %v1832
      %2121 = vmatmul.bf16.gmra.mxu0 %v1009
      %v2122 = vpop.f32.mrf.mxu0
      %v2123 = vadd.f32 %v2110, %v2122
      %v2124 = vpop.f32.mrf.mxu0
      %2125 = vdwg.mxu0
      %2126 = vmatpush.bf16.msra.mxu0 %v1847
      %2127 = vmatpush.bf16.msra.mxu0 %v1846
      %2128 = vmatpush.bf16.msra.mxu0 %v1845
      %2129 = vmatpush.bf16.msra.mxu0 %v1844
      %2130 = vmatpush.bf16.msra.mxu0 %v1843
      %2131 = vmatpush.bf16.msra.mxu0 %v1842
      %2132 = vmatpush.bf16.msra.mxu0 %v1841
      %2133 = vmatpush.bf16.msra.mxu0 %v1840
      %2134 = vmatmul.bf16.gmra.mxu0 %v1010
      %v2135 = vpop.f32.mrf.mxu0
      %v2136 = vadd.f32 %v2123, %v2135
      %v2137 = vpop.f32.mrf.mxu0
      %2138 = vdwg.mxu0
      %2139 = vmatpush.bf16.msra.mxu0 %v1855
      %2140 = vmatpush.bf16.msra.mxu0 %v1854
      %2141 = vmatpush.bf16.msra.mxu0 %v1853
      %2142 = vmatpush.bf16.msra.mxu0 %v1852
      %2143 = vmatpush.bf16.msra.mxu0 %v1851
      %2144 = vmatpush.bf16.msra.mxu0 %v1850
      %2145 = vmatpush.bf16.msra.mxu0 %v1849
      %2146 = vmatpush.bf16.msra.mxu0 %v1848
      %2147 = vmatmul.bf16.gmra.mxu0 %v1011
      %v2148 = vpop.f32.mrf.mxu0
      %v2149 = vadd.f32 %v2136, %v2148
      %v2150 = vpop.f32.mrf.mxu0
      %2151 = vdwg.mxu0
      %2152 = vmatpush.bf16.msra.mxu0 %v1863
      %2153 = vmatpush.bf16.msra.mxu0 %v1862
      %2154 = vmatpush.bf16.msra.mxu0 %v1861
      %2155 = vmatpush.bf16.msra.mxu0 %v1860
      %2156 = vmatpush.bf16.msra.mxu0 %v1859
      %2157 = vmatpush.bf16.msra.mxu0 %v1858
      %2158 = vmatpush.bf16.msra.mxu0 %v1857
      %2159 = vmatpush.bf16.msra.mxu0 %v1856
      %2160 = vmatmul.bf16.gmra.mxu0 %v1012
      %v2161 = vpop.f32.mrf.mxu0
      %v2162 = vadd.f32 %v2149, %v2161
      %v2163 = vpop.f32.mrf.mxu0
      %2164 = vdwg.mxu0
      %2165 = vmatpush.bf16.msra.mxu0 %v1871
      %2166 = vmatpush.bf16.msra.mxu0 %v1870
      %2167 = vmatpush.bf16.msra.mxu0 %v1869
      %2168 = vmatpush.bf16.msra.mxu0 %v1868
      %2169 = vmatpush.bf16.msra.mxu0 %v1867
      %2170 = vmatpush.bf16.msra.mxu0 %v1866
      %2171 = vmatpush.bf16.msra.mxu0 %v1865
      %2172 = vmatpush.bf16.msra.mxu0 %v1864
      %2173 = vmatmul.bf16.gmra.mxu0 %v1013
      %v2174 = vpop.f32.mrf.mxu0
      %v2175 = vadd.f32 %v2162, %v2174
      %v2176 = vpop.f32.mrf.mxu0
      %2177 = vdwg.mxu0
      %2178 = vmatpush.bf16.msra.mxu0 %v1879
      %2179 = vmatpush.bf16.msra.mxu0 %v1878
      %2180 = vmatpush.bf16.msra.mxu0 %v1877
      %2181 = vmatpush.bf16.msra.mxu0 %v1876
      %2182 = vmatpush.bf16.msra.mxu0 %v1875
      %2183 = vmatpush.bf16.msra.mxu0 %v1874
      %2184 = vmatpush.bf16.msra.mxu0 %v1873
      %2185 = vmatpush.bf16.msra.mxu0 %v1872
      %2186 = vmatmul.bf16.gmra.mxu0 %v1014
      %v2187 = vpop.f32.mrf.mxu0
      %v2188 = vadd.f32 %v2175, %v2187
      %v2189 = vpop.f32.mrf.mxu0
      %2190 = vdwg.mxu0
      %2191 = vmatpush.bf16.msra.mxu0 %v1887
      %2192 = vmatpush.bf16.msra.mxu0 %v1886
      %2193 = vmatpush.bf16.msra.mxu0 %v1885
      %2194 = vmatpush.bf16.msra.mxu0 %v1884
      %2195 = vmatpush.bf16.msra.mxu0 %v1883
      %2196 = vmatpush.bf16.msra.mxu0 %v1882
      %2197 = vmatpush.bf16.msra.mxu0 %v1881
      %2198 = vmatpush.bf16.msra.mxu0 %v1880
      %2199 = vmatmul.bf16.gmra.mxu0 %v1015
      %v2200 = vpop.f32.mrf.mxu0
      %v2201 = vadd.f32 %v2188, %v2200
      %v2202 = vpop.f32.mrf.mxu0
      %2203 = vdwg.mxu0
      %2204 = vmatpush.bf16.msra.mxu0 %v1895
      %2205 = vmatpush.bf16.msra.mxu0 %v1894
      %2206 = vmatpush.bf16.msra.mxu0 %v1893
      %2207 = vmatpush.bf16.msra.mxu0 %v1892
      %2208 = vmatpush.bf16.msra.mxu0 %v1891
      %2209 = vmatpush.bf16.msra.mxu0 %v1890
      %2210 = vmatpush.bf16.msra.mxu0 %v1889
      %2211 = vmatpush.bf16.msra.mxu0 %v1888
      %2212 = vmatmul.bf16.gmra.mxu0 %v1016
      %v2213 = vpop.f32.mrf.mxu0
      %v2214 = vadd.f32 %v2201, %v2213
      %v2215 = vpop.f32.mrf.mxu0
      %2216 = vdwg.mxu0
      %2217 = vmatpush.bf16.msra.mxu0 %v1903
      %2218 = vmatpush.bf16.msra.mxu0 %v1902
      %2219 = vmatpush.bf16.msra.mxu0 %v1901
      %2220 = vmatpush.bf16.msra.mxu0 %v1900
      %2221 = vmatpush.bf16.msra.mxu0 %v1899
      %2222 = vmatpush.bf16.msra.mxu0 %v1898
      %2223 = vmatpush.bf16.msra.mxu0 %v1897
      %2224 = vmatpush.bf16.msra.mxu0 %v1896
      %2225 = vmatmul.bf16.gmra.mxu0 %v1017
      %v2226 = vpop.f32.mrf.mxu0
      %v2227 = vadd.f32 %v2214, %v2226
      %v2228 = vpop.f32.mrf.mxu0
      %2229 = vdwg.mxu0
      %2230 = vmatpush.bf16.msra.mxu0 %v1911
      %2231 = vmatpush.bf16.msra.mxu0 %v1910
      %2232 = vmatpush.bf16.msra.mxu0 %v1909
      %2233 = vmatpush.bf16.msra.mxu0 %v1908
      %2234 = vmatpush.bf16.msra.mxu0 %v1907
      %2235 = vmatpush.bf16.msra.mxu0 %v1906
      %2236 = vmatpush.bf16.msra.mxu0 %v1905
      %2237 = vmatpush.bf16.msra.mxu0 %v1904
      %2238 = vmatmul.bf16.gmra.mxu0 %v1018
      %v2239 = vpop.f32.mrf.mxu0
      %v2240 = vadd.f32 %v2227, %v2239
      %v2241 = vpop.f32.mrf.mxu0
      %2242 = vdwg.mxu0
      %2243 = vmatpush.bf16.msra.mxu0 %v1919
      %2244 = vmatpush.bf16.msra.mxu0 %v1918
      %2245 = vmatpush.bf16.msra.mxu0 %v1917
      %2246 = vmatpush.bf16.msra.mxu0 %v1916
      %2247 = vmatpush.bf16.msra.mxu0 %v1915
      %2248 = vmatpush.bf16.msra.mxu0 %v1914
      %2249 = vmatpush.bf16.msra.mxu0 %v1913
      %2250 = vmatpush.bf16.msra.mxu0 %v1912
      %2251 = vmatmul.bf16.gmra.mxu0 %v1019
      %v2252 = vpop.f32.mrf.mxu0
      %v2253 = vadd.f32 %v2240, %v2252
      %v2254 = vpop.f32.mrf.mxu0
      %2255 = vdwg.mxu0
      %v2256 = vadd.f32 %v547, %v2253
      %v2257 = vld [vmem:[%s10] sm:$0x1]
      %v2258 = vld [vmem:[%s11] sm:$0x1]
      %v2259 = vsel %vm491, %v2256, 0.0
      %2260 = vadd.xlane.f32.xlu0 %v2259
      %v2261 = vpop.xlane.xlu0 %2260
      %v2262 = vmul.f32 %v2261, %v520
      %v2263 = vsub.f32 %v2256, %v2262
      %v2264 = vmul.f32 %v2263, %v2263
      %v2265 = vsel %vm491, %v2264, 0.0
      %2266 = vadd.xlane.f32.xlu0 %v2265
      %v2267 = vpop.xlane.xlu0 %2266
      %v2268 = vmul.f32 %v2267, %v520
      %v2269 = vadd.f32 %v2268, 1e-05
      %v2270 = vrsqrt.pop %v2269
      %v2271 = vmul.f32 %v2270, %v2269
      %v2272 = vmul.f32 %v2271, %v2270
      %v2273 = vmul.f32 0.5, %v2272
      %v2274 = vsub.f32 1.5, %v2273
      %v2275 = vmul.f32 %v2270, %v2274
      %vm2276 = vweird.f32 %v2269
      %vm2277 = vweird.f32 %v2270
      %vm2278 = vmor %vm2276, %vm2277
      %v2279 = vsel %vm2278, %v2270, %v2275
      %v2280 = vmul.f32 %v2263, %v2279
      %v2282 = vperm.slane %v2257, 0
      %v2284 = vmul.f32 %v2280, %v2282
      %v2286 = vperm.slane %v2258, 0
      %v2288 = vadd.f32 %v2284, %v2286
      %v2289 = vpack.c.bf16 %v2288, %v2288
      %vm2290 = vcmask 257024
      %2291 = vst.msk [vmem:[%s467] sm:$0xf] %vm2290, %v2289
      %p2292 = scmp.lt.s32.totalorder %s27, 1
      %s2293 = scalar_select %p2292, %s27, 1
      %p2294 = scmp.lt.s32.totalorder %s28, 0
      %s2295 = scalar_select %p2294, %s28, 0
      %s2296 = sadd.s32 %s2295, %s2293
      %s2297 = smul.addr %s2296, 4
      %s2298 = scalar_lea.vmem %s12, %s2297
      // Predicated region
      $region69: #{transformer_encoder_forward.8} parent=67 // pred_check
        %p2299 = pneg %p321
      $region70: #{transformer_encoder_forward.8} parent=67 // pred_check_branch
        %2301 = sbr.rel (%p2299) target = $region72
      $region71: #{transformer_encoder_forward.8} parent=67 // pred_region
        _
      $region72: #{transformer_encoder_forward.8} parent=67 // pred_fallthru
        _
    $region68: #{transformer_encoder_forward.8} parent=5 // pred_fallthru
      _
    %p2302 = scmp.le.s32.totalorder 2, %s18
    // Predicated region
    $region73: #{transformer_encoder_forward.8} parent=5 // pred_check
      %p2303 = pneg %p2302
    $region74: #{transformer_encoder_forward.8} parent=5 // pred_check_branch
      %2305 = sbr.rel (%p2303) target = $region76
    $region75: #{transformer_encoder_forward.8} parent=5 // pred_region
      %s2306 = ssub.s32 %s18, 2
      // Predicated region
      $region77: #{transformer_encoder_forward.8} parent=75 // pred_check
        %p2307 = pneg %p327
      $region78: #{transformer_encoder_forward.8} parent=75 // pred_check_branch
        %2309 = sbr.rel (%p2307) target = $region80
      $region79: #{transformer_encoder_forward.8} parent=75 // pred_region
        %p2310 = scmp.lt.s32.totalorder %s29, 1
        %s2311 = scalar_select %p2310, %s29, 1
        %p2312 = scmp.lt.s32.totalorder %s30, 0
        %s2313 = scalar_select %p2312, %s30, 0
        %s2314 = sadd.s32 %s2313, %s2311
        %s2315 = smul.addr %s2314, 4
        %s2316 = scalar_lea.vmem %s12, %s2315
      $region80: #{transformer_encoder_forward.8} parent=75 // pred_fallthru
        _
    $region76: #{transformer_encoder_forward.8} parent=5 // pred_fallthru
      _
  $region6: #{transformer_encoder_forward.8} parent=0 // loop_footer
    %s22 = sadd.s32 1, %s18
  $region7: #{transformer_encoder_forward.8} parent=0 // loop_footer_branch
    %17 = sbr.rel target = $region3
  $region8: #{transformer_encoder_forward.8} parent=0 // loop_exit
    _

</llo_original>
